<compile_context>
chip_gen: v7x
topology: tpu7x:2x2x1
jax: 0.10.0
libtpu: 0.0.40
codegen_flags: <defaults>
</compile_context>

<pallas_src>
import math
from functools import partial

import jax
import jax.numpy as jnp
import numpy as np
from jax import lax
from jax.experimental import pallas as pl
from jax.experimental.pallas import tpu as pltpu

EPS = 1e-6        # Norm eps (matches the reference Norm module)
NEG_INF = -1e9


# ---------------------------------------------------------------------------
# In-kernel building blocks (traced inline into the Pallas kernel body)
# ---------------------------------------------------------------------------
def _norm(x, alpha, bias):
    # torch: alpha * (x - mean) / (x.std(-1, unbiased=True) + eps) + bias
    d = x.shape[-1]
    mean = jnp.mean(x, axis=-1, keepdims=True)
    var = jnp.sum((x - mean) ** 2, axis=-1, keepdims=True) / (d - 1)
    # exact divide: keeps the residual stream accurate across stacked layers;
    # only the softmax denominator uses the approx EUP reciprocal.
    return alpha * (x - mean) / (jnp.sqrt(var) + EPS) + bias


# ---------------------------------------------------------------------------
# Pallas kernel: full DecoderLayer forward for one batch tile per grid step
# ---------------------------------------------------------------------------
def decoder_layer_kernel(x_ref, e_ref, smask_ref, *rest,
                         heads, bt, s_t, s_s, d_model, causal):
    if causal:
        tmask_ref = None
        wrefs = rest[:-1]
    else:
        tmask_ref = rest[0]
        wrefs = rest[1:-1]
    out_ref = rest[-1]
    (wq1, bq1, wk1, bk1, wv1, bv1, wo1, bo1,
     wq2, bq2, wk2, bk2, wv2, bv2, wo2, bo2,
     w1, b1, w2, b2,
     a1, nb1, a2, nb2, a3, nb3) = wrefs

    dk = d_model // heads
    x2 = x_ref[...]                        # (bt*S_t, D) f32 -- batch folded into M
    e2 = e_ref[...]                        # (bt*S_s, D) f32

    # ---- additive mask biases, computed once and reused by every head ------
    if causal:
        row = lax.broadcasted_iota(jnp.int32, (s_t, s_t), 0)
        col = lax.broadcasted_iota(jnp.int32, (s_t, s_t), 1)
        tbias = jnp.where(row >= col, 0.0, NEG_INF)            # (S_t, S_t)
    else:
        tb = jnp.where(tmask_ref[...] != 0, 0.0, NEG_INF)      # (bt, S_t, S_t)
        tbias = jnp.broadcast_to(
            tb[:, None], (bt, heads, s_t, s_t)).reshape(bt * heads, s_t, s_t)
    sb = jnp.where(smask_ref[...] != 0, 0.0, NEG_INF)          # (bt, 1, S_s)
    sbias = jnp.broadcast_to(
        sb[:, None], (bt, heads, 1, s_s)).reshape(bt * heads, 1, s_s)

    def split_heads(t2d, s):
        # (bt*s, d_model) -> (bt*heads, s, dk): heads folded into batch axis
        return (t2d.reshape(bt, s, heads, dk)
                   .transpose(0, 2, 1, 3)
                   .reshape(bt * heads, s, dk))

    def merge_heads(t3d, s):
        # (bt*heads, s, dk) -> (bt*s, d_model)
        return (t3d.reshape(bt, heads, s, dk)
                   .transpose(0, 2, 1, 3)
                   .reshape(bt * s, d_model))

    def mha(q2d, kv2d, sq, sk, bias, wq, bq, wk, bk, wv, bv, wo, bo):
        # bf16 MXU operands, f32 accumulation; everything else stays f32.
        q_bf = q2d.astype(jnp.bfloat16)
        kv_bf = kv2d.astype(jnp.bfloat16)
        # 1/sqrt(dk) was pre-folded into wq/bq in prepare_params().
        q = jnp.dot(q_bf, wq[...], preferred_element_type=jnp.float32) + bq[...]
        k = jnp.dot(kv_bf, wk[...], preferred_element_type=jnp.float32) + bk[...]
        v = jnp.dot(kv_bf, wv[...], preferred_element_type=jnp.float32) + bv[...]

        qh = split_heads(q, sq).astype(jnp.bfloat16)    # (bt*H, sq, dk)
        kh = split_heads(k, sk).astype(jnp.bfloat16)    # (bt*H, sk, dk)
        vh = split_heads(v, sk).astype(jnp.bfloat16)

        # TODO(synk): for long sequences tile the key axis (flash-style online
        # softmax) instead of materializing (bt*H, sq, sk) f32 scores.
        s = jnp.einsum("bqd,bkd->bqk", qh, kh,
                       preferred_element_type=jnp.float32) + bias
        m = jnp.max(s, axis=-1, keepdims=True)
        p = jnp.exp(s - m)
        p = p * pl.reciprocal(jnp.sum(p, axis=-1, keepdims=True), approx=True)
        ctx = jnp.einsum("bqk,bkd->bqd", p.astype(jnp.bfloat16), vh,
                         preferred_element_type=jnp.float32)
        # single output projection with full contraction depth K = d_model
        ctx2d = merge_heads(ctx, sq).astype(jnp.bfloat16)
        return jnp.dot(ctx2d, wo[...],
                       preferred_element_type=jnp.float32) + bo[...]

    # 1) masked self-attention + residual + norm_1  (dropout == identity)
    x2 = _norm(x2 + mha(x2, x2, s_t, s_t, tbias,
                        wq1, bq1, wk1, bk1, wv1, bv1, wo1, bo1),
               a1[...], nb1[...])

    # 2) cross-attention over encoder outputs + residual + norm_2
    x2 = _norm(x2 + mha(x2, e2, s_t, s_s, sbias,
                        wq2, bq2, wk2, bk2, wv2, bv2, wo2, bo2),
               a2[...], nb2[...])

    # 3) feed-forward (linear -> relu -> linear) + residual + norm_3
    # TODO(synk): tile over d_ff / single-buffer weights at realistic sizes.
    hdn = jnp.maximum(
        jnp.dot(x2.astype(jnp.bfloat16), w1[...],
                preferred_element_type=jnp.float32) + b1[...], 0.0)
    ff = jnp.dot(hdn.astype(jnp.bfloat16), w2[...],
                 preferred_element_type=jnp.float32) + b2[...]
    x2 = _norm(x2 + ff, a3[...], nb3[...])

    out_ref[...] = x2


def _full(shape):
    n = len(shape)
    return pl.BlockSpec(shape, lambda *_, _n=n: (0,) * _n)


def _pick_batch_tile(B, S_t, rows_target=512):
    # Largest divisor of B with bt*S_t <= rows_target, capped at B//2 so the
    # grid always has >= 2 parallel steps (v7x has 2 TensorCores; a (1,) grid
    # would leave one idle).  v5e/v6e just see slightly smaller M tiles.
    cap = max(1, B // 2)
    best = 1
    for cand in range(1, cap + 1):
        if B % cand == 0 and cand * S_t <= rows_target:
            best = cand
    return best


def prepare_params(params, heads):
    """Cast matmul weights to bf16 ONCE and fold 1/sqrt(dk) into the Q proj."""
    d_model = params["wq1"].shape[0]
    scale = 1.0 / math.sqrt(d_model // heads)
    p = dict(params)
    for name in ("wk1", "wv1", "wo1", "wk2", "wv2", "wo2", "ff_w1", "ff_w2"):
        p[name] = params[name].astype(jnp.bfloat16)
    for name in ("wq1", "wq2"):
        p[name] = (params[name] * scale).astype(jnp.bfloat16)
    for name in ("bq1", "bq2"):
        p[name] = params[name] * scale
    return p


def decoder_layer(x, e_outputs, src_mask, trg_mask, params, heads):
    """x: (B, S_t, D) f32; e_outputs: (B, S_s, D) f32; src_mask: (B, 1, S_s)
    (nonzero == keep); trg_mask: (B, S_t, S_t) or None for a causal mask
    generated in-kernel; params: output of prepare_params()."""
    B, S_t, D = x.shape
    S_s = e_outputs.shape[1]
    causal = trg_mask is None

    bt = _pick_batch_tile(B, S_t)
    grid = (B // bt,)

    # fold batch into the matmul M dimension (kernel sees (bt*S_t, D) rows)
    x2d = x.reshape(B * S_t, D)
    e2d = e_outputs.reshape(B * S_s, D)
    smask = (src_mask != 0).astype(jnp.int32)       # (B, 1, S_s)

    p = params
    weight_args = [
        p["wq1"], p["bq1"], p["wk1"], p["bk1"], p["wv1"], p["bv1"],
        p["wo1"], p["bo1"],
        p["wq2"], p["bq2"], p["wk2"], p["bk2"], p["wv2"], p["bv2"],
        p["wo2"], p["bo2"],
        p["ff_w1"], p["ff_b1"], p["ff_w2"], p["ff_b2"],
        p["n1_a"], p["n1_b"], p["n2_a"], p["n2_b"], p["n3_a"], p["n3_b"],
    ]

    inputs = [x2d, e2d, smask]
    in_specs = [
        pl.BlockSpec((bt * S_t, D), lambda b: (b, 0)),
        pl.BlockSpec((bt * S_s, D), lambda b: (b, 0)),
        pl.BlockSpec((bt, 1, S_s), lambda b: (b, 0, 0)),
    ]
    if not causal:
        inputs.append((trg_mask != 0).astype(jnp.int32))
        in_specs.append(pl.BlockSpec((bt, S_t, S_t), lambda b: (b, 0, 0)))
    inputs += weight_args
    in_specs += [_full(w.shape) for w in weight_args]

    out_specs = pl.BlockSpec((bt * S_t, D), lambda b: (b, 0))

    kernel = partial(decoder_layer_kernel, heads=heads, bt=bt,
                     s_t=S_t, s_s=S_s, d_model=D, causal=causal)
    out2d = pl.pallas_call(
        kernel,
        out_shape=jax.ShapeDtypeStruct((B * S_t, D), jnp.float32),
        grid_spec=pltpu.PrefetchScalarGridSpec(
            num_scalar_prefetch=0,
            grid=grid,
            in_specs=in_specs,
            out_specs=out_specs,
        ),
        compiler_params=pltpu.CompilerParams(
            dimension_semantics=("parallel",),
            vmem_limit_bytes=64 * 1024 * 1024),
    )(*inputs)
    return out2d.reshape(B, S_t, D)


# ---------------------------------------------------------------------------
# Deterministic synthetic parameters (module __init__ shapes), kept in f32
# ---------------------------------------------------------------------------
def init_params(key, d_model, d_ff):
    keys = jax.random.split(key, 24)
    ki = iter(keys)

    def w(shape):
        return jax.random.normal(next(ki), shape, jnp.float32) * 0.02

    def b(n):
        return jax.random.normal(next(ki), (1, n), jnp.float32) * 0.02

    params = {}
    for name in ("q1", "k1", "v1", "o1", "q2", "k2", "v2", "o2"):
        params["w" + name] = w((d_model, d_model))
        params["b" + name] = b(d_model)
    params["ff_w1"] = w((d_model, d_ff))
    params["ff_b1"] = b(d_ff)
    params["ff_w2"] = w((d_ff, d_model))
    params["ff_b2"] = b(d_model)
    for i in (1, 2, 3):  # Norm: alpha = ones, bias = zeros
        params[f"n{i}_a"] = jnp.ones((1, d_model), jnp.float32)
        params[f"n{i}_b"] = jnp.zeros((1, d_model), jnp.float32)
    return params


# ---------------------------------------------------------------------------
# Pure-JAX f32 reference (mirrors the PyTorch forward, dropout in eval mode)
# ---------------------------------------------------------------------------
def reference(x, e, src_mask, trg_mask, p, heads):
    def norm(x, a, b):
        mean = x.mean(-1, keepdims=True)
        var = ((x - mean) ** 2).sum(-1, keepdims=True) / (x.shape[-1] - 1)
        return a * (x - mean) / (jnp.sqrt(var) + EPS) + b

    def mha(qi, ki, vi, mask, wq, bq, wk, bk, wv, bv, wo, bo):
        B, Sq, D = qi.shape
        Sk = ki.shape[1]
        dk = D // heads
        q = (qi @ wq + bq).reshape(B, Sq, heads, dk).transpose(0, 2, 1, 3)
        k = (ki @ wk + bk).reshape(B, Sk, heads, dk).transpose(0, 2, 1, 3)
        v = (vi @ wv + bv).reshape(B, Sk, heads, dk).transpose(0, 2, 1, 3)
        s = jnp.einsum("bhqd,bhkd->bhqk", q, k) / math.sqrt(dk)
        s = jnp.where(mask[:, None] == 0.0, -1e9, s)
        pr = jax.nn.softmax(s, -1)
        ctx = jnp.einsum("bhqk,bhkd->bhqd", pr, v)
        ctx = ctx.transpose(0, 2, 1, 3).reshape(B, Sq, D)
        return ctx @ wo + bo

    B, S_t, D = x.shape
    S_s = e.shape[1]
    smask = jnp.broadcast_to(src_mask.astype(jnp.float32), (B, S_t, S_s))
    tmask = trg_mask.astype(jnp.float32)

    a1 = mha(x, x, x, tmask, p["wq1"], p["bq1"], p["wk1"], p["bk1"],
             p["wv1"], p["bv1"], p["wo1"], p["bo1"])
    x = norm(x + a1, p["n1_a"], p["n1_b"])
    a2 = mha(x, e, e, smask, p["wq2"], p["bq2"], p["wk2"], p["bk2"],
             p["wv2"], p["bv2"], p["wo2"], p["bo2"])
    x = norm(x + a2, p["n2_a"], p["n2_b"])
    ff = jnp.maximum(x @ p["ff_w1"] + p["ff_b1"], 0.0) @ p["ff_w2"] + p["ff_b2"]
    x = norm(x + ff, p["n3_a"], p["n3_b"])
    return x


if __name__ == "__main__":
    B, heads, d_model, d_ff = 2, 4, 32, 64
    S_t, S_s = 8, 8

    key = jax.random.PRNGKey(0)
    kx, ke, kp = jax.random.split(key, 3)
    x = jax.random.normal(kx, (B, S_t, d_model), jnp.float32)
    e_outputs = jax.random.normal(ke, (B, S_s, d_model), jnp.float32)

    # causal target mask (B, S_t, S_t); padding-style source mask (B, 1, S_s)
    trg_mask = jnp.broadcast_to(
        jnp.tril(jnp.ones((S_t, S_t), jnp.float32)), (B, S_t, S_t))
    src_mask = jnp.ones((B, 1, S_s), jnp.float32)
    src_mask = src_mask.at[1, 0, S_s - 2:].set(0.0)  # pad last 2 src tokens of batch 1

    params = init_params(kp, d_model, d_ff)
    packed = prepare_params(params, heads)   # bf16 weights + folded scale, ONCE

    ref = reference(x, e_outputs, src_mask, trg_mask, params, heads)

    # (a) fast path: causal target mask generated in-kernel (trg_mask=None)
    out = decoder_layer(x, e_outputs, src_mask, None, packed, heads)
    out = jax.block_until_ready(out)
    # bf16 MXU inputs + approx softmax reciprocal vs. the pure-f32 reference
    np.testing.assert_allclose(np.asarray(out), np.asarray(ref),
                               rtol=2e-2, atol=2e-2)

    # (b) module-faithful path: explicit trg_mask input (here the same causal)
    out2 = decoder_layer(x, e_outputs, src_mask, trg_mask, packed, heads)
    out2 = jax.block_until_ready(out2)
    np.testing.assert_allclose(np.asarray(out2), np.asarray(ref),
                               rtol=2e-2, atol=2e-2)

    print("KERNEL_OK")
</pallas_src>

<mosaic_0001>
module attributes {stable_mosaic.version = 11 : i64} {
  func.func @decoder_layer_kernel(%arg0: i32, %arg1: memref<8x32xf32, #tpu.memory_space<vmem>>, %arg2: memref<8x32xf32, #tpu.memory_space<vmem>>, %arg3: memref<1x1x8xi32, #tpu.memory_space<vmem>>, %arg4: memref<32x32xbf16, #tpu.memory_space<vmem>>, %arg5: memref<1x32xf32, #tpu.memory_space<vmem>>, %arg6: memref<32x32xbf16, #tpu.memory_space<vmem>>, %arg7: memref<1x32xf32, #tpu.memory_space<vmem>>, %arg8: memref<32x32xbf16, #tpu.memory_space<vmem>>, %arg9: memref<1x32xf32, #tpu.memory_space<vmem>>, %arg10: memref<32x32xbf16, #tpu.memory_space<vmem>>, %arg11: memref<1x32xf32, #tpu.memory_space<vmem>>, %arg12: memref<32x32xbf16, #tpu.memory_space<vmem>>, %arg13: memref<1x32xf32, #tpu.memory_space<vmem>>, %arg14: memref<32x32xbf16, #tpu.memory_space<vmem>>, %arg15: memref<1x32xf32, #tpu.memory_space<vmem>>, %arg16: memref<32x32xbf16, #tpu.memory_space<vmem>>, %arg17: memref<1x32xf32, #tpu.memory_space<vmem>>, %arg18: memref<32x32xbf16, #tpu.memory_space<vmem>>, %arg19: memref<1x32xf32, #tpu.memory_space<vmem>>, %arg20: memref<32x64xbf16, #tpu.memory_space<vmem>>, %arg21: memref<1x64xf32, #tpu.memory_space<vmem>>, %arg22: memref<64x32xbf16, #tpu.memory_space<vmem>>, %arg23: memref<1x32xf32, #tpu.memory_space<vmem>>, %arg24: memref<1x32xf32, #tpu.memory_space<vmem>>, %arg25: memref<1x32xf32, #tpu.memory_space<vmem>>, %arg26: memref<1x32xf32, #tpu.memory_space<vmem>>, %arg27: memref<1x32xf32, #tpu.memory_space<vmem>>, %arg28: memref<1x32xf32, #tpu.memory_space<vmem>>, %arg29: memref<1x32xf32, #tpu.memory_space<vmem>>, %arg30: memref<8x32xf32, #tpu.memory_space<vmem>>) attributes {dimension_semantics = [#tpu.dimension_semantics<parallel>], iteration_bounds = array<i64: 2>, scalar_prefetch = 0 : i64, scratch_operands = 0 : i64, tpu.core_type = #tpu.core_type<tc>, window_params = [{transform_indices = @transform_0, window_bounds = array<i64: 8, 32>}, {transform_indices = @transform_1, window_bounds = array<i64: 8, 32>}, {transform_indices = @transform_2, window_bounds = array<i64: 1, 1, 8>}, {pipeline_mode = #tpu.pipeline_mode<synchronous>, transform_indices = @transform_3, window_bounds = array<i64: 32, 32>}, {pipeline_mode = #tpu.pipeline_mode<synchronous>, transform_indices = @transform_4, window_bounds = array<i64: 1, 32>}, {pipeline_mode = #tpu.pipeline_mode<synchronous>, transform_indices = @transform_5, window_bounds = array<i64: 32, 32>}, {pipeline_mode = #tpu.pipeline_mode<synchronous>, transform_indices = @transform_6, window_bounds = array<i64: 1, 32>}, {pipeline_mode = #tpu.pipeline_mode<synchronous>, transform_indices = @transform_7, window_bounds = array<i64: 32, 32>}, {pipeline_mode = #tpu.pipeline_mode<synchronous>, transform_indices = @transform_8, window_bounds = array<i64: 1, 32>}, {pipeline_mode = #tpu.pipeline_mode<synchronous>, transform_indices = @transform_9, window_bounds = array<i64: 32, 32>}, {pipeline_mode = #tpu.pipeline_mode<synchronous>, transform_indices = @transform_10, window_bounds = array<i64: 1, 32>}, {pipeline_mode = #tpu.pipeline_mode<synchronous>, transform_indices = @transform_11, window_bounds = array<i64: 32, 32>}, {pipeline_mode = #tpu.pipeline_mode<synchronous>, transform_indices = @transform_12, window_bounds = array<i64: 1, 32>}, {pipeline_mode = #tpu.pipeline_mode<synchronous>, transform_indices = @transform_13, window_bounds = array<i64: 32, 32>}, {pipeline_mode = #tpu.pipeline_mode<synchronous>, transform_indices = @transform_14, window_bounds = array<i64: 1, 32>}, {pipeline_mode = #tpu.pipeline_mode<synchronous>, transform_indices = @transform_15, window_bounds = array<i64: 32, 32>}, {pipeline_mode = #tpu.pipeline_mode<synchronous>, transform_indices = @transform_16, window_bounds = array<i64: 1, 32>}, {pipeline_mode = #tpu.pipeline_mode<synchronous>, transform_indices = @transform_17, window_bounds = array<i64: 32, 32>}, {pipeline_mode = #tpu.pipeline_mode<synchronous>, transform_indices = @transform_18, window_bounds = array<i64: 1, 32>}, {pipeline_mode = #tpu.pipeline_mode<synchronous>, transform_indices = @transform_19, window_bounds = array<i64: 32, 64>}, {pipeline_mode = #tpu.pipeline_mode<synchronous>, transform_indices = @transform_20, window_bounds = array<i64: 1, 64>}, {pipeline_mode = #tpu.pipeline_mode<synchronous>, transform_indices = @transform_21, window_bounds = array<i64: 64, 32>}, {pipeline_mode = #tpu.pipeline_mode<synchronous>, transform_indices = @transform_22, window_bounds = array<i64: 1, 32>}, {pipeline_mode = #tpu.pipeline_mode<synchronous>, transform_indices = @transform_23, window_bounds = array<i64: 1, 32>}, {pipeline_mode = #tpu.pipeline_mode<synchronous>, transform_indices = @transform_24, window_bounds = array<i64: 1, 32>}, {pipeline_mode = #tpu.pipeline_mode<synchronous>, transform_indices = @transform_25, window_bounds = array<i64: 1, 32>}, {pipeline_mode = #tpu.pipeline_mode<synchronous>, transform_indices = @transform_26, window_bounds = array<i64: 1, 32>}, {pipeline_mode = #tpu.pipeline_mode<synchronous>, transform_indices = @transform_27, window_bounds = array<i64: 1, 32>}, {pipeline_mode = #tpu.pipeline_mode<synchronous>, transform_indices = @transform_28, window_bounds = array<i64: 1, 32>}, {transform_indices = @transform_29, window_bounds = array<i64: 8, 32>}]} {
    %c0 = arith.constant 0 : index
    %c0_0 = arith.constant 0 : index
    %0 = vector.load %arg1[%c0, %c0_0] : memref<8x32xf32, #tpu.memory_space<vmem>>, vector<8x32xf32>
    %c0_1 = arith.constant 0 : index
    %c0_2 = arith.constant 0 : index
    %1 = vector.load %arg2[%c0_1, %c0_2] : memref<8x32xf32, #tpu.memory_space<vmem>>, vector<8x32xf32>
    %2 = tpu.iota {dimensions = array<i32: 0>} : vector<8x8xi32>
    %3 = tpu.iota {dimensions = array<i32: 1>} : vector<8x8xi32>
    %4 = arith.cmpi sge, %2, %3 : vector<8x8xi32>
    %cst = arith.constant 0.000000e+00 : f32
    %cst_3 = arith.constant -1.000000e+09 : f32
    %5 = vector.broadcast %cst : f32 to vector<8x8xf32>
    %6 = vector.broadcast %cst_3 : f32 to vector<8x8xf32>
    %7 = arith.select %4, %5, %6 : vector<8x8xi1>, vector<8x8xf32>
    %c0_4 = arith.constant 0 : index
    %c0_5 = arith.constant 0 : index
    %c0_6 = arith.constant 0 : index
    %8 = vector.load %arg3[%c0_4, %c0_5, %c0_6] : memref<1x1x8xi32, #tpu.memory_space<vmem>>, vector<1x1x8xi32>
    %c0_i32 = arith.constant 0 : i32
    %9 = vector.broadcast %c0_i32 : i32 to vector<1x1x8xi32>
    %10 = arith.cmpi ne, %8, %9 : vector<1x1x8xi32>
    %cst_7 = arith.constant 0.000000e+00 : f32
    %cst_8 = arith.constant -1.000000e+09 : f32
    %11 = vector.broadcast %cst_7 : f32 to vector<1x1x8xf32>
    %12 = vector.broadcast %cst_8 : f32 to vector<1x1x8xf32>
    %13 = arith.select %10, %11, %12 : vector<1x1x8xi1>, vector<1x1x8xf32>
    %14 = vector.shape_cast %13 : vector<1x1x8xf32> to vector<1x1x1x8xf32>
    %15 = vector.shape_cast %14 : vector<1x1x1x8xf32> to vector<1x1x1x8xf32>
    %16 = vector.broadcast %15 : vector<1x1x1x8xf32> to vector<1x4x1x8xf32>
    %17 = vector.shape_cast %16 : vector<1x4x1x8xf32> to vector<4x1x8xf32>
    %18 = arith.truncf %0 : vector<8x32xf32> to vector<8x32xbf16>
    %19 = arith.truncf %0 : vector<8x32xf32> to vector<8x32xbf16>
    %c0_9 = arith.constant 0 : index
    %c0_10 = arith.constant 0 : index
    %20 = vector.load %arg4[%c0_9, %c0_10] : memref<32x32xbf16, #tpu.memory_space<vmem>>, vector<32x32xbf16>
    %cst_11 = arith.constant dense<0.000000e+00> : vector<8x32xf32>
    %21 = tpu.matmul %18, %20, %cst_11 {dimension_numbers = #tpu.dot_dimension_numbers<[1], [0], [0], [1], [0, 0, 1, 1], [], []>} : vector<8x32xbf16>, vector<32x32xbf16>, vector<8x32xf32> -> vector<8x32xf32>
    %c0_12 = arith.constant 0 : index
    %c0_13 = arith.constant 0 : index
    %22 = vector.load %arg5[%c0_12, %c0_13] : memref<1x32xf32, #tpu.memory_space<vmem>>, vector<1x32xf32>
    %23 = vector.broadcast %22 : vector<1x32xf32> to vector<8x32xf32>
    %24 = arith.addf %21, %23 : vector<8x32xf32>
    %c0_14 = arith.constant 0 : index
    %c0_15 = arith.constant 0 : index
    %25 = vector.load %arg6[%c0_14, %c0_15] : memref<32x32xbf16, #tpu.memory_space<vmem>>, vector<32x32xbf16>
    %cst_16 = arith.constant dense<0.000000e+00> : vector<8x32xf32>
    %26 = tpu.matmul %19, %25, %cst_16 {dimension_numbers = #tpu.dot_dimension_numbers<[1], [0], [0], [1], [0, 0, 1, 1], [], []>} : vector<8x32xbf16>, vector<32x32xbf16>, vector<8x32xf32> -> vector<8x32xf32>
    %c0_17 = arith.constant 0 : index
    %c0_18 = arith.constant 0 : index
    %27 = vector.load %arg7[%c0_17, %c0_18] : memref<1x32xf32, #tpu.memory_space<vmem>>, vector<1x32xf32>
    %28 = vector.broadcast %27 : vector<1x32xf32> to vector<8x32xf32>
    %29 = arith.addf %26, %28 : vector<8x32xf32>
    %c0_19 = arith.constant 0 : index
    %c0_20 = arith.constant 0 : index
    %30 = vector.load %arg8[%c0_19, %c0_20] : memref<32x32xbf16, #tpu.memory_space<vmem>>, vector<32x32xbf16>
    %cst_21 = arith.constant dense<0.000000e+00> : vector<8x32xf32>
    %31 = tpu.matmul %19, %30, %cst_21 {dimension_numbers = #tpu.dot_dimension_numbers<[1], [0], [0], [1], [0, 0, 1, 1], [], []>} : vector<8x32xbf16>, vector<32x32xbf16>, vector<8x32xf32> -> vector<8x32xf32>
    %c0_22 = arith.constant 0 : index
    %c0_23 = arith.constant 0 : index
    %32 = vector.load %arg9[%c0_22, %c0_23] : memref<1x32xf32, #tpu.memory_space<vmem>>, vector<1x32xf32>
    %33 = vector.broadcast %32 : vector<1x32xf32> to vector<8x32xf32>
    %34 = arith.addf %31, %33 : vector<8x32xf32>
    %35 = vector.shape_cast %24 : vector<8x32xf32> to vector<1x8x4x8xf32>
    %36 = tpu.transpose %35, [0, 2, 1, 3] : vector<1x8x4x8xf32> -> vector<1x4x8x8xf32>
    %37 = vector.shape_cast %36 : vector<1x4x8x8xf32> to vector<4x8x8xf32>
    %38 = arith.truncf %37 : vector<4x8x8xf32> to vector<4x8x8xbf16>
    %39 = vector.shape_cast %29 : vector<8x32xf32> to vector<1x8x4x8xf32>
    %40 = tpu.transpose %39, [0, 2, 1, 3] : vector<1x8x4x8xf32> -> vector<1x4x8x8xf32>
    %41 = vector.shape_cast %40 : vector<1x4x8x8xf32> to vector<4x8x8xf32>
    %42 = arith.truncf %41 : vector<4x8x8xf32> to vector<4x8x8xbf16>
    %43 = vector.shape_cast %34 : vector<8x32xf32> to vector<1x8x4x8xf32>
    %44 = tpu.transpose %43, [0, 2, 1, 3] : vector<1x8x4x8xf32> -> vector<1x4x8x8xf32>
    %45 = vector.shape_cast %44 : vector<1x4x8x8xf32> to vector<4x8x8xf32>
    %46 = arith.truncf %45 : vector<4x8x8xf32> to vector<4x8x8xbf16>
    "tpu.trace_start"() <{level = 10 : i32, message = "bqd,bkd->bqk"}> : () -> ()
    %cst_24 = arith.constant dense<0.000000e+00> : vector<4x8x8xf32>
    %47 = tpu.matmul %38, %42, %cst_24 {dimension_numbers = #tpu.dot_dimension_numbers<[2], [2], [1], [1], [0, 0, 0, 1, 1, 1], [0], [0]>} : vector<4x8x8xbf16>, vector<4x8x8xbf16>, vector<4x8x8xf32> -> vector<4x8x8xf32>
    "tpu.trace_stop"() : () -> ()
    %48 = vector.shape_cast %7 : vector<8x8xf32> to vector<1x8x8xf32>
    %49 = vector.broadcast %48 : vector<1x8x8xf32> to vector<4x8x8xf32>
    %50 = arith.addf %47, %49 : vector<4x8x8xf32>
    %cst_25 = arith.constant dense<0xFF800000> : vector<4x8xf32>
    %51 = vector.multi_reduction <maximumf>, %50, %cst_25 [2] : vector<4x8x8xf32> to vector<4x8xf32>
    %52 = vector.shape_cast %51 : vector<4x8xf32> to vector<4x8x1xf32>
    %53 = vector.broadcast %52 : vector<4x8x1xf32> to vector<4x8x8xf32>
    %54 = arith.subf %50, %53 : vector<4x8x8xf32>
    %55 = math.exp %54 : vector<4x8x8xf32>
    %cst_26 = arith.constant dense<0.000000e+00> : vector<4x8xf32>
    %56 = vector.multi_reduction <add>, %55, %cst_26 [2] : vector<4x8x8xf32> to vector<4x8xf32>
    %57 = vector.shape_cast %56 : vector<4x8xf32> to vector<4x8x1xf32>
    %58 = tpu.reciprocal %57 {approx = true} : vector<4x8x1xf32> -> vector<4x8x1xf32>
    %59 = vector.broadcast %58 : vector<4x8x1xf32> to vector<4x8x8xf32>
    %60 = arith.mulf %55, %59 : vector<4x8x8xf32>
    %61 = arith.truncf %60 : vector<4x8x8xf32> to vector<4x8x8xbf16>
    "tpu.trace_start"() <{level = 10 : i32, message = "bqk,bkd->bqd"}> : () -> ()
    %cst_27 = arith.constant dense<0.000000e+00> : vector<4x8x8xf32>
    %62 = tpu.matmul %61, %46, %cst_27 {dimension_numbers = #tpu.dot_dimension_numbers<[2], [1], [1], [2], [0, 0, 0, 1, 1, 2], [0], [0]>} : vector<4x8x8xbf16>, vector<4x8x8xbf16>, vector<4x8x8xf32> -> vector<4x8x8xf32>
    "tpu.trace_stop"() : () -> ()
    %63 = vector.shape_cast %62 : vector<4x8x8xf32> to vector<1x4x8x8xf32>
    %64 = tpu.transpose %63, [0, 2, 1, 3] : vector<1x4x8x8xf32> -> vector<1x8x4x8xf32>
    %65 = vector.shape_cast %64 : vector<1x8x4x8xf32> to vector<8x32xf32>
    %66 = arith.truncf %65 : vector<8x32xf32> to vector<8x32xbf16>
    %c0_28 = arith.constant 0 : index
    %c0_29 = arith.constant 0 : index
    %67 = vector.load %arg10[%c0_28, %c0_29] : memref<32x32xbf16, #tpu.memory_space<vmem>>, vector<32x32xbf16>
    %cst_30 = arith.constant dense<0.000000e+00> : vector<8x32xf32>
    %68 = tpu.matmul %66, %67, %cst_30 {dimension_numbers = #tpu.dot_dimension_numbers<[1], [0], [0], [1], [0, 0, 1, 1], [], []>} : vector<8x32xbf16>, vector<32x32xbf16>, vector<8x32xf32> -> vector<8x32xf32>
    %c0_31 = arith.constant 0 : index
    %c0_32 = arith.constant 0 : index
    %69 = vector.load %arg11[%c0_31, %c0_32] : memref<1x32xf32, #tpu.memory_space<vmem>>, vector<1x32xf32>
    %70 = vector.broadcast %69 : vector<1x32xf32> to vector<8x32xf32>
    %71 = arith.addf %68, %70 : vector<8x32xf32>
    %72 = arith.addf %0, %71 : vector<8x32xf32>
    %c0_33 = arith.constant 0 : index
    %c0_34 = arith.constant 0 : index
    %73 = vector.load %arg24[%c0_33, %c0_34] : memref<1x32xf32, #tpu.memory_space<vmem>>, vector<1x32xf32>
    %c0_35 = arith.constant 0 : index
    %c0_36 = arith.constant 0 : index
    %74 = vector.load %arg25[%c0_35, %c0_36] : memref<1x32xf32, #tpu.memory_space<vmem>>, vector<1x32xf32>
    %cst_37 = arith.constant dense<0.000000e+00> : vector<8xf32>
    %75 = vector.multi_reduction <add>, %72, %cst_37 [1] : vector<8x32xf32> to vector<8xf32>
    %76 = vector.shape_cast %75 : vector<8xf32> to vector<8x1xf32>
    %cst_38 = arith.constant 3.200000e+01 : f32
    %77 = vector.broadcast %cst_38 : f32 to vector<8x1xf32>
    %78 = arith.divf %76, %77 : vector<8x1xf32>
    %79 = vector.broadcast %78 : vector<8x1xf32> to vector<8x32xf32>
    %80 = arith.subf %72, %79 : vector<8x32xf32>
    %81 = arith.mulf %80, %80 : vector<8x32xf32>
    %cst_39 = arith.constant dense<0.000000e+00> : vector<8xf32>
    %82 = vector.multi_reduction <add>, %81, %cst_39 [1] : vector<8x32xf32> to vector<8xf32>
    %83 = vector.shape_cast %82 : vector<8xf32> to vector<8x1xf32>
    %cst_40 = arith.constant 3.100000e+01 : f32
    %84 = vector.broadcast %cst_40 : f32 to vector<8x1xf32>
    %85 = arith.divf %83, %84 : vector<8x1xf32>
    %86 = vector.broadcast %78 : vector<8x1xf32> to vector<8x32xf32>
    %87 = arith.subf %72, %86 : vector<8x32xf32>
    %88 = vector.broadcast %73 : vector<1x32xf32> to vector<8x32xf32>
    %89 = arith.mulf %88, %87 : vector<8x32xf32>
    %90 = math.sqrt %85 : vector<8x1xf32>
    %cst_41 = arith.constant 9.99999997E-7 : f32
    %91 = vector.broadcast %cst_41 : f32 to vector<8x1xf32>
    %92 = arith.addf %90, %91 : vector<8x1xf32>
    %93 = vector.broadcast %92 : vector<8x1xf32> to vector<8x32xf32>
    %94 = arith.divf %89, %93 : vector<8x32xf32>
    %95 = vector.broadcast %74 : vector<1x32xf32> to vector<8x32xf32>
    %96 = arith.addf %94, %95 : vector<8x32xf32>
    %97 = arith.truncf %96 : vector<8x32xf32> to vector<8x32xbf16>
    %98 = arith.truncf %1 : vector<8x32xf32> to vector<8x32xbf16>
    %c0_42 = arith.constant 0 : index
    %c0_43 = arith.constant 0 : index
    %99 = vector.load %arg12[%c0_42, %c0_43] : memref<32x32xbf16, #tpu.memory_space<vmem>>, vector<32x32xbf16>
    %cst_44 = arith.constant dense<0.000000e+00> : vector<8x32xf32>
    %100 = tpu.matmul %97, %99, %cst_44 {dimension_numbers = #tpu.dot_dimension_numbers<[1], [0], [0], [1], [0, 0, 1, 1], [], []>} : vector<8x32xbf16>, vector<32x32xbf16>, vector<8x32xf32> -> vector<8x32xf32>
    %c0_45 = arith.constant 0 : index
    %c0_46 = arith.constant 0 : index
    %101 = vector.load %arg13[%c0_45, %c0_46] : memref<1x32xf32, #tpu.memory_space<vmem>>, vector<1x32xf32>
    %102 = vector.broadcast %101 : vector<1x32xf32> to vector<8x32xf32>
    %103 = arith.addf %100, %102 : vector<8x32xf32>
    %c0_47 = arith.constant 0 : index
    %c0_48 = arith.constant 0 : index
    %104 = vector.load %arg14[%c0_47, %c0_48] : memref<32x32xbf16, #tpu.memory_space<vmem>>, vector<32x32xbf16>
    %cst_49 = arith.constant dense<0.000000e+00> : vector<8x32xf32>
    %105 = tpu.matmul %98, %104, %cst_49 {dimension_numbers = #tpu.dot_dimension_numbers<[1], [0], [0], [1], [0, 0, 1, 1], [], []>} : vector<8x32xbf16>, vector<32x32xbf16>, vector<8x32xf32> -> vector<8x32xf32>
    %c0_50 = arith.constant 0 : index
    %c0_51 = arith.constant 0 : index
    %106 = vector.load %arg15[%c0_50, %c0_51] : memref<1x32xf32, #tpu.memory_space<vmem>>, vector<1x32xf32>
    %107 = vector.broadcast %106 : vector<1x32xf32> to vector<8x32xf32>
    %108 = arith.addf %105, %107 : vector<8x32xf32>
    %c0_52 = arith.constant 0 : index
    %c0_53 = arith.constant 0 : index
    %109 = vector.load %arg16[%c0_52, %c0_53] : memref<32x32xbf16, #tpu.memory_space<vmem>>, vector<32x32xbf16>
    %cst_54 = arith.constant dense<0.000000e+00> : vector<8x32xf32>
    %110 = tpu.matmul %98, %109, %cst_54 {dimension_numbers = #tpu.dot_dimension_numbers<[1], [0], [0], [1], [0, 0, 1, 1], [], []>} : vector<8x32xbf16>, vector<32x32xbf16>, vector<8x32xf32> -> vector<8x32xf32>
    %c0_55 = arith.constant 0 : index
    %c0_56 = arith.constant 0 : index
    %111 = vector.load %arg17[%c0_55, %c0_56] : memref<1x32xf32, #tpu.memory_space<vmem>>, vector<1x32xf32>
    %112 = vector.broadcast %111 : vector<1x32xf32> to vector<8x32xf32>
    %113 = arith.addf %110, %112 : vector<8x32xf32>
    %114 = vector.shape_cast %103 : vector<8x32xf32> to vector<1x8x4x8xf32>
    %115 = tpu.transpose %114, [0, 2, 1, 3] : vector<1x8x4x8xf32> -> vector<1x4x8x8xf32>
    %116 = vector.shape_cast %115 : vector<1x4x8x8xf32> to vector<4x8x8xf32>
    %117 = arith.truncf %116 : vector<4x8x8xf32> to vector<4x8x8xbf16>
    %118 = vector.shape_cast %108 : vector<8x32xf32> to vector<1x8x4x8xf32>
    %119 = tpu.transpose %118, [0, 2, 1, 3] : vector<1x8x4x8xf32> -> vector<1x4x8x8xf32>
    %120 = vector.shape_cast %119 : vector<1x4x8x8xf32> to vector<4x8x8xf32>
    %121 = arith.truncf %120 : vector<4x8x8xf32> to vector<4x8x8xbf16>
    %122 = vector.shape_cast %113 : vector<8x32xf32> to vector<1x8x4x8xf32>
    %123 = tpu.transpose %122, [0, 2, 1, 3] : vector<1x8x4x8xf32> -> vector<1x4x8x8xf32>
    %124 = vector.shape_cast %123 : vector<1x4x8x8xf32> to vector<4x8x8xf32>
    %125 = arith.truncf %124 : vector<4x8x8xf32> to vector<4x8x8xbf16>
    "tpu.trace_start"() <{level = 10 : i32, message = "bqd,bkd->bqk"}> : () -> ()
    %cst_57 = arith.constant dense<0.000000e+00> : vector<4x8x8xf32>
    %126 = tpu.matmul %117, %121, %cst_57 {dimension_numbers = #tpu.dot_dimension_numbers<[2], [2], [1], [1], [0, 0, 0, 1, 1, 1], [0], [0]>} : vector<4x8x8xbf16>, vector<4x8x8xbf16>, vector<4x8x8xf32> -> vector<4x8x8xf32>
    "tpu.trace_stop"() : () -> ()
    %127 = vector.broadcast %17 : vector<4x1x8xf32> to vector<4x8x8xf32>
    %128 = arith.addf %126, %127 : vector<4x8x8xf32>
    %cst_58 = arith.constant dense<0xFF800000> : vector<4x8xf32>
    %129 = vector.multi_reduction <maximumf>, %128, %cst_58 [2] : vector<4x8x8xf32> to vector<4x8xf32>
    %130 = vector.shape_cast %129 : vector<4x8xf32> to vector<4x8x1xf32>
    %131 = vector.broadcast %130 : vector<4x8x1xf32> to vector<4x8x8xf32>
    %132 = arith.subf %128, %131 : vector<4x8x8xf32>
    %133 = math.exp %132 : vector<4x8x8xf32>
    %cst_59 = arith.constant dense<0.000000e+00> : vector<4x8xf32>
    %134 = vector.multi_reduction <add>, %133, %cst_59 [2] : vector<4x8x8xf32> to vector<4x8xf32>
    %135 = vector.shape_cast %134 : vector<4x8xf32> to vector<4x8x1xf32>
    %136 = tpu.reciprocal %135 {approx = true} : vector<4x8x1xf32> -> vector<4x8x1xf32>
    %137 = vector.broadcast %136 : vector<4x8x1xf32> to vector<4x8x8xf32>
    %138 = arith.mulf %133, %137 : vector<4x8x8xf32>
    %139 = arith.truncf %138 : vector<4x8x8xf32> to vector<4x8x8xbf16>
    "tpu.trace_start"() <{level = 10 : i32, message = "bqk,bkd->bqd"}> : () -> ()
    %cst_60 = arith.constant dense<0.000000e+00> : vector<4x8x8xf32>
    %140 = tpu.matmul %139, %125, %cst_60 {dimension_numbers = #tpu.dot_dimension_numbers<[2], [1], [1], [2], [0, 0, 0, 1, 1, 2], [0], [0]>} : vector<4x8x8xbf16>, vector<4x8x8xbf16>, vector<4x8x8xf32> -> vector<4x8x8xf32>
    "tpu.trace_stop"() : () -> ()
    %141 = vector.shape_cast %140 : vector<4x8x8xf32> to vector<1x4x8x8xf32>
    %142 = tpu.transpose %141, [0, 2, 1, 3] : vector<1x4x8x8xf32> -> vector<1x8x4x8xf32>
    %143 = vector.shape_cast %142 : vector<1x8x4x8xf32> to vector<8x32xf32>
    %144 = arith.truncf %143 : vector<8x32xf32> to vector<8x32xbf16>
    %c0_61 = arith.constant 0 : index
    %c0_62 = arith.constant 0 : index
    %145 = vector.load %arg18[%c0_61, %c0_62] : memref<32x32xbf16, #tpu.memory_space<vmem>>, vector<32x32xbf16>
    %cst_63 = arith.constant dense<0.000000e+00> : vector<8x32xf32>
    %146 = tpu.matmul %144, %145, %cst_63 {dimension_numbers = #tpu.dot_dimension_numbers<[1], [0], [0], [1], [0, 0, 1, 1], [], []>} : vector<8x32xbf16>, vector<32x32xbf16>, vector<8x32xf32> -> vector<8x32xf32>
    %c0_64 = arith.constant 0 : index
    %c0_65 = arith.constant 0 : index
    %147 = vector.load %arg19[%c0_64, %c0_65] : memref<1x32xf32, #tpu.memory_space<vmem>>, vector<1x32xf32>
    %148 = vector.broadcast %147 : vector<1x32xf32> to vector<8x32xf32>
    %149 = arith.addf %146, %148 : vector<8x32xf32>
    %150 = arith.addf %96, %149 : vector<8x32xf32>
    %c0_66 = arith.constant 0 : index
    %c0_67 = arith.constant 0 : index
    %151 = vector.load %arg26[%c0_66, %c0_67] : memref<1x32xf32, #tpu.memory_space<vmem>>, vector<1x32xf32>
    %c0_68 = arith.constant 0 : index
    %c0_69 = arith.constant 0 : index
    %152 = vector.load %arg27[%c0_68, %c0_69] : memref<1x32xf32, #tpu.memory_space<vmem>>, vector<1x32xf32>
    %cst_70 = arith.constant dense<0.000000e+00> : vector<8xf32>
    %153 = vector.multi_reduction <add>, %150, %cst_70 [1] : vector<8x32xf32> to vector<8xf32>
    %154 = vector.shape_cast %153 : vector<8xf32> to vector<8x1xf32>
    %cst_71 = arith.constant 3.200000e+01 : f32
    %155 = vector.broadcast %cst_71 : f32 to vector<8x1xf32>
    %156 = arith.divf %154, %155 : vector<8x1xf32>
    %157 = vector.broadcast %156 : vector<8x1xf32> to vector<8x32xf32>
    %158 = arith.subf %150, %157 : vector<8x32xf32>
    %159 = arith.mulf %158, %158 : vector<8x32xf32>
    %cst_72 = arith.constant dense<0.000000e+00> : vector<8xf32>
    %160 = vector.multi_reduction <add>, %159, %cst_72 [1] : vector<8x32xf32> to vector<8xf32>
    %161 = vector.shape_cast %160 : vector<8xf32> to vector<8x1xf32>
    %cst_73 = arith.constant 3.100000e+01 : f32
    %162 = vector.broadcast %cst_73 : f32 to vector<8x1xf32>
    %163 = arith.divf %161, %162 : vector<8x1xf32>
    %164 = vector.broadcast %156 : vector<8x1xf32> to vector<8x32xf32>
    %165 = arith.subf %150, %164 : vector<8x32xf32>
    %166 = vector.broadcast %151 : vector<1x32xf32> to vector<8x32xf32>
    %167 = arith.mulf %166, %165 : vector<8x32xf32>
    %168 = math.sqrt %163 : vector<8x1xf32>
    %cst_74 = arith.constant 9.99999997E-7 : f32
    %169 = vector.broadcast %cst_74 : f32 to vector<8x1xf32>
    %170 = arith.addf %168, %169 : vector<8x1xf32>
    %171 = vector.broadcast %170 : vector<8x1xf32> to vector<8x32xf32>
    %172 = arith.divf %167, %171 : vector<8x32xf32>
    %173 = vector.broadcast %152 : vector<1x32xf32> to vector<8x32xf32>
    %174 = arith.addf %172, %173 : vector<8x32xf32>
    %175 = arith.truncf %174 : vector<8x32xf32> to vector<8x32xbf16>
    %c0_75 = arith.constant 0 : index
    %c0_76 = arith.constant 0 : index
    %176 = vector.load %arg20[%c0_75, %c0_76] : memref<32x64xbf16, #tpu.memory_space<vmem>>, vector<32x64xbf16>
    %cst_77 = arith.constant dense<0.000000e+00> : vector<8x64xf32>
    %177 = tpu.matmul %175, %176, %cst_77 {dimension_numbers = #tpu.dot_dimension_numbers<[1], [0], [0], [1], [0, 0, 1, 1], [], []>} : vector<8x32xbf16>, vector<32x64xbf16>, vector<8x64xf32> -> vector<8x64xf32>
    %c0_78 = arith.constant 0 : index
    %c0_79 = arith.constant 0 : index
    %178 = vector.load %arg21[%c0_78, %c0_79] : memref<1x64xf32, #tpu.memory_space<vmem>>, vector<1x64xf32>
    %179 = vector.broadcast %178 : vector<1x64xf32> to vector<8x64xf32>
    %180 = arith.addf %177, %179 : vector<8x64xf32>
    %cst_80 = arith.constant 0.000000e+00 : f32
    %181 = vector.broadcast %cst_80 : f32 to vector<8x64xf32>
    %182 = arith.maximumf %180, %181 : vector<8x64xf32>
    %183 = arith.truncf %182 : vector<8x64xf32> to vector<8x64xbf16>
    %c0_81 = arith.constant 0 : index
    %c0_82 = arith.constant 0 : index
    %184 = vector.load %arg22[%c0_81, %c0_82] : memref<64x32xbf16, #tpu.memory_space<vmem>>, vector<64x32xbf16>
    %cst_83 = arith.constant dense<0.000000e+00> : vector<8x32xf32>
    %185 = tpu.matmul %183, %184, %cst_83 {dimension_numbers = #tpu.dot_dimension_numbers<[1], [0], [0], [1], [0, 0, 1, 1], [], []>} : vector<8x64xbf16>, vector<64x32xbf16>, vector<8x32xf32> -> vector<8x32xf32>
    %c0_84 = arith.constant 0 : index
    %c0_85 = arith.constant 0 : index
    %186 = vector.load %arg23[%c0_84, %c0_85] : memref<1x32xf32, #tpu.memory_space<vmem>>, vector<1x32xf32>
    %187 = vector.broadcast %186 : vector<1x32xf32> to vector<8x32xf32>
    %188 = arith.addf %185, %187 : vector<8x32xf32>
    %189 = arith.addf %174, %188 : vector<8x32xf32>
    %c0_86 = arith.constant 0 : index
    %c0_87 = arith.constant 0 : index
    %190 = vector.load %arg28[%c0_86, %c0_87] : memref<1x32xf32, #tpu.memory_space<vmem>>, vector<1x32xf32>
    %c0_88 = arith.constant 0 : index
    %c0_89 = arith.constant 0 : index
    %191 = vector.load %arg29[%c0_88, %c0_89] : memref<1x32xf32, #tpu.memory_space<vmem>>, vector<1x32xf32>
    %cst_90 = arith.constant dense<0.000000e+00> : vector<8xf32>
    %192 = vector.multi_reduction <add>, %189, %cst_90 [1] : vector<8x32xf32> to vector<8xf32>
    %193 = vector.shape_cast %192 : vector<8xf32> to vector<8x1xf32>
    %cst_91 = arith.constant 3.200000e+01 : f32
    %194 = vector.broadcast %cst_91 : f32 to vector<8x1xf32>
    %195 = arith.divf %193, %194 : vector<8x1xf32>
    %196 = vector.broadcast %195 : vector<8x1xf32> to vector<8x32xf32>
    %197 = arith.subf %189, %196 : vector<8x32xf32>
    %198 = arith.mulf %197, %197 : vector<8x32xf32>
    %cst_92 = arith.constant dense<0.000000e+00> : vector<8xf32>
    %199 = vector.multi_reduction <add>, %198, %cst_92 [1] : vector<8x32xf32> to vector<8xf32>
    %200 = vector.shape_cast %199 : vector<8xf32> to vector<8x1xf32>
    %cst_93 = arith.constant 3.100000e+01 : f32
    %201 = vector.broadcast %cst_93 : f32 to vector<8x1xf32>
    %202 = arith.divf %200, %201 : vector<8x1xf32>
    %203 = vector.broadcast %195 : vector<8x1xf32> to vector<8x32xf32>
    %204 = arith.subf %189, %203 : vector<8x32xf32>
    %205 = vector.broadcast %190 : vector<1x32xf32> to vector<8x32xf32>
    %206 = arith.mulf %205, %204 : vector<8x32xf32>
    %207 = math.sqrt %202 : vector<8x1xf32>
    %cst_94 = arith.constant 9.99999997E-7 : f32
    %208 = vector.broadcast %cst_94 : f32 to vector<8x1xf32>
    %209 = arith.addf %207, %208 : vector<8x1xf32>
    %210 = vector.broadcast %209 : vector<8x1xf32> to vector<8x32xf32>
    %211 = arith.divf %206, %210 : vector<8x32xf32>
    %212 = vector.broadcast %191 : vector<1x32xf32> to vector<8x32xf32>
    %213 = arith.addf %211, %212 : vector<8x32xf32>
    %c0_95 = arith.constant 0 : index
    %c0_96 = arith.constant 0 : index
    %214 = vector.load %arg30[%c0_95, %c0_96] : memref<8x32xf32, #tpu.memory_space<vmem>>, vector<8x32xf32>
    tpu.vector_store %arg30[%c0_95, %c0_96], %213 {strides = array<i32>} : memref<8x32xf32, #tpu.memory_space<vmem>>, vector<8x32xf32>,
    return
  }
  func.func @transform_0(%arg0: i32) -> (i32, i32) {
    %c0_i32 = arith.constant 0 : i32
    %c0_i32_0 = arith.constant 0 : i32
    return %arg0, %c0_i32 : i32, i32
  }
  func.func @transform_1(%arg0: i32) -> (i32, i32) {
    %c0_i32 = arith.constant 0 : i32
    %c0_i32_0 = arith.constant 0 : i32
    return %arg0, %c0_i32 : i32, i32
  }
  func.func @transform_2(%arg0: i32) -> (i32, i32, i32) {
    %c0_i32 = arith.constant 0 : i32
    %c0_i32_0 = arith.constant 0 : i32
    %c0_i32_1 = arith.constant 0 : i32
    return %arg0, %c0_i32, %c0_i32_0 : i32, i32, i32
  }
  func.func @transform_3(%arg0: i32) -> (i32, i32) {
    %c0_i32 = arith.constant 0 : i32
    %c0_i32_0 = arith.constant 0 : i32
    %c0_i32_1 = arith.constant 0 : i32
    return %c0_i32, %c0_i32_0 : i32, i32
  }
  func.func @transform_4(%arg0: i32) -> (i32, i32) {
    %c0_i32 = arith.constant 0 : i32
    %c0_i32_0 = arith.constant 0 : i32
    %c0_i32_1 = arith.constant 0 : i32
    return %c0_i32, %c0_i32_0 : i32, i32
  }
  func.func @transform_5(%arg0: i32) -> (i32, i32) {
    %c0_i32 = arith.constant 0 : i32
    %c0_i32_0 = arith.constant 0 : i32
    %c0_i32_1 = arith.constant 0 : i32
    return %c0_i32, %c0_i32_0 : i32, i32
  }
  func.func @transform_6(%arg0: i32) -> (i32, i32) {
    %c0_i32 = arith.constant 0 : i32
    %c0_i32_0 = arith.constant 0 : i32
    %c0_i32_1 = arith.constant 0 : i32
    return %c0_i32, %c0_i32_0 : i32, i32
  }
  func.func @transform_7(%arg0: i32) -> (i32, i32) {
    %c0_i32 = arith.constant 0 : i32
    %c0_i32_0 = arith.constant 0 : i32
    %c0_i32_1 = arith.constant 0 : i32
    return %c0_i32, %c0_i32_0 : i32, i32
  }
  func.func @transform_8(%arg0: i32) -> (i32, i32) {
    %c0_i32 = arith.constant 0 : i32
    %c0_i32_0 = arith.constant 0 : i32
    %c0_i32_1 = arith.constant 0 : i32
    return %c0_i32, %c0_i32_0 : i32, i32
  }
  func.func @transform_9(%arg0: i32) -> (i32, i32) {
    %c0_i32 = arith.constant 0 : i32
    %c0_i32_0 = arith.constant 0 : i32
    %c0_i32_1 = arith.constant 0 : i32
    return %c0_i32, %c0_i32_0 : i32, i32
  }
  func.func @transform_10(%arg0: i32) -> (i32, i32) {
    %c0_i32 = arith.constant 0 : i32
    %c0_i32_0 = arith.constant 0 : i32
    %c0_i32_1 = arith.constant 0 : i32
    return %c0_i32, %c0_i32_0 : i32, i32
  }
  func.func @transform_11(%arg0: i32) -> (i32, i32) {
    %c0_i32 = arith.constant 0 : i32
    %c0_i32_0 = arith.constant 0 : i32
    %c0_i32_1 = arith.constant 0 : i32
    return %c0_i32, %c0_i32_0 : i32, i32
  }
  func.func @transform_12(%arg0: i32) -> (i32, i32) {
    %c0_i32 = arith.constant 0 : i32
    %c0_i32_0 = arith.constant 0 : i32
    %c0_i32_1 = arith.constant 0 : i32
    return %c0_i32, %c0_i32_0 : i32, i32
  }
  func.func @transform_13(%arg0: i32) -> (i32, i32) {
    %c0_i32 = arith.constant 0 : i32
    %c0_i32_0 = arith.constant 0 : i32
    %c0_i32_1 = arith.constant 0 : i32
    return %c0_i32, %c0_i32_0 : i32, i32
  }
  func.func @transform_14(%arg0: i32) -> (i32, i32) {
    %c0_i32 = arith.constant 0 : i32
    %c0_i32_0 = arith.constant 0 : i32
    %c0_i32_1 = arith.constant 0 : i32
    return %c0_i32, %c0_i32_0 : i32, i32
  }
  func.func @transform_15(%arg0: i32) -> (i32, i32) {
    %c0_i32 = arith.constant 0 : i32
    %c0_i32_0 = arith.constant 0 : i32
    %c0_i32_1 = arith.constant 0 : i32
    return %c0_i32, %c0_i32_0 : i32, i32
  }
  func.func @transform_16(%arg0: i32) -> (i32, i32) {
    %c0_i32 = arith.constant 0 : i32
    %c0_i32_0 = arith.constant 0 : i32
    %c0_i32_1 = arith.constant 0 : i32
    return %c0_i32, %c0_i32_0 : i32, i32
  }
  func.func @transform_17(%arg0: i32) -> (i32, i32) {
    %c0_i32 = arith.constant 0 : i32
    %c0_i32_0 = arith.constant 0 : i32
    %c0_i32_1 = arith.constant 0 : i32
    return %c0_i32, %c0_i32_0 : i32, i32
  }
  func.func @transform_18(%arg0: i32) -> (i32, i32) {
    %c0_i32 = arith.constant 0 : i32
    %c0_i32_0 = arith.constant 0 : i32
    %c0_i32_1 = arith.constant 0 : i32
    return %c0_i32, %c0_i32_0 : i32, i32
  }
  func.func @transform_19(%arg0: i32) -> (i32, i32) {
    %c0_i32 = arith.constant 0 : i32
    %c0_i32_0 = arith.constant 0 : i32
    %c0_i32_1 = arith.constant 0 : i32
    return %c0_i32, %c0_i32_0 : i32, i32
  }
  func.func @transform_20(%arg0: i32) -> (i32, i32) {
    %c0_i32 = arith.constant 0 : i32
    %c0_i32_0 = arith.constant 0 : i32
    %c0_i32_1 = arith.constant 0 : i32
    return %c0_i32, %c0_i32_0 : i32, i32
  }
  func.func @transform_21(%arg0: i32) -> (i32, i32) {
    %c0_i32 = arith.constant 0 : i32
    %c0_i32_0 = arith.constant 0 : i32
    %c0_i32_1 = arith.constant 0 : i32
    return %c0_i32, %c0_i32_0 : i32, i32
  }
  func.func @transform_22(%arg0: i32) -> (i32, i32) {
    %c0_i32 = arith.constant 0 : i32
    %c0_i32_0 = arith.constant 0 : i32
    %c0_i32_1 = arith.constant 0 : i32
    return %c0_i32, %c0_i32_0 : i32, i32
  }
  func.func @transform_23(%arg0: i32) -> (i32, i32) {
    %c0_i32 = arith.constant 0 : i32
    %c0_i32_0 = arith.constant 0 : i32
    %c0_i32_1 = arith.constant 0 : i32
    return %c0_i32, %c0_i32_0 : i32, i32
  }
  func.func @transform_24(%arg0: i32) -> (i32, i32) {
    %c0_i32 = arith.constant 0 : i32
    %c0_i32_0 = arith.constant 0 : i32
    %c0_i32_1 = arith.constant 0 : i32
    return %c0_i32, %c0_i32_0 : i32, i32
  }
  func.func @transform_25(%arg0: i32) -> (i32, i32) {
    %c0_i32 = arith.constant 0 : i32
    %c0_i32_0 = arith.constant 0 : i32
    %c0_i32_1 = arith.constant 0 : i32
    return %c0_i32, %c0_i32_0 : i32, i32
  }
  func.func @transform_26(%arg0: i32) -> (i32, i32) {
    %c0_i32 = arith.constant 0 : i32
    %c0_i32_0 = arith.constant 0 : i32
    %c0_i32_1 = arith.constant 0 : i32
    return %c0_i32, %c0_i32_0 : i32, i32
  }
  func.func @transform_27(%arg0: i32) -> (i32, i32) {
    %c0_i32 = arith.constant 0 : i32
    %c0_i32_0 = arith.constant 0 : i32
    %c0_i32_1 = arith.constant 0 : i32
    return %c0_i32, %c0_i32_0 : i32, i32
  }
  func.func @transform_28(%arg0: i32) -> (i32, i32) {
    %c0_i32 = arith.constant 0 : i32
    %c0_i32_0 = arith.constant 0 : i32
    %c0_i32_1 = arith.constant 0 : i32
    return %c0_i32, %c0_i32_0 : i32, i32
  }
  func.func @transform_29(%arg0: i32) -> (i32, i32) {
    %c0_i32 = arith.constant 0 : i32
    %c0_i32_0 = arith.constant 0 : i32
    return %arg0, %c0_i32 : i32, i32
  }
}

</mosaic_0001>

<llo_original>
// kernel: tpu_custom_call.1
$region0: #{tpu_custom_call.1}
  #allocation0 [shape = 'u32[]', space=smem, size = 0x4, offset = 0x4, fixed_abs, tag = 'smem constant byte address 0x4 - core index']
  #allocation1 [shape = 'u32[144,128]{1,0:T(1,128)}', space=vmem, size = 0x12000, scoped, tag = 'internal scratch']
  %s0 = inlined_call_operand.smem [shape: u32[30], index: -1, kind: input, shape index: {}]
  %s1 = sld [smem:[%s0]]
  %s2 = scalar_lea.smem %s0, 1
  %s3 = sld [smem:[%s2]]
  %s4 = scalar_lea.smem %s0, 2
  %s5 = sld [smem:[%s4]]
  %s6 = scalar_lea.smem %s0, 3
  %s7 = sld [smem:[%s6]]
  %s8 = scalar_lea.smem %s0, 4
  %s9 = sld [smem:[%s8]]
  %s10 = scalar_lea.smem %s0, 5
  %s11 = sld [smem:[%s10]]
  %s12 = scalar_lea.smem %s0, 6
  %s13 = sld [smem:[%s12]]
  %s14 = scalar_lea.smem %s0, 7
  %s15 = sld [smem:[%s14]]
  %s16 = scalar_lea.smem %s0, 8
  %s17 = sld [smem:[%s16]]
  %s18 = scalar_lea.smem %s0, 9
  %s19 = sld [smem:[%s18]]
  %s20 = scalar_lea.smem %s0, 10
  %s21 = sld [smem:[%s20]]
  %s22 = scalar_lea.smem %s0, 11
  %s23 = sld [smem:[%s22]]
  %s24 = scalar_lea.smem %s0, 12
  %s25 = sld [smem:[%s24]]
  %s26 = scalar_lea.smem %s0, 13
  %s27 = sld [smem:[%s26]]
  %s28 = scalar_lea.smem %s0, 14
  %s29 = sld [smem:[%s28]]
  %s30 = scalar_lea.smem %s0, 15
  %s31 = sld [smem:[%s30]]
  %s32 = scalar_lea.smem %s0, 16
  %s33 = sld [smem:[%s32]]
  %s34 = scalar_lea.smem %s0, 17
  %s35 = sld [smem:[%s34]]
  %s36 = scalar_lea.smem %s0, 18
  %s37 = sld [smem:[%s36]]
  %s38 = scalar_lea.smem %s0, 19
  %s39 = sld [smem:[%s38]]
  %s40 = scalar_lea.smem %s0, 20
  %s41 = sld [smem:[%s40]]
  %s42 = scalar_lea.smem %s0, 21
  %s43 = sld [smem:[%s42]]
  %s44 = scalar_lea.smem %s0, 22
  %s45 = sld [smem:[%s44]]
  %s46 = scalar_lea.smem %s0, 23
  %s47 = sld [smem:[%s46]]
  %s48 = scalar_lea.smem %s0, 24
  %s49 = sld [smem:[%s48]]
  %s50 = scalar_lea.smem %s0, 25
  %s51 = sld [smem:[%s50]]
  %s52 = scalar_lea.smem %s0, 26
  %s53 = sld [smem:[%s52]]
  %s54 = scalar_lea.smem %s0, 27
  %s55 = sld [smem:[%s54]]
  %s56 = scalar_lea.smem %s0, 28
  %s57 = sld [smem:[%s56]]
  %s58 = scalar_lea.smem %s0, 29
  %s59 = sld [smem:[%s58]]
  %s60 = sld [smem:[#allocation0]]
  $region265: #{tpu_custom_call.1} parent=0
    _
  %s62 = ssub.s32 1, %s60
  %s63 = scalar_select 0, %s62, %s60
  $region1: #{tpu_custom_call.1} parent=0
    #allocation2 [shape = 'u8[8192]{0}', space=vmem, size = 0x2000, scoped, tag = 'input window, operand 0']
    #allocation3 [shape = 's32[2]{0}', space=sflag, size = 0x8, scoped, tag = 'scoped memory for tpu_custom_call.1']
    #allocation4 [shape = 's32[2]{0}', space=sflag, size = 0x8, scoped, tag = 'scoped memory for tpu_custom_call.1']
    #allocation5 [shape = 'u8[8192]{0}', space=vmem, size = 0x2000, scoped, tag = 'input window, operand 1']
    #allocation6 [shape = 's32[2]{0}', space=sflag, size = 0x8, scoped, tag = 'scoped memory for tpu_custom_call.1']
    #allocation7 [shape = 'u8[1024]{0}', space=vmem, size = 0x400, scoped, tag = 'input window, operand 2']
    #allocation8 [shape = 'u8[8192]{0}', space=vmem, size = 0x2000, scoped, tag = 'input window, operand 3, single buffered']
    #allocation9 [shape = 's32[1]{0}', space=sflag, size = 0x4, scoped, tag = 'scoped memory for tpu_custom_call.1']
    #allocation10 [shape = 'u8[512]{0}', space=vmem, size = 0x400, scoped, tag = 'input window, operand 4, single buffered']
    #allocation11 [shape = 'u8[8192]{0}', space=vmem, size = 0x2000, scoped, tag = 'input window, operand 5, single buffered']
    #allocation12 [shape = 's32[1]{0}', space=sflag, size = 0x4, scoped, tag = 'scoped memory for tpu_custom_call.1']
    #allocation13 [shape = 'u8[512]{0}', space=vmem, size = 0x400, scoped, tag = 'input window, operand 6, single buffered']
    #allocation14 [shape = 'u8[8192]{0}', space=vmem, size = 0x2000, scoped, tag = 'input window, operand 7, single buffered']
    #allocation15 [shape = 's32[1]{0}', space=sflag, size = 0x4, scoped, tag = 'scoped memory for tpu_custom_call.1']
    #allocation16 [shape = 'u8[512]{0}', space=vmem, size = 0x400, scoped, tag = 'input window, operand 8, single buffered']
    #allocation17 [shape = 'u8[8192]{0}', space=vmem, size = 0x2000, scoped, tag = 'input window, operand 9, single buffered']
    #allocation18 [shape = 's32[1]{0}', space=sflag, size = 0x4, scoped, tag = 'scoped memory for tpu_custom_call.1']
    #allocation19 [shape = 'u8[512]{0}', space=vmem, size = 0x400, scoped, tag = 'input window, operand 10, single buffered']
    #allocation20 [shape = 'u8[8192]{0}', space=vmem, size = 0x2000, scoped, tag = 'input window, operand 11, single buffered']
    #allocation21 [shape = 's32[1]{0}', space=sflag, size = 0x4, scoped, tag = 'scoped memory for tpu_custom_call.1']
    #allocation22 [shape = 'u8[512]{0}', space=vmem, size = 0x400, scoped, tag = 'input window, operand 12, single buffered']
    #allocation23 [shape = 'u8[8192]{0}', space=vmem, size = 0x2000, scoped, tag = 'input window, operand 13, single buffered']
    #allocation24 [shape = 's32[1]{0}', space=sflag, size = 0x4, scoped, tag = 'scoped memory for tpu_custom_call.1']
    #allocation25 [shape = 'u8[512]{0}', space=vmem, size = 0x400, scoped, tag = 'input window, operand 14, single buffered']
    #allocation26 [shape = 'u8[8192]{0}', space=vmem, size = 0x2000, scoped, tag = 'input window, operand 15, single buffered']
    #allocation27 [shape = 's32[1]{0}', space=sflag, size = 0x4, scoped, tag = 'scoped memory for tpu_custom_call.1']
    #allocation28 [shape = 'u8[512]{0}', space=vmem, size = 0x400, scoped, tag = 'input window, operand 16, single buffered']
    #allocation29 [shape = 'u8[8192]{0}', space=vmem, size = 0x2000, scoped, tag = 'input window, operand 17, single buffered']
    #allocation30 [shape = 's32[1]{0}', space=sflag, size = 0x4, scoped, tag = 'scoped memory for tpu_custom_call.1']
    #allocation31 [shape = 'u8[512]{0}', space=vmem, size = 0x400, scoped, tag = 'input window, operand 18, single buffered']
    #allocation32 [shape = 'u8[8192]{0}', space=vmem, size = 0x2000, scoped, tag = 'input window, operand 19, single buffered']
    #allocation33 [shape = 's32[1]{0}', space=sflag, size = 0x4, scoped, tag = 'scoped memory for tpu_custom_call.1']
    #allocation34 [shape = 'u8[512]{0}', space=vmem, size = 0x400, scoped, tag = 'input window, operand 20, single buffered']
    #allocation35 [shape = 'u8[16384]{0}', space=vmem, size = 0x4000, scoped, tag = 'input window, operand 21, single buffered']
    #allocation36 [shape = 's32[1]{0}', space=sflag, size = 0x4, scoped, tag = 'scoped memory for tpu_custom_call.1']
    #allocation37 [shape = 'u8[512]{0}', space=vmem, size = 0x400, scoped, tag = 'input window, operand 22, single buffered']
    #allocation38 [shape = 'u8[512]{0}', space=vmem, size = 0x400, scoped, tag = 'input window, operand 23, single buffered']
    #allocation39 [shape = 's32[1]{0}', space=sflag, size = 0x4, scoped, tag = 'scoped memory for tpu_custom_call.1']
    #allocation40 [shape = 'u8[512]{0}', space=vmem, size = 0x400, scoped, tag = 'input window, operand 24, single buffered']
    #allocation41 [shape = 'u8[512]{0}', space=vmem, size = 0x400, scoped, tag = 'input window, operand 25, single buffered']
    #allocation42 [shape = 's32[1]{0}', space=sflag, size = 0x4, scoped, tag = 'scoped memory for tpu_custom_call.1']
    #allocation43 [shape = 'u8[512]{0}', space=vmem, size = 0x400, scoped, tag = 'input window, operand 26, single buffered']
    #allocation44 [shape = 'u8[512]{0}', space=vmem, size = 0x400, scoped, tag = 'input window, operand 27, single buffered']
    #allocation45 [shape = 's32[1]{0}', space=sflag, size = 0x4, scoped, tag = 'scoped memory for tpu_custom_call.1']
    #allocation46 [shape = 'u8[512]{0}', space=vmem, size = 0x400, scoped, tag = 'input window, operand 28, single buffered']
    #allocation47 [shape = 'u8[8192]{0}', space=vmem, size = 0x2000, scoped, tag = 'output window, operand 0']
    %64 = vsyncpa [#allocation3], 0
    %s65 = scalar_lea.sflag [#allocation3], 1
    %66 = vsyncpa %s65, 0
    %67 = vsyncpa [#allocation6], 0
    %s68 = scalar_lea.sflag [#allocation6], 1
    %69 = vsyncpa %s68, 0
    %70 = vsyncpa [#allocation9], 0
    %71 = vsyncpa [#allocation12], 0
    %72 = vsyncpa [#allocation15], 0
    %73 = vsyncpa [#allocation18], 0
    %74 = vsyncpa [#allocation21], 0
    %75 = vsyncpa [#allocation24], 0
    %76 = vsyncpa [#allocation27], 0
    %77 = vsyncpa [#allocation30], 0
    %78 = vsyncpa [#allocation33], 0
    %79 = vsyncpa [#allocation36], 0
    %80 = vsyncpa [#allocation39], 0
    %81 = vsyncpa [#allocation42], 0
    %82 = vsyncpa [#allocation45], 0
    %83 = vsyncpa [#allocation4], 0
    %s84 = scalar_lea.sflag [#allocation4], 1
    %85 = vsyncpa %s84, 0
    loop: start=0, step=1, limit=4
    $region2: #{tpu_custom_call.1} parent=1 // loop_pre_header
      _
    $region3: #{tpu_custom_call.1} parent=1 // loop_header
      %s87 = sphi 0, %s91
      %p88 = scmp.ge.s32.totalorder %s87, 4
      %s97 = sphi 0, %s99
      %s100 = sphi 0, %s97
      %s101 = sphi 0, %s100
      %s117 = sphi 0, %s101
      %s123 = sphi 0, %s125
      %s126 = sphi 0, %s123
      %s127 = sphi 0, %s126
      %s143 = sphi 0, %s127
      %s149 = sphi 0, %s151
      %s152 = sphi 0, %s149
      %s153 = sphi 0, %s152
      %s169 = sphi 0, %s153
      %s173 = sphi 0, %s173
      %s175 = sphi 0, %s173
      %s176 = sphi 0, %s175
      %s190 = sphi 0, %s176
      %s194 = sphi 0, %s194
      %s196 = sphi 0, %s194
      %s197 = sphi 0, %s196
      %s211 = sphi 0, %s197
      %s215 = sphi 0, %s215
      %s217 = sphi 0, %s215
      %s218 = sphi 0, %s217
      %s232 = sphi 0, %s218
      %s236 = sphi 0, %s236
      %s238 = sphi 0, %s236
      %s239 = sphi 0, %s238
      %s253 = sphi 0, %s239
      %s257 = sphi 0, %s257
      %s259 = sphi 0, %s257
      %s260 = sphi 0, %s259
      %s274 = sphi 0, %s260
      %s278 = sphi 0, %s278
      %s280 = sphi 0, %s278
      %s281 = sphi 0, %s280
      %s295 = sphi 0, %s281
      %s299 = sphi 0, %s299
      %s301 = sphi 0, %s299
      %s302 = sphi 0, %s301
      %s316 = sphi 0, %s302
      %s320 = sphi 0, %s320
      %s322 = sphi 0, %s320
      %s323 = sphi 0, %s322
      %s337 = sphi 0, %s323
      %s341 = sphi 0, %s341
      %s343 = sphi 0, %s341
      %s344 = sphi 0, %s343
      %s358 = sphi 0, %s344
      %s362 = sphi 0, %s362
      %s364 = sphi 0, %s362
      %s365 = sphi 0, %s364
      %s379 = sphi 0, %s365
      %s383 = sphi 0, %s383
      %s385 = sphi 0, %s383
      %s386 = sphi 0, %s385
      %s400 = sphi 0, %s386
      %s404 = sphi 0, %s404
      %s406 = sphi 0, %s404
      %s407 = sphi 0, %s406
      %s421 = sphi 0, %s407
      %s425 = sphi 0, %s425
      %s427 = sphi 0, %s425
      %s428 = sphi 0, %s427
      %s442 = sphi 0, %s428
      %s446 = sphi 0, %s446
      %s448 = sphi 0, %s446
      %s449 = sphi 0, %s448
      %s463 = sphi 0, %s449
      %s467 = sphi 0, %s467
      %s469 = sphi 0, %s467
      %s470 = sphi 0, %s469
      %s484 = sphi 0, %s470
      %s488 = sphi 0, %s488
      %s490 = sphi 0, %s488
      %s491 = sphi 0, %s490
      %s505 = sphi 0, %s491
      %s509 = sphi 0, %s509
      %s511 = sphi 0, %s509
      %s512 = sphi 0, %s511
      %s526 = sphi 0, %s512
      %s530 = sphi 0, %s530
      %s532 = sphi 0, %s530
      %s533 = sphi 0, %s532
      %s547 = sphi 0, %s533
      %s551 = sphi 0, %s551
      %s553 = sphi 0, %s551
      %s554 = sphi 0, %s553
      %s568 = sphi 0, %s554
      %s572 = sphi 0, %s572
      %s574 = sphi 0, %s572
      %s575 = sphi 0, %s574
      %s589 = sphi 0, %s575
      %s593 = sphi 0, %s593
      %s595 = sphi 0, %s593
      %s596 = sphi 0, %s595
      %s610 = sphi 0, %s596
      %s614 = sphi 0, %s614
      %s616 = sphi 0, %s614
      %s617 = sphi 0, %s616
      %s631 = sphi 0, %s617
      %s635 = sphi 0, %s635
      %s637 = sphi 0, %s635
      %s638 = sphi 0, %s637
      %s652 = sphi 0, %s638
      %s656 = sphi 0, %s656
      %s658 = sphi 0, %s656
      %s659 = sphi 0, %s658
      %s673 = sphi 0, %s659
      %s677 = sphi 0, %s677
      %s679 = sphi 0, %s677
      %s680 = sphi 0, %s679
      %s694 = sphi 0, %s680
      %s698 = sphi 0, %s698
      %s700 = sphi 0, %s698
      %s701 = sphi 0, %s700
      %s715 = sphi 0, %s701
      %s721 = sphi 0, %s723
      %s724 = sphi 0, %s721
      %s725 = sphi 0, %s724
      %s741 = sphi 0, %s725
    $region4: #{tpu_custom_call.1} parent=1 // loop_header_branch
      %90 = sbr.rel (%p88) target = $region8
    $region5: #{tpu_custom_call.1} parent=1 // loop_body
      %s92 = ssub.s32 %s87, 1
      %s93 = ssub.s32 %s87, 2
      %s94 = sadd.s32 %s87, 1
      %s95 = ssub.s32 %s87, %s94
      %p96 = scmp.eq.s32.totalorder %s95, 0
      %s98 = sadd.s32 %s97, 1
      %s99 = scalar_select %p96, %s97, %s98
      %p102 = pneg %p96
      %p103 = scmp.eq.s32.totalorder %s87, 1
      %p104 = por %p102, %p103
      %p105 = scmp.ne.s32.totalorder %s97, %s100
      %p106 = scmp.eq.s32.totalorder %s87, 0
      %p107 = por %p105, %p106
      %p108 = scmp.ne.s32.totalorder %s97, %s100
      %p109 = scmp.eq.s32.totalorder %s92, 1
      %p110 = por %p108, %p109
      %p111 = scmp.ne.s32.totalorder %s100, %s101
      %p112 = scmp.eq.s32.totalorder %s92, 0
      %p113 = por %p111, %p112
      %p114 = scmp.ne.s32.totalorder %s100, %s101
      %p115 = scmp.eq.s32.totalorder %s93, 1
      %p116 = por %p114, %p115
      %p118 = scmp.ne.s32.totalorder %s101, %s117
      %p119 = scmp.eq.s32.totalorder %s93, 0
      %p120 = por %p118, %p119
      %s121 = ssub.s32 %s87, %s94
      %p122 = scmp.eq.s32.totalorder %s121, 0
      %s124 = sadd.s32 %s123, 1
      %s125 = scalar_select %p122, %s123, %s124
      %p128 = pneg %p122
      %p129 = scmp.eq.s32.totalorder %s87, 1
      %p130 = por %p128, %p129
      %p131 = scmp.ne.s32.totalorder %s123, %s126
      %p132 = scmp.eq.s32.totalorder %s87, 0
      %p133 = por %p131, %p132
      %p134 = scmp.ne.s32.totalorder %s123, %s126
      %p135 = scmp.eq.s32.totalorder %s92, 1
      %p136 = por %p134, %p135
      %p137 = scmp.ne.s32.totalorder %s126, %s127
      %p138 = scmp.eq.s32.totalorder %s92, 0
      %p139 = por %p137, %p138
      %p140 = scmp.ne.s32.totalorder %s126, %s127
      %p141 = scmp.eq.s32.totalorder %s93, 1
      %p142 = por %p140, %p141
      %p144 = scmp.ne.s32.totalorder %s127, %s143
      %p145 = scmp.eq.s32.totalorder %s93, 0
      %p146 = por %p144, %p145
      %s147 = ssub.s32 %s87, %s94
      %p148 = scmp.eq.s32.totalorder %s147, 0
      %s150 = sadd.s32 %s149, 1
      %s151 = scalar_select %p148, %s149, %s150
      %p154 = pneg %p148
      %p155 = scmp.eq.s32.totalorder %s87, 1
      %p156 = por %p154, %p155
      %p157 = scmp.ne.s32.totalorder %s149, %s152
      %p158 = scmp.eq.s32.totalorder %s87, 0
      %p159 = por %p157, %p158
      %p160 = scmp.ne.s32.totalorder %s149, %s152
      %p161 = scmp.eq.s32.totalorder %s92, 1
      %p162 = por %p160, %p161
      %p163 = scmp.ne.s32.totalorder %s152, %s153
      %p164 = scmp.eq.s32.totalorder %s92, 0
      %p165 = por %p163, %p164
      %p166 = scmp.ne.s32.totalorder %s152, %s153
      %p167 = scmp.eq.s32.totalorder %s93, 1
      %p168 = por %p166, %p167
      %p170 = scmp.ne.s32.totalorder %s153, %s169
      %p171 = scmp.eq.s32.totalorder %s93, 0
      %p172 = por %p170, %p171
      %s174 = sadd.s32 %s173, 1
      %p177 = scmp.eq.s32.totalorder %s87, 1
      %p178 = scmp.ne.s32.totalorder %s173, %s175
      %p179 = scmp.eq.s32.totalorder %s87, 0
      %p180 = por %p178, %p179
      %p181 = scmp.ne.s32.totalorder %s173, %s175
      %p182 = scmp.eq.s32.totalorder %s92, 1
      %p183 = por %p181, %p182
      %p184 = scmp.ne.s32.totalorder %s175, %s176
      %p185 = scmp.eq.s32.totalorder %s92, 0
      %p186 = por %p184, %p185
      %p187 = scmp.ne.s32.totalorder %s175, %s176
      %p188 = scmp.eq.s32.totalorder %s93, 1
      %p189 = por %p187, %p188
      %p191 = scmp.ne.s32.totalorder %s176, %s190
      %p192 = scmp.eq.s32.totalorder %s93, 0
      %p193 = por %p191, %p192
      %s195 = sadd.s32 %s194, 1
      %p198 = scmp.eq.s32.totalorder %s87, 1
      %p199 = scmp.ne.s32.totalorder %s194, %s196
      %p200 = scmp.eq.s32.totalorder %s87, 0
      %p201 = por %p199, %p200
      %p202 = scmp.ne.s32.totalorder %s194, %s196
      %p203 = scmp.eq.s32.totalorder %s92, 1
      %p204 = por %p202, %p203
      %p205 = scmp.ne.s32.totalorder %s196, %s197
      %p206 = scmp.eq.s32.totalorder %s92, 0
      %p207 = por %p205, %p206
      %p208 = scmp.ne.s32.totalorder %s196, %s197
      %p209 = scmp.eq.s32.totalorder %s93, 1
      %p210 = por %p208, %p209
      %p212 = scmp.ne.s32.totalorder %s197, %s211
      %p213 = scmp.eq.s32.totalorder %s93, 0
      %p214 = por %p212, %p213
      %s216 = sadd.s32 %s215, 1
      %p219 = scmp.eq.s32.totalorder %s87, 1
      %p220 = scmp.ne.s32.totalorder %s215, %s217
      %p221 = scmp.eq.s32.totalorder %s87, 0
      %p222 = por %p220, %p221
      %p223 = scmp.ne.s32.totalorder %s215, %s217
      %p224 = scmp.eq.s32.totalorder %s92, 1
      %p225 = por %p223, %p224
      %p226 = scmp.ne.s32.totalorder %s217, %s218
      %p227 = scmp.eq.s32.totalorder %s92, 0
      %p228 = por %p226, %p227
      %p229 = scmp.ne.s32.totalorder %s217, %s218
      %p230 = scmp.eq.s32.totalorder %s93, 1
      %p231 = por %p229, %p230
      %p233 = scmp.ne.s32.totalorder %s218, %s232
      %p234 = scmp.eq.s32.totalorder %s93, 0
      %p235 = por %p233, %p234
      %s237 = sadd.s32 %s236, 1
      %p240 = scmp.eq.s32.totalorder %s87, 1
      %p241 = scmp.ne.s32.totalorder %s236, %s238
      %p242 = scmp.eq.s32.totalorder %s87, 0
      %p243 = por %p241, %p242
      %p244 = scmp.ne.s32.totalorder %s236, %s238
      %p245 = scmp.eq.s32.totalorder %s92, 1
      %p246 = por %p244, %p245
      %p247 = scmp.ne.s32.totalorder %s238, %s239
      %p248 = scmp.eq.s32.totalorder %s92, 0
      %p249 = por %p247, %p248
      %p250 = scmp.ne.s32.totalorder %s238, %s239
      %p251 = scmp.eq.s32.totalorder %s93, 1
      %p252 = por %p250, %p251
      %p254 = scmp.ne.s32.totalorder %s239, %s253
      %p255 = scmp.eq.s32.totalorder %s93, 0
      %p256 = por %p254, %p255
      %s258 = sadd.s32 %s257, 1
      %p261 = scmp.eq.s32.totalorder %s87, 1
      %p262 = scmp.ne.s32.totalorder %s257, %s259
      %p263 = scmp.eq.s32.totalorder %s87, 0
      %p264 = por %p262, %p263
      %p265 = scmp.ne.s32.totalorder %s257, %s259
      %p266 = scmp.eq.s32.totalorder %s92, 1
      %p267 = por %p265, %p266
      %p268 = scmp.ne.s32.totalorder %s259, %s260
      %p269 = scmp.eq.s32.totalorder %s92, 0
      %p270 = por %p268, %p269
      %p271 = scmp.ne.s32.totalorder %s259, %s260
      %p272 = scmp.eq.s32.totalorder %s93, 1
      %p273 = por %p271, %p272
      %p275 = scmp.ne.s32.totalorder %s260, %s274
      %p276 = scmp.eq.s32.totalorder %s93, 0
      %p277 = por %p275, %p276
      %s279 = sadd.s32 %s278, 1
      %p282 = scmp.eq.s32.totalorder %s87, 1
      %p283 = scmp.ne.s32.totalorder %s278, %s280
      %p284 = scmp.eq.s32.totalorder %s87, 0
      %p285 = por %p283, %p284
      %p286 = scmp.ne.s32.totalorder %s278, %s280
      %p287 = scmp.eq.s32.totalorder %s92, 1
      %p288 = por %p286, %p287
      %p289 = scmp.ne.s32.totalorder %s280, %s281
      %p290 = scmp.eq.s32.totalorder %s92, 0
      %p291 = por %p289, %p290
      %p292 = scmp.ne.s32.totalorder %s280, %s281
      %p293 = scmp.eq.s32.totalorder %s93, 1
      %p294 = por %p292, %p293
      %p296 = scmp.ne.s32.totalorder %s281, %s295
      %p297 = scmp.eq.s32.totalorder %s93, 0
      %p298 = por %p296, %p297
      %s300 = sadd.s32 %s299, 1
      %p303 = scmp.eq.s32.totalorder %s87, 1
      %p304 = scmp.ne.s32.totalorder %s299, %s301
      %p305 = scmp.eq.s32.totalorder %s87, 0
      %p306 = por %p304, %p305
      %p307 = scmp.ne.s32.totalorder %s299, %s301
      %p308 = scmp.eq.s32.totalorder %s92, 1
      %p309 = por %p307, %p308
      %p310 = scmp.ne.s32.totalorder %s301, %s302
      %p311 = scmp.eq.s32.totalorder %s92, 0
      %p312 = por %p310, %p311
      %p313 = scmp.ne.s32.totalorder %s301, %s302
      %p314 = scmp.eq.s32.totalorder %s93, 1
      %p315 = por %p313, %p314
      %p317 = scmp.ne.s32.totalorder %s302, %s316
      %p318 = scmp.eq.s32.totalorder %s93, 0
      %p319 = por %p317, %p318
      %s321 = sadd.s32 %s320, 1
      %p324 = scmp.eq.s32.totalorder %s87, 1
      %p325 = scmp.ne.s32.totalorder %s320, %s322
      %p326 = scmp.eq.s32.totalorder %s87, 0
      %p327 = por %p325, %p326
      %p328 = scmp.ne.s32.totalorder %s320, %s322
      %p329 = scmp.eq.s32.totalorder %s92, 1
      %p330 = por %p328, %p329
      %p331 = scmp.ne.s32.totalorder %s322, %s323
      %p332 = scmp.eq.s32.totalorder %s92, 0
      %p333 = por %p331, %p332
      %p334 = scmp.ne.s32.totalorder %s322, %s323
      %p335 = scmp.eq.s32.totalorder %s93, 1
      %p336 = por %p334, %p335
      %p338 = scmp.ne.s32.totalorder %s323, %s337
      %p339 = scmp.eq.s32.totalorder %s93, 0
      %p340 = por %p338, %p339
      %s342 = sadd.s32 %s341, 1
      %p345 = scmp.eq.s32.totalorder %s87, 1
      %p346 = scmp.ne.s32.totalorder %s341, %s343
      %p347 = scmp.eq.s32.totalorder %s87, 0
      %p348 = por %p346, %p347
      %p349 = scmp.ne.s32.totalorder %s341, %s343
      %p350 = scmp.eq.s32.totalorder %s92, 1
      %p351 = por %p349, %p350
      %p352 = scmp.ne.s32.totalorder %s343, %s344
      %p353 = scmp.eq.s32.totalorder %s92, 0
      %p354 = por %p352, %p353
      %p355 = scmp.ne.s32.totalorder %s343, %s344
      %p356 = scmp.eq.s32.totalorder %s93, 1
      %p357 = por %p355, %p356
      %p359 = scmp.ne.s32.totalorder %s344, %s358
      %p360 = scmp.eq.s32.totalorder %s93, 0
      %p361 = por %p359, %p360
      %s363 = sadd.s32 %s362, 1
      %p366 = scmp.eq.s32.totalorder %s87, 1
      %p367 = scmp.ne.s32.totalorder %s362, %s364
      %p368 = scmp.eq.s32.totalorder %s87, 0
      %p369 = por %p367, %p368
      %p370 = scmp.ne.s32.totalorder %s362, %s364
      %p371 = scmp.eq.s32.totalorder %s92, 1
      %p372 = por %p370, %p371
      %p373 = scmp.ne.s32.totalorder %s364, %s365
      %p374 = scmp.eq.s32.totalorder %s92, 0
      %p375 = por %p373, %p374
      %p376 = scmp.ne.s32.totalorder %s364, %s365
      %p377 = scmp.eq.s32.totalorder %s93, 1
      %p378 = por %p376, %p377
      %p380 = scmp.ne.s32.totalorder %s365, %s379
      %p381 = scmp.eq.s32.totalorder %s93, 0
      %p382 = por %p380, %p381
      %s384 = sadd.s32 %s383, 1
      %p387 = scmp.eq.s32.totalorder %s87, 1
      %p388 = scmp.ne.s32.totalorder %s383, %s385
      %p389 = scmp.eq.s32.totalorder %s87, 0
      %p390 = por %p388, %p389
      %p391 = scmp.ne.s32.totalorder %s383, %s385
      %p392 = scmp.eq.s32.totalorder %s92, 1
      %p393 = por %p391, %p392
      %p394 = scmp.ne.s32.totalorder %s385, %s386
      %p395 = scmp.eq.s32.totalorder %s92, 0
      %p396 = por %p394, %p395
      %p397 = scmp.ne.s32.totalorder %s385, %s386
      %p398 = scmp.eq.s32.totalorder %s93, 1
      %p399 = por %p397, %p398
      %p401 = scmp.ne.s32.totalorder %s386, %s400
      %p402 = scmp.eq.s32.totalorder %s93, 0
      %p403 = por %p401, %p402
      %s405 = sadd.s32 %s404, 1
      %p408 = scmp.eq.s32.totalorder %s87, 1
      %p409 = scmp.ne.s32.totalorder %s404, %s406
      %p410 = scmp.eq.s32.totalorder %s87, 0
      %p411 = por %p409, %p410
      %p412 = scmp.ne.s32.totalorder %s404, %s406
      %p413 = scmp.eq.s32.totalorder %s92, 1
      %p414 = por %p412, %p413
      %p415 = scmp.ne.s32.totalorder %s406, %s407
      %p416 = scmp.eq.s32.totalorder %s92, 0
      %p417 = por %p415, %p416
      %p418 = scmp.ne.s32.totalorder %s406, %s407
      %p419 = scmp.eq.s32.totalorder %s93, 1
      %p420 = por %p418, %p419
      %p422 = scmp.ne.s32.totalorder %s407, %s421
      %p423 = scmp.eq.s32.totalorder %s93, 0
      %p424 = por %p422, %p423
      %s426 = sadd.s32 %s425, 1
      %p429 = scmp.eq.s32.totalorder %s87, 1
      %p430 = scmp.ne.s32.totalorder %s425, %s427
      %p431 = scmp.eq.s32.totalorder %s87, 0
      %p432 = por %p430, %p431
      %p433 = scmp.ne.s32.totalorder %s425, %s427
      %p434 = scmp.eq.s32.totalorder %s92, 1
      %p435 = por %p433, %p434
      %p436 = scmp.ne.s32.totalorder %s427, %s428
      %p437 = scmp.eq.s32.totalorder %s92, 0
      %p438 = por %p436, %p437
      %p439 = scmp.ne.s32.totalorder %s427, %s428
      %p440 = scmp.eq.s32.totalorder %s93, 1
      %p441 = por %p439, %p440
      %p443 = scmp.ne.s32.totalorder %s428, %s442
      %p444 = scmp.eq.s32.totalorder %s93, 0
      %p445 = por %p443, %p444
      %s447 = sadd.s32 %s446, 1
      %p450 = scmp.eq.s32.totalorder %s87, 1
      %p451 = scmp.ne.s32.totalorder %s446, %s448
      %p452 = scmp.eq.s32.totalorder %s87, 0
      %p453 = por %p451, %p452
      %p454 = scmp.ne.s32.totalorder %s446, %s448
      %p455 = scmp.eq.s32.totalorder %s92, 1
      %p456 = por %p454, %p455
      %p457 = scmp.ne.s32.totalorder %s448, %s449
      %p458 = scmp.eq.s32.totalorder %s92, 0
      %p459 = por %p457, %p458
      %p460 = scmp.ne.s32.totalorder %s448, %s449
      %p461 = scmp.eq.s32.totalorder %s93, 1
      %p462 = por %p460, %p461
      %p464 = scmp.ne.s32.totalorder %s449, %s463
      %p465 = scmp.eq.s32.totalorder %s93, 0
      %p466 = por %p464, %p465
      %s468 = sadd.s32 %s467, 1
      %p471 = scmp.eq.s32.totalorder %s87, 1
      %p472 = scmp.ne.s32.totalorder %s467, %s469
      %p473 = scmp.eq.s32.totalorder %s87, 0
      %p474 = por %p472, %p473
      %p475 = scmp.ne.s32.totalorder %s467, %s469
      %p476 = scmp.eq.s32.totalorder %s92, 1
      %p477 = por %p475, %p476
      %p478 = scmp.ne.s32.totalorder %s469, %s470
      %p479 = scmp.eq.s32.totalorder %s92, 0
      %p480 = por %p478, %p479
      %p481 = scmp.ne.s32.totalorder %s469, %s470
      %p482 = scmp.eq.s32.totalorder %s93, 1
      %p483 = por %p481, %p482
      %p485 = scmp.ne.s32.totalorder %s470, %s484
      %p486 = scmp.eq.s32.totalorder %s93, 0
      %p487 = por %p485, %p486
      %s489 = sadd.s32 %s488, 1
      %p492 = scmp.eq.s32.totalorder %s87, 1
      %p493 = scmp.ne.s32.totalorder %s488, %s490
      %p494 = scmp.eq.s32.totalorder %s87, 0
      %p495 = por %p493, %p494
      %p496 = scmp.ne.s32.totalorder %s488, %s490
      %p497 = scmp.eq.s32.totalorder %s92, 1
      %p498 = por %p496, %p497
      %p499 = scmp.ne.s32.totalorder %s490, %s491
      %p500 = scmp.eq.s32.totalorder %s92, 0
      %p501 = por %p499, %p500
      %p502 = scmp.ne.s32.totalorder %s490, %s491
      %p503 = scmp.eq.s32.totalorder %s93, 1
      %p504 = por %p502, %p503
      %p506 = scmp.ne.s32.totalorder %s491, %s505
      %p507 = scmp.eq.s32.totalorder %s93, 0
      %p508 = por %p506, %p507
      %s510 = sadd.s32 %s509, 1
      %p513 = scmp.eq.s32.totalorder %s87, 1
      %p514 = scmp.ne.s32.totalorder %s509, %s511
      %p515 = scmp.eq.s32.totalorder %s87, 0
      %p516 = por %p514, %p515
      %p517 = scmp.ne.s32.totalorder %s509, %s511
      %p518 = scmp.eq.s32.totalorder %s92, 1
      %p519 = por %p517, %p518
      %p520 = scmp.ne.s32.totalorder %s511, %s512
      %p521 = scmp.eq.s32.totalorder %s92, 0
      %p522 = por %p520, %p521
      %p523 = scmp.ne.s32.totalorder %s511, %s512
      %p524 = scmp.eq.s32.totalorder %s93, 1
      %p525 = por %p523, %p524
      %p527 = scmp.ne.s32.totalorder %s512, %s526
      %p528 = scmp.eq.s32.totalorder %s93, 0
      %p529 = por %p527, %p528
      %s531 = sadd.s32 %s530, 1
      %p534 = scmp.eq.s32.totalorder %s87, 1
      %p535 = scmp.ne.s32.totalorder %s530, %s532
      %p536 = scmp.eq.s32.totalorder %s87, 0
      %p537 = por %p535, %p536
      %p538 = scmp.ne.s32.totalorder %s530, %s532
      %p539 = scmp.eq.s32.totalorder %s92, 1
      %p540 = por %p538, %p539
      %p541 = scmp.ne.s32.totalorder %s532, %s533
      %p542 = scmp.eq.s32.totalorder %s92, 0
      %p543 = por %p541, %p542
      %p544 = scmp.ne.s32.totalorder %s532, %s533
      %p545 = scmp.eq.s32.totalorder %s93, 1
      %p546 = por %p544, %p545
      %p548 = scmp.ne.s32.totalorder %s533, %s547
      %p549 = scmp.eq.s32.totalorder %s93, 0
      %p550 = por %p548, %p549
      %s552 = sadd.s32 %s551, 1
      %p555 = scmp.eq.s32.totalorder %s87, 1
      %p556 = scmp.ne.s32.totalorder %s551, %s553
      %p557 = scmp.eq.s32.totalorder %s87, 0
      %p558 = por %p556, %p557
      %p559 = scmp.ne.s32.totalorder %s551, %s553
      %p560 = scmp.eq.s32.totalorder %s92, 1
      %p561 = por %p559, %p560
      %p562 = scmp.ne.s32.totalorder %s553, %s554
      %p563 = scmp.eq.s32.totalorder %s92, 0
      %p564 = por %p562, %p563
      %p565 = scmp.ne.s32.totalorder %s553, %s554
      %p566 = scmp.eq.s32.totalorder %s93, 1
      %p567 = por %p565, %p566
      %p569 = scmp.ne.s32.totalorder %s554, %s568
      %p570 = scmp.eq.s32.totalorder %s93, 0
      %p571 = por %p569, %p570
      %s573 = sadd.s32 %s572, 1
      %p576 = scmp.eq.s32.totalorder %s87, 1
      %p577 = scmp.ne.s32.totalorder %s572, %s574
      %p578 = scmp.eq.s32.totalorder %s87, 0
      %p579 = por %p577, %p578
      %p580 = scmp.ne.s32.totalorder %s572, %s574
      %p581 = scmp.eq.s32.totalorder %s92, 1
      %p582 = por %p580, %p581
      %p583 = scmp.ne.s32.totalorder %s574, %s575
      %p584 = scmp.eq.s32.totalorder %s92, 0
      %p585 = por %p583, %p584
      %p586 = scmp.ne.s32.totalorder %s574, %s575
      %p587 = scmp.eq.s32.totalorder %s93, 1
      %p588 = por %p586, %p587
      %p590 = scmp.ne.s32.totalorder %s575, %s589
      %p591 = scmp.eq.s32.totalorder %s93, 0
      %p592 = por %p590, %p591
      %s594 = sadd.s32 %s593, 1
      %p597 = scmp.eq.s32.totalorder %s87, 1
      %p598 = scmp.ne.s32.totalorder %s593, %s595
      %p599 = scmp.eq.s32.totalorder %s87, 0
      %p600 = por %p598, %p599
      %p601 = scmp.ne.s32.totalorder %s593, %s595
      %p602 = scmp.eq.s32.totalorder %s92, 1
      %p603 = por %p601, %p602
      %p604 = scmp.ne.s32.totalorder %s595, %s596
      %p605 = scmp.eq.s32.totalorder %s92, 0
      %p606 = por %p604, %p605
      %p607 = scmp.ne.s32.totalorder %s595, %s596
      %p608 = scmp.eq.s32.totalorder %s93, 1
      %p609 = por %p607, %p608
      %p611 = scmp.ne.s32.totalorder %s596, %s610
      %p612 = scmp.eq.s32.totalorder %s93, 0
      %p613 = por %p611, %p612
      %s615 = sadd.s32 %s614, 1
      %p618 = scmp.eq.s32.totalorder %s87, 1
      %p619 = scmp.ne.s32.totalorder %s614, %s616
      %p620 = scmp.eq.s32.totalorder %s87, 0
      %p621 = por %p619, %p620
      %p622 = scmp.ne.s32.totalorder %s614, %s616
      %p623 = scmp.eq.s32.totalorder %s92, 1
      %p624 = por %p622, %p623
      %p625 = scmp.ne.s32.totalorder %s616, %s617
      %p626 = scmp.eq.s32.totalorder %s92, 0
      %p627 = por %p625, %p626
      %p628 = scmp.ne.s32.totalorder %s616, %s617
      %p629 = scmp.eq.s32.totalorder %s93, 1
      %p630 = por %p628, %p629
      %p632 = scmp.ne.s32.totalorder %s617, %s631
      %p633 = scmp.eq.s32.totalorder %s93, 0
      %p634 = por %p632, %p633
      %s636 = sadd.s32 %s635, 1
      %p639 = scmp.eq.s32.totalorder %s87, 1
      %p640 = scmp.ne.s32.totalorder %s635, %s637
      %p641 = scmp.eq.s32.totalorder %s87, 0
      %p642 = por %p640, %p641
      %p643 = scmp.ne.s32.totalorder %s635, %s637
      %p644 = scmp.eq.s32.totalorder %s92, 1
      %p645 = por %p643, %p644
      %p646 = scmp.ne.s32.totalorder %s637, %s638
      %p647 = scmp.eq.s32.totalorder %s92, 0
      %p648 = por %p646, %p647
      %p649 = scmp.ne.s32.totalorder %s637, %s638
      %p650 = scmp.eq.s32.totalorder %s93, 1
      %p651 = por %p649, %p650
      %p653 = scmp.ne.s32.totalorder %s638, %s652
      %p654 = scmp.eq.s32.totalorder %s93, 0
      %p655 = por %p653, %p654
      %s657 = sadd.s32 %s656, 1
      %p660 = scmp.eq.s32.totalorder %s87, 1
      %p661 = scmp.ne.s32.totalorder %s656, %s658
      %p662 = scmp.eq.s32.totalorder %s87, 0
      %p663 = por %p661, %p662
      %p664 = scmp.ne.s32.totalorder %s656, %s658
      %p665 = scmp.eq.s32.totalorder %s92, 1
      %p666 = por %p664, %p665
      %p667 = scmp.ne.s32.totalorder %s658, %s659
      %p668 = scmp.eq.s32.totalorder %s92, 0
      %p669 = por %p667, %p668
      %p670 = scmp.ne.s32.totalorder %s658, %s659
      %p671 = scmp.eq.s32.totalorder %s93, 1
      %p672 = por %p670, %p671
      %p674 = scmp.ne.s32.totalorder %s659, %s673
      %p675 = scmp.eq.s32.totalorder %s93, 0
      %p676 = por %p674, %p675
      %s678 = sadd.s32 %s677, 1
      %p681 = scmp.eq.s32.totalorder %s87, 1
      %p682 = scmp.ne.s32.totalorder %s677, %s679
      %p683 = scmp.eq.s32.totalorder %s87, 0
      %p684 = por %p682, %p683
      %p685 = scmp.ne.s32.totalorder %s677, %s679
      %p686 = scmp.eq.s32.totalorder %s92, 1
      %p687 = por %p685, %p686
      %p688 = scmp.ne.s32.totalorder %s679, %s680
      %p689 = scmp.eq.s32.totalorder %s92, 0
      %p690 = por %p688, %p689
      %p691 = scmp.ne.s32.totalorder %s679, %s680
      %p692 = scmp.eq.s32.totalorder %s93, 1
      %p693 = por %p691, %p692
      %p695 = scmp.ne.s32.totalorder %s680, %s694
      %p696 = scmp.eq.s32.totalorder %s93, 0
      %p697 = por %p695, %p696
      %s699 = sadd.s32 %s698, 1
      %p702 = scmp.eq.s32.totalorder %s87, 1
      %p703 = scmp.ne.s32.totalorder %s698, %s700
      %p704 = scmp.eq.s32.totalorder %s87, 0
      %p705 = por %p703, %p704
      %p706 = scmp.ne.s32.totalorder %s698, %s700
      %p707 = scmp.eq.s32.totalorder %s92, 1
      %p708 = por %p706, %p707
      %p709 = scmp.ne.s32.totalorder %s700, %s701
      %p710 = scmp.eq.s32.totalorder %s92, 0
      %p711 = por %p709, %p710
      %p712 = scmp.ne.s32.totalorder %s700, %s701
      %p713 = scmp.eq.s32.totalorder %s93, 1
      %p714 = por %p712, %p713
      %p716 = scmp.ne.s32.totalorder %s701, %s715
      %p717 = scmp.eq.s32.totalorder %s93, 0
      %p718 = por %p716, %p717
      %s719 = ssub.s32 %s87, %s94
      %p720 = scmp.eq.s32.totalorder %s719, 0
      %s722 = sadd.s32 %s721, 1
      %s723 = scalar_select %p720, %s721, %s722
      %p726 = pneg %p720
      %p727 = scmp.eq.s32.totalorder %s87, 1
      %p728 = por %p726, %p727
      %p729 = scmp.ne.s32.totalorder %s721, %s724
      %p730 = scmp.eq.s32.totalorder %s87, 0
      %p731 = por %p729, %p730
      %p732 = scmp.ne.s32.totalorder %s721, %s724
      %p733 = scmp.eq.s32.totalorder %s92, 1
      %p734 = por %p732, %p733
      %p735 = scmp.ne.s32.totalorder %s724, %s725
      %p736 = scmp.eq.s32.totalorder %s92, 0
      %p737 = por %p735, %p736
      %p738 = scmp.ne.s32.totalorder %s724, %s725
      %p739 = scmp.eq.s32.totalorder %s93, 1
      %p740 = por %p738, %p739
      %p742 = scmp.ne.s32.totalorder %s725, %s741
      %p743 = scmp.eq.s32.totalorder %s93, 0
      %p744 = por %p742, %p743
      %p745 = scmp.le.s32.totalorder 1, %s87
      %p746 = scmp.lt.s32.totalorder %s87, 3
      %p747 = pnand %p745, %p746
      %p748 = pneg %p747
      // Predicated region
      $region9: #{tpu_custom_call.1} parent=5 // pred_check
        _
      $region10: #{tpu_custom_call.1} parent=5 // pred_check_branch
        %750 = sbr.rel (%p747) target = $region12
      $region11: #{tpu_custom_call.1} parent=5 // pred_region
        %s751 = ssub.s32 %s87, 1
        // Predicated region
        $region13: #{tpu_custom_call.1} parent=11 // pred_check
          %p752 = pneg %p186
        $region14: #{tpu_custom_call.1} parent=11 // pred_check_branch
          %754 = sbr.rel (%p752) target = $region16
        $region15: #{tpu_custom_call.1} parent=11 // pred_region
          %s756 = ssub.s32 256, 256
          %757 = vsyncadd [#allocation9], %s756
          %s758 = sshll.u32 [#allocation8], 4
          %s759 = int_to_ptr.vmem [resolvable:$true] %s758
          %764 = dma.hbm_to_vmem [thread:$0]  %s7, 256, %s759, [#allocation9], 64, 64, 4
        $region16: #{tpu_custom_call.1} parent=11 // pred_fallthru
          _
        // Predicated region
        $region17: #{tpu_custom_call.1} parent=11 // pred_check
          %p765 = pneg %p207
        $region18: #{tpu_custom_call.1} parent=11 // pred_check_branch
          %767 = sbr.rel (%p765) target = $region20
        $region19: #{tpu_custom_call.1} parent=11 // pred_region
          %s769 = ssub.s32 16, 16
          %770 = vsyncadd [#allocation9], %s769
          %s772 = sshll.u32 [#allocation10], 4
          %s773 = int_to_ptr.vmem [resolvable:$true] %s772
          %775 = dma.hbm_to_vmem [thread:$0]  %s9, 16, %s773, [#allocation9]
        $region20: #{tpu_custom_call.1} parent=11 // pred_fallthru
          _
        // Predicated region
        $region21: #{tpu_custom_call.1} parent=11 // pred_check
          %p776 = pneg %p228
        $region22: #{tpu_custom_call.1} parent=11 // pred_check_branch
          %778 = sbr.rel (%p776) target = $region24
        $region23: #{tpu_custom_call.1} parent=11 // pred_region
          %s780 = ssub.s32 256, 256
          %781 = vsyncadd [#allocation12], %s780
          %s782 = sshll.u32 [#allocation11], 4
          %s783 = int_to_ptr.vmem [resolvable:$true] %s782
          %788 = dma.hbm_to_vmem [thread:$0]  %s11, 256, %s783, [#allocation12], 64, 64, 4
        $region24: #{tpu_custom_call.1} parent=11 // pred_fallthru
          _
        // Predicated region
        $region25: #{tpu_custom_call.1} parent=11 // pred_check
          %p789 = pneg %p249
        $region26: #{tpu_custom_call.1} parent=11 // pred_check_branch
          %791 = sbr.rel (%p789) target = $region28
        $region27: #{tpu_custom_call.1} parent=11 // pred_region
          %s793 = ssub.s32 16, 16
          %794 = vsyncadd [#allocation12], %s793
          %s796 = sshll.u32 [#allocation13], 4
          %s797 = int_to_ptr.vmem [resolvable:$true] %s796
          %799 = dma.hbm_to_vmem [thread:$0]  %s13, 16, %s797, [#allocation12]
        $region28: #{tpu_custom_call.1} parent=11 // pred_fallthru
          _
        // Predicated region
        $region29: #{tpu_custom_call.1} parent=11 // pred_check
          %p800 = pneg %p270
        $region30: #{tpu_custom_call.1} parent=11 // pred_check_branch
          %802 = sbr.rel (%p800) target = $region32
        $region31: #{tpu_custom_call.1} parent=11 // pred_region
          %s804 = ssub.s32 256, 256
          %805 = vsyncadd [#allocation15], %s804
          %s806 = sshll.u32 [#allocation14], 4
          %s807 = int_to_ptr.vmem [resolvable:$true] %s806
          %812 = dma.hbm_to_vmem [thread:$0]  %s15, 256, %s807, [#allocation15], 64, 64, 4
        $region32: #{tpu_custom_call.1} parent=11 // pred_fallthru
          _
        // Predicated region
        $region33: #{tpu_custom_call.1} parent=11 // pred_check
          %p813 = pneg %p291
        $region34: #{tpu_custom_call.1} parent=11 // pred_check_branch
          %815 = sbr.rel (%p813) target = $region36
        $region35: #{tpu_custom_call.1} parent=11 // pred_region
          %s817 = ssub.s32 16, 16
          %818 = vsyncadd [#allocation15], %s817
          %s820 = sshll.u32 [#allocation16], 4
          %s821 = int_to_ptr.vmem [resolvable:$true] %s820
          %823 = dma.hbm_to_vmem [thread:$0]  %s17, 16, %s821, [#allocation15]
        $region36: #{tpu_custom_call.1} parent=11 // pred_fallthru
          _
        // Predicated region
        $region37: #{tpu_custom_call.1} parent=11 // pred_check
          %p824 = pneg %p312
        $region38: #{tpu_custom_call.1} parent=11 // pred_check_branch
          %826 = sbr.rel (%p824) target = $region40
        $region39: #{tpu_custom_call.1} parent=11 // pred_region
          %s828 = ssub.s32 256, 256
          %829 = vsyncadd [#allocation18], %s828
          %s830 = sshll.u32 [#allocation17], 4
          %s831 = int_to_ptr.vmem [resolvable:$true] %s830
          %836 = dma.hbm_to_vmem [thread:$0]  %s19, 256, %s831, [#allocation18], 64, 64, 4
        $region40: #{tpu_custom_call.1} parent=11 // pred_fallthru
          _
        // Predicated region
        $region41: #{tpu_custom_call.1} parent=11 // pred_check
          %p837 = pneg %p333
        $region42: #{tpu_custom_call.1} parent=11 // pred_check_branch
          %839 = sbr.rel (%p837) target = $region44
        $region43: #{tpu_custom_call.1} parent=11 // pred_region
          %s841 = ssub.s32 16, 16
          %842 = vsyncadd [#allocation18], %s841
          %s844 = sshll.u32 [#allocation19], 4
          %s845 = int_to_ptr.vmem [resolvable:$true] %s844
          %847 = dma.hbm_to_vmem [thread:$0]  %s21, 16, %s845, [#allocation18]
        $region44: #{tpu_custom_call.1} parent=11 // pred_fallthru
          _
        // Predicated region
        $region45: #{tpu_custom_call.1} parent=11 // pred_check
          %p848 = pneg %p354
        $region46: #{tpu_custom_call.1} parent=11 // pred_check_branch
          %850 = sbr.rel (%p848) target = $region48
        $region47: #{tpu_custom_call.1} parent=11 // pred_region
          %s852 = ssub.s32 256, 256
          %853 = vsyncadd [#allocation21], %s852
          %s854 = sshll.u32 [#allocation20], 4
          %s855 = int_to_ptr.vmem [resolvable:$true] %s854
          %860 = dma.hbm_to_vmem [thread:$0]  %s23, 256, %s855, [#allocation21], 64, 64, 4
        $region48: #{tpu_custom_call.1} parent=11 // pred_fallthru
          _
        // Predicated region
        $region49: #{tpu_custom_call.1} parent=11 // pred_check
          %p861 = pneg %p375
        $region50: #{tpu_custom_call.1} parent=11 // pred_check_branch
          %863 = sbr.rel (%p861) target = $region52
        $region51: #{tpu_custom_call.1} parent=11 // pred_region
          %s865 = ssub.s32 16, 16
          %866 = vsyncadd [#allocation21], %s865
          %s868 = sshll.u32 [#allocation22], 4
          %s869 = int_to_ptr.vmem [resolvable:$true] %s868
          %871 = dma.hbm_to_vmem [thread:$0]  %s25, 16, %s869, [#allocation21]
        $region52: #{tpu_custom_call.1} parent=11 // pred_fallthru
          _
        // Predicated region
        $region53: #{tpu_custom_call.1} parent=11 // pred_check
          %p872 = pneg %p396
        $region54: #{tpu_custom_call.1} parent=11 // pred_check_branch
          %874 = sbr.rel (%p872) target = $region56
        $region55: #{tpu_custom_call.1} parent=11 // pred_region
          %s876 = ssub.s32 256, 256
          %877 = vsyncadd [#allocation24], %s876
          %s878 = sshll.u32 [#allocation23], 4
          %s879 = int_to_ptr.vmem [resolvable:$true] %s878
          %884 = dma.hbm_to_vmem [thread:$0]  %s27, 256, %s879, [#allocation24], 64, 64, 4
        $region56: #{tpu_custom_call.1} parent=11 // pred_fallthru
          _
        // Predicated region
        $region57: #{tpu_custom_call.1} parent=11 // pred_check
          %p885 = pneg %p417
        $region58: #{tpu_custom_call.1} parent=11 // pred_check_branch
          %887 = sbr.rel (%p885) target = $region60
        $region59: #{tpu_custom_call.1} parent=11 // pred_region
          %s889 = ssub.s32 16, 16
          %890 = vsyncadd [#allocation24], %s889
          %s892 = sshll.u32 [#allocation25], 4
          %s893 = int_to_ptr.vmem [resolvable:$true] %s892
          %895 = dma.hbm_to_vmem [thread:$0]  %s29, 16, %s893, [#allocation24]
        $region60: #{tpu_custom_call.1} parent=11 // pred_fallthru
          _
        // Predicated region
        $region61: #{tpu_custom_call.1} parent=11 // pred_check
          %p896 = pneg %p438
        $region62: #{tpu_custom_call.1} parent=11 // pred_check_branch
          %898 = sbr.rel (%p896) target = $region64
        $region63: #{tpu_custom_call.1} parent=11 // pred_region
          %s900 = ssub.s32 256, 256
          %901 = vsyncadd [#allocation27], %s900
          %s902 = sshll.u32 [#allocation26], 4
          %s903 = int_to_ptr.vmem [resolvable:$true] %s902
          %908 = dma.hbm_to_vmem [thread:$0]  %s31, 256, %s903, [#allocation27], 64, 64, 4
        $region64: #{tpu_custom_call.1} parent=11 // pred_fallthru
          _
        // Predicated region
        $region65: #{tpu_custom_call.1} parent=11 // pred_check
          %p909 = pneg %p459
        $region66: #{tpu_custom_call.1} parent=11 // pred_check_branch
          %911 = sbr.rel (%p909) target = $region68
        $region67: #{tpu_custom_call.1} parent=11 // pred_region
          %s913 = ssub.s32 16, 16
          %914 = vsyncadd [#allocation27], %s913
          %s916 = sshll.u32 [#allocation28], 4
          %s917 = int_to_ptr.vmem [resolvable:$true] %s916
          %919 = dma.hbm_to_vmem [thread:$0]  %s33, 16, %s917, [#allocation27]
        $region68: #{tpu_custom_call.1} parent=11 // pred_fallthru
          _
        // Predicated region
        $region69: #{tpu_custom_call.1} parent=11 // pred_check
          %p920 = pneg %p480
        $region70: #{tpu_custom_call.1} parent=11 // pred_check_branch
          %922 = sbr.rel (%p920) target = $region72
        $region71: #{tpu_custom_call.1} parent=11 // pred_region
          %s924 = ssub.s32 256, 256
          %925 = vsyncadd [#allocation30], %s924
          %s926 = sshll.u32 [#allocation29], 4
          %s927 = int_to_ptr.vmem [resolvable:$true] %s926
          %932 = dma.hbm_to_vmem [thread:$0]  %s35, 256, %s927, [#allocation30], 64, 64, 4
        $region72: #{tpu_custom_call.1} parent=11 // pred_fallthru
          _
        // Predicated region
        $region73: #{tpu_custom_call.1} parent=11 // pred_check
          %p933 = pneg %p501
        $region74: #{tpu_custom_call.1} parent=11 // pred_check_branch
          %935 = sbr.rel (%p933) target = $region76
        $region75: #{tpu_custom_call.1} parent=11 // pred_region
          %s937 = ssub.s32 16, 16
          %938 = vsyncadd [#allocation30], %s937
          %s940 = sshll.u32 [#allocation31], 4
          %s941 = int_to_ptr.vmem [resolvable:$true] %s940
          %943 = dma.hbm_to_vmem [thread:$0]  %s37, 16, %s941, [#allocation30]
        $region76: #{tpu_custom_call.1} parent=11 // pred_fallthru
          _
        // Predicated region
        $region77: #{tpu_custom_call.1} parent=11 // pred_check
          %p944 = pneg %p522
        $region78: #{tpu_custom_call.1} parent=11 // pred_check_branch
          %946 = sbr.rel (%p944) target = $region80
        $region79: #{tpu_custom_call.1} parent=11 // pred_region
          %s948 = ssub.s32 256, 256
          %949 = vsyncadd [#allocation33], %s948
          %s950 = sshll.u32 [#allocation32], 4
          %s951 = int_to_ptr.vmem [resolvable:$true] %s950
          %956 = dma.hbm_to_vmem [thread:$0]  %s39, 256, %s951, [#allocation33], 64, 64, 4
        $region80: #{tpu_custom_call.1} parent=11 // pred_fallthru
          _
        // Predicated region
        $region81: #{tpu_custom_call.1} parent=11 // pred_check
          %p957 = pneg %p543
        $region82: #{tpu_custom_call.1} parent=11 // pred_check_branch
          %959 = sbr.rel (%p957) target = $region84
        $region83: #{tpu_custom_call.1} parent=11 // pred_region
          %s961 = ssub.s32 16, 16
          %962 = vsyncadd [#allocation33], %s961
          %s964 = sshll.u32 [#allocation34], 4
          %s965 = int_to_ptr.vmem [resolvable:$true] %s964
          %967 = dma.hbm_to_vmem [thread:$0]  %s41, 16, %s965, [#allocation33]
        $region84: #{tpu_custom_call.1} parent=11 // pred_fallthru
          _
        // Predicated region
        $region85: #{tpu_custom_call.1} parent=11 // pred_check
          %p968 = pneg %p564
        $region86: #{tpu_custom_call.1} parent=11 // pred_check_branch
          %970 = sbr.rel (%p968) target = $region88
        $region87: #{tpu_custom_call.1} parent=11 // pred_region
          %s972 = ssub.s32 512, 512
          %973 = vsyncadd [#allocation36], %s972
          %s974 = sshll.u32 [#allocation35], 4
          %s975 = int_to_ptr.vmem [resolvable:$true] %s974
          %980 = dma.hbm_to_vmem [thread:$0]  %s43, 512, %s975, [#allocation36], 64, 64, 4
        $region88: #{tpu_custom_call.1} parent=11 // pred_fallthru
          _
        // Predicated region
        $region89: #{tpu_custom_call.1} parent=11 // pred_check
          %p981 = pneg %p585
        $region90: #{tpu_custom_call.1} parent=11 // pred_check_branch
          %983 = sbr.rel (%p981) target = $region92
        $region91: #{tpu_custom_call.1} parent=11 // pred_region
          %s985 = ssub.s32 16, 16
          %986 = vsyncadd [#allocation36], %s985
          %s988 = sshll.u32 [#allocation37], 4
          %s989 = int_to_ptr.vmem [resolvable:$true] %s988
          %991 = dma.hbm_to_vmem [thread:$0]  %s45, 16, %s989, [#allocation36]
        $region92: #{tpu_custom_call.1} parent=11 // pred_fallthru
          _
        // Predicated region
        $region93: #{tpu_custom_call.1} parent=11 // pred_check
          %p992 = pneg %p606
        $region94: #{tpu_custom_call.1} parent=11 // pred_check_branch
          %994 = sbr.rel (%p992) target = $region96
        $region95: #{tpu_custom_call.1} parent=11 // pred_region
          %s996 = ssub.s32 16, 16
          %997 = vsyncadd [#allocation39], %s996
          %s999 = sshll.u32 [#allocation38], 4
          %s1000 = int_to_ptr.vmem [resolvable:$true] %s999
          %1002 = dma.hbm_to_vmem [thread:$0]  %s47, 16, %s1000, [#allocation39]
        $region96: #{tpu_custom_call.1} parent=11 // pred_fallthru
          _
        // Predicated region
        $region97: #{tpu_custom_call.1} parent=11 // pred_check
          %p1003 = pneg %p627
        $region98: #{tpu_custom_call.1} parent=11 // pred_check_branch
          %1005 = sbr.rel (%p1003) target = $region100
        $region99: #{tpu_custom_call.1} parent=11 // pred_region
          %s1007 = ssub.s32 16, 16
          %1008 = vsyncadd [#allocation39], %s1007
          %s1010 = sshll.u32 [#allocation40], 4
          %s1011 = int_to_ptr.vmem [resolvable:$true] %s1010
          %1013 = dma.hbm_to_vmem [thread:$0]  %s49, 16, %s1011, [#allocation39]
        $region100: #{tpu_custom_call.1} parent=11 // pred_fallthru
          _
        // Predicated region
        $region101: #{tpu_custom_call.1} parent=11 // pred_check
          %p1014 = pneg %p648
        $region102: #{tpu_custom_call.1} parent=11 // pred_check_branch
          %1016 = sbr.rel (%p1014) target = $region104
        $region103: #{tpu_custom_call.1} parent=11 // pred_region
          %s1018 = ssub.s32 16, 16
          %1019 = vsyncadd [#allocation42], %s1018
          %s1021 = sshll.u32 [#allocation41], 4
          %s1022 = int_to_ptr.vmem [resolvable:$true] %s1021
          %1024 = dma.hbm_to_vmem [thread:$0]  %s51, 16, %s1022, [#allocation42]
        $region104: #{tpu_custom_call.1} parent=11 // pred_fallthru
          _
        // Predicated region
        $region105: #{tpu_custom_call.1} parent=11 // pred_check
          %p1025 = pneg %p669
        $region106: #{tpu_custom_call.1} parent=11 // pred_check_branch
          %1027 = sbr.rel (%p1025) target = $region108
        $region107: #{tpu_custom_call.1} parent=11 // pred_region
          %s1029 = ssub.s32 16, 16
          %1030 = vsyncadd [#allocation42], %s1029
          %s1032 = sshll.u32 [#allocation43], 4
          %s1033 = int_to_ptr.vmem [resolvable:$true] %s1032
          %1035 = dma.hbm_to_vmem [thread:$0]  %s53, 16, %s1033, [#allocation42]
        $region108: #{tpu_custom_call.1} parent=11 // pred_fallthru
          _
        // Predicated region
        $region109: #{tpu_custom_call.1} parent=11 // pred_check
          %p1036 = pneg %p690
        $region110: #{tpu_custom_call.1} parent=11 // pred_check_branch
          %1038 = sbr.rel (%p1036) target = $region112
        $region111: #{tpu_custom_call.1} parent=11 // pred_region
          %s1040 = ssub.s32 16, 16
          %1041 = vsyncadd [#allocation45], %s1040
          %s1043 = sshll.u32 [#allocation44], 4
          %s1044 = int_to_ptr.vmem [resolvable:$true] %s1043
          %1046 = dma.hbm_to_vmem [thread:$0]  %s55, 16, %s1044, [#allocation45]
        $region112: #{tpu_custom_call.1} parent=11 // pred_fallthru
          _
        // Predicated region
        $region113: #{tpu_custom_call.1} parent=11 // pred_check
          %p1047 = pneg %p711
        $region114: #{tpu_custom_call.1} parent=11 // pred_check_branch
          %1049 = sbr.rel (%p1047) target = $region116
        $region115: #{tpu_custom_call.1} parent=11 // pred_region
          %s1051 = ssub.s32 16, 16
          %1052 = vsyncadd [#allocation45], %s1051
          %s1054 = sshll.u32 [#allocation46], 4
          %s1055 = int_to_ptr.vmem [resolvable:$true] %s1054
          %1057 = dma.hbm_to_vmem [thread:$0]  %s57, 16, %s1055, [#allocation45]
        $region116: #{tpu_custom_call.1} parent=11 // pred_fallthru
          _
      $region12: #{tpu_custom_call.1} parent=5 // pred_fallthru
        _
      %p1058 = scmp.lt.s32.totalorder %s87, 2
      // Predicated region
      $region117: #{tpu_custom_call.1} parent=5 // pred_check
        %p1059 = pneg %p1058
      $region118: #{tpu_custom_call.1} parent=5 // pred_check_branch
        %1061 = sbr.rel (%p1059) target = $region120
      $region119: #{tpu_custom_call.1} parent=5 // pred_region
        // Predicated region
        $region121: #{tpu_custom_call.1} parent=119 // pred_check
          %p1062 = pneg %p107
        $region122: #{tpu_custom_call.1} parent=119 // pred_check_branch
          %1064 = sbr.rel (%p1062) target = $region124
        $region123: #{tpu_custom_call.1} parent=119 // pred_region
          %s1065 = sand.u32 %s97, 1
          %s1066 = scalar_lea.sflag [#allocation3], %s1065
          %s1067 = sand.u32 %s97, 1
          %s1068 = smul.addr %s1067, 8
          %s1069 = scalar_lea.vmem [#allocation2], %s1068
          %s1071 = ssub.s32 128, 128
          %1072 = vsyncadd %s1066, %s1071
          %s1073 = smul.addr %s87, 128
          %s1074 = scalar_lea.hbm %s1, %s1073
          %s1076 = sshll.u32 %s1069, 4
          %s1077 = int_to_ptr.vmem [resolvable:$true] %s1076
          %1079 = dma.hbm_to_vmem [thread:$0]  %s1074, 128, %s1077, %s1066
        $region124: #{tpu_custom_call.1} parent=119 // pred_fallthru
          _
        // Predicated region
        $region125: #{tpu_custom_call.1} parent=119 // pred_check
          %p1080 = pneg %p133
        $region126: #{tpu_custom_call.1} parent=119 // pred_check_branch
          %1082 = sbr.rel (%p1080) target = $region128
        $region127: #{tpu_custom_call.1} parent=119 // pred_region
          %s1083 = sand.u32 %s87, 1
          %s1084 = scalar_lea.sflag [#allocation6], %s1083
          %s1085 = sand.u32 %s123, 1
          %s1086 = smul.addr %s1085, 8
          %s1087 = scalar_lea.vmem [#allocation5], %s1086
          %s1089 = ssub.s32 128, 128
          %1090 = vsyncadd %s1084, %s1089
          %s1091 = smul.addr %s87, 128
          %s1092 = scalar_lea.hbm %s3, %s1091
          %s1094 = sshll.u32 %s1087, 4
          %s1095 = int_to_ptr.vmem [resolvable:$true] %s1094
          %1097 = dma.hbm_to_vmem [thread:$0]  %s1092, 128, %s1095, %s1084
        $region128: #{tpu_custom_call.1} parent=119 // pred_fallthru
          _
        // Predicated region
        $region129: #{tpu_custom_call.1} parent=119 // pred_check
          %p1098 = pneg %p159
        $region130: #{tpu_custom_call.1} parent=119 // pred_check_branch
          %1100 = sbr.rel (%p1098) target = $region132
        $region131: #{tpu_custom_call.1} parent=119 // pred_region
          %s1101 = sand.u32 %s87, 1
          %s1102 = scalar_lea.sflag [#allocation6], %s1101
          %s1103 = sand.u32 %s149, 1
          %s1104 = scalar_lea.vmem [#allocation7], %s1103
          %s1106 = ssub.s32 16, 16
          %1107 = vsyncadd %s1102, %s1106
          %s1108 = smul.addr %s87, 16
          %s1109 = scalar_lea.hbm %s5, %s1108
          %s1111 = sshll.u32 %s1104, 4
          %s1112 = int_to_ptr.vmem [resolvable:$true] %s1111
          %1114 = dma.hbm_to_vmem [thread:$0]  %s1109, 16, %s1112, %s1102
        $region132: #{tpu_custom_call.1} parent=119 // pred_fallthru
          _
      $region120: #{tpu_custom_call.1} parent=5 // pred_fallthru
        _
      %p1115 = scmp.le.s32.totalorder 1, %s87
      %p1116 = scmp.lt.s32.totalorder %s87, 3
      %p1117 = pnand %p1115, %p1116
      %p1118 = pneg %p1117
      // Predicated region
      $region133: #{tpu_custom_call.1} parent=5 // pred_check
        _
      $region134: #{tpu_custom_call.1} parent=5 // pred_check_branch
        %1120 = sbr.rel (%p1117) target = $region136
      $region135: #{tpu_custom_call.1} parent=5 // pred_region
        %s1121 = ssub.s32 %s87, 1
        %s1122 = sand.u32 %s100, 1
        %s1123 = scalar_lea.sflag [#allocation3], %s1122
        %s1124 = sand.u32 %s100, 1
        %s1125 = smul.addr %s1124, 8
        %s1126 = scalar_lea.vmem [#allocation2], %s1125
        // Predicated region
        $region137: #{tpu_custom_call.1} parent=135 // pred_check
          %p1127 = pneg %p113
        $region138: #{tpu_custom_call.1} parent=135 // pred_check_branch
          %1129 = sbr.rel (%p1127) target = $region140
        $region139: #{tpu_custom_call.1} parent=135 // pred_region
          %1130 = dma.done %s1123, 128
        $region140: #{tpu_custom_call.1} parent=135 // pred_fallthru
          _
        %s1131 = sand.u32 %s92, 1
        %s1132 = scalar_lea.sflag [#allocation6], %s1131
        %s1133 = sand.u32 %s126, 1
        %s1134 = smul.addr %s1133, 8
        %s1135 = scalar_lea.vmem [#allocation5], %s1134
        // Predicated region
        $region141: #{tpu_custom_call.1} parent=135 // pred_check
          %p1136 = pneg %p139
        $region142: #{tpu_custom_call.1} parent=135 // pred_check_branch
          %1138 = sbr.rel (%p1136) target = $region144
        $region143: #{tpu_custom_call.1} parent=135 // pred_region
          %1139 = dma.done %s1132, 128
        $region144: #{tpu_custom_call.1} parent=135 // pred_fallthru
          _
        %s1140 = sand.u32 %s92, 1
        %s1141 = scalar_lea.sflag [#allocation6], %s1140
        %s1142 = sand.u32 %s152, 1
        %s1143 = scalar_lea.vmem [#allocation7], %s1142
        // Predicated region
        $region145: #{tpu_custom_call.1} parent=135 // pred_check
          %p1144 = pneg %p165
        $region146: #{tpu_custom_call.1} parent=135 // pred_check_branch
          %1146 = sbr.rel (%p1144) target = $region148
        $region147: #{tpu_custom_call.1} parent=135 // pred_region
          %1147 = dma.done %s1141, 16
        $region148: #{tpu_custom_call.1} parent=135 // pred_fallthru
          _
        // Predicated region
        $region149: #{tpu_custom_call.1} parent=135 // pred_check
          %p1148 = pneg %p186
        $region150: #{tpu_custom_call.1} parent=135 // pred_check_branch
          %1150 = sbr.rel (%p1148) target = $region152
        $region151: #{tpu_custom_call.1} parent=135 // pred_region
          %1151 = dma.done [#allocation9], 256
        $region152: #{tpu_custom_call.1} parent=135 // pred_fallthru
          _
        // Predicated region
        $region153: #{tpu_custom_call.1} parent=135 // pred_check
          %p1152 = pneg %p207
        $region154: #{tpu_custom_call.1} parent=135 // pred_check_branch
          %1154 = sbr.rel (%p1152) target = $region156
        $region155: #{tpu_custom_call.1} parent=135 // pred_region
          %1155 = dma.done [#allocation9], 16
        $region156: #{tpu_custom_call.1} parent=135 // pred_fallthru
          _
        // Predicated region
        $region157: #{tpu_custom_call.1} parent=135 // pred_check
          %p1156 = pneg %p228
        $region158: #{tpu_custom_call.1} parent=135 // pred_check_branch
          %1158 = sbr.rel (%p1156) target = $region160
        $region159: #{tpu_custom_call.1} parent=135 // pred_region
          %1159 = dma.done [#allocation12], 256
        $region160: #{tpu_custom_call.1} parent=135 // pred_fallthru
          _
        // Predicated region
        $region161: #{tpu_custom_call.1} parent=135 // pred_check
          %p1160 = pneg %p249
        $region162: #{tpu_custom_call.1} parent=135 // pred_check_branch
          %1162 = sbr.rel (%p1160) target = $region164
        $region163: #{tpu_custom_call.1} parent=135 // pred_region
          %1163 = dma.done [#allocation12], 16
        $region164: #{tpu_custom_call.1} parent=135 // pred_fallthru
          _
        // Predicated region
        $region165: #{tpu_custom_call.1} parent=135 // pred_check
          %p1164 = pneg %p270
        $region166: #{tpu_custom_call.1} parent=135 // pred_check_branch
          %1166 = sbr.rel (%p1164) target = $region168
        $region167: #{tpu_custom_call.1} parent=135 // pred_region
          %1167 = dma.done [#allocation15], 256
        $region168: #{tpu_custom_call.1} parent=135 // pred_fallthru
          _
        // Predicated region
        $region169: #{tpu_custom_call.1} parent=135 // pred_check
          %p1168 = pneg %p291
        $region170: #{tpu_custom_call.1} parent=135 // pred_check_branch
          %1170 = sbr.rel (%p1168) target = $region172
        $region171: #{tpu_custom_call.1} parent=135 // pred_region
          %1171 = dma.done [#allocation15], 16
        $region172: #{tpu_custom_call.1} parent=135 // pred_fallthru
          _
        // Predicated region
        $region173: #{tpu_custom_call.1} parent=135 // pred_check
          %p1172 = pneg %p312
        $region174: #{tpu_custom_call.1} parent=135 // pred_check_branch
          %1174 = sbr.rel (%p1172) target = $region176
        $region175: #{tpu_custom_call.1} parent=135 // pred_region
          %1175 = dma.done [#allocation18], 256
        $region176: #{tpu_custom_call.1} parent=135 // pred_fallthru
          _
        // Predicated region
        $region177: #{tpu_custom_call.1} parent=135 // pred_check
          %p1176 = pneg %p333
        $region178: #{tpu_custom_call.1} parent=135 // pred_check_branch
          %1178 = sbr.rel (%p1176) target = $region180
        $region179: #{tpu_custom_call.1} parent=135 // pred_region
          %1179 = dma.done [#allocation18], 16
        $region180: #{tpu_custom_call.1} parent=135 // pred_fallthru
          _
        // Predicated region
        $region181: #{tpu_custom_call.1} parent=135 // pred_check
          %p1180 = pneg %p354
        $region182: #{tpu_custom_call.1} parent=135 // pred_check_branch
          %1182 = sbr.rel (%p1180) target = $region184
        $region183: #{tpu_custom_call.1} parent=135 // pred_region
          %1183 = dma.done [#allocation21], 256
        $region184: #{tpu_custom_call.1} parent=135 // pred_fallthru
          _
        // Predicated region
        $region185: #{tpu_custom_call.1} parent=135 // pred_check
          %p1184 = pneg %p375
        $region186: #{tpu_custom_call.1} parent=135 // pred_check_branch
          %1186 = sbr.rel (%p1184) target = $region188
        $region187: #{tpu_custom_call.1} parent=135 // pred_region
          %1187 = dma.done [#allocation21], 16
        $region188: #{tpu_custom_call.1} parent=135 // pred_fallthru
          _
        // Predicated region
        $region189: #{tpu_custom_call.1} parent=135 // pred_check
          %p1188 = pneg %p396
        $region190: #{tpu_custom_call.1} parent=135 // pred_check_branch
          %1190 = sbr.rel (%p1188) target = $region192
        $region191: #{tpu_custom_call.1} parent=135 // pred_region
          %1191 = dma.done [#allocation24], 256
        $region192: #{tpu_custom_call.1} parent=135 // pred_fallthru
          _
        // Predicated region
        $region193: #{tpu_custom_call.1} parent=135 // pred_check
          %p1192 = pneg %p417
        $region194: #{tpu_custom_call.1} parent=135 // pred_check_branch
          %1194 = sbr.rel (%p1192) target = $region196
        $region195: #{tpu_custom_call.1} parent=135 // pred_region
          %1195 = dma.done [#allocation24], 16
        $region196: #{tpu_custom_call.1} parent=135 // pred_fallthru
          _
        // Predicated region
        $region197: #{tpu_custom_call.1} parent=135 // pred_check
          %p1196 = pneg %p438
        $region198: #{tpu_custom_call.1} parent=135 // pred_check_branch
          %1198 = sbr.rel (%p1196) target = $region200
        $region199: #{tpu_custom_call.1} parent=135 // pred_region
          %1199 = dma.done [#allocation27], 256
        $region200: #{tpu_custom_call.1} parent=135 // pred_fallthru
          _
        // Predicated region
        $region201: #{tpu_custom_call.1} parent=135 // pred_check
          %p1200 = pneg %p459
        $region202: #{tpu_custom_call.1} parent=135 // pred_check_branch
          %1202 = sbr.rel (%p1200) target = $region204
        $region203: #{tpu_custom_call.1} parent=135 // pred_region
          %1203 = dma.done [#allocation27], 16
        $region204: #{tpu_custom_call.1} parent=135 // pred_fallthru
          _
        // Predicated region
        $region205: #{tpu_custom_call.1} parent=135 // pred_check
          %p1204 = pneg %p480
        $region206: #{tpu_custom_call.1} parent=135 // pred_check_branch
          %1206 = sbr.rel (%p1204) target = $region208
        $region207: #{tpu_custom_call.1} parent=135 // pred_region
          %1207 = dma.done [#allocation30], 256
        $region208: #{tpu_custom_call.1} parent=135 // pred_fallthru
          _
        // Predicated region
        $region209: #{tpu_custom_call.1} parent=135 // pred_check
          %p1208 = pneg %p501
        $region210: #{tpu_custom_call.1} parent=135 // pred_check_branch
          %1210 = sbr.rel (%p1208) target = $region212
        $region211: #{tpu_custom_call.1} parent=135 // pred_region
          %1211 = dma.done [#allocation30], 16
        $region212: #{tpu_custom_call.1} parent=135 // pred_fallthru
          _
        // Predicated region
        $region213: #{tpu_custom_call.1} parent=135 // pred_check
          %p1212 = pneg %p522
        $region214: #{tpu_custom_call.1} parent=135 // pred_check_branch
          %1214 = sbr.rel (%p1212) target = $region216
        $region215: #{tpu_custom_call.1} parent=135 // pred_region
          %1215 = dma.done [#allocation33], 256
        $region216: #{tpu_custom_call.1} parent=135 // pred_fallthru
          _
        // Predicated region
        $region217: #{tpu_custom_call.1} parent=135 // pred_check
          %p1216 = pneg %p543
        $region218: #{tpu_custom_call.1} parent=135 // pred_check_branch
          %1218 = sbr.rel (%p1216) target = $region220
        $region219: #{tpu_custom_call.1} parent=135 // pred_region
          %1219 = dma.done [#allocation33], 16
        $region220: #{tpu_custom_call.1} parent=135 // pred_fallthru
          _
        // Predicated region
        $region221: #{tpu_custom_call.1} parent=135 // pred_check
          %p1220 = pneg %p564
        $region222: #{tpu_custom_call.1} parent=135 // pred_check_branch
          %1222 = sbr.rel (%p1220) target = $region224
        $region223: #{tpu_custom_call.1} parent=135 // pred_region
          %1223 = dma.done [#allocation36], 512
        $region224: #{tpu_custom_call.1} parent=135 // pred_fallthru
          _
        // Predicated region
        $region225: #{tpu_custom_call.1} parent=135 // pred_check
          %p1224 = pneg %p585
        $region226: #{tpu_custom_call.1} parent=135 // pred_check_branch
          %1226 = sbr.rel (%p1224) target = $region228
        $region227: #{tpu_custom_call.1} parent=135 // pred_region
          %1227 = dma.done [#allocation36], 16
        $region228: #{tpu_custom_call.1} parent=135 // pred_fallthru
          _
        // Predicated region
        $region229: #{tpu_custom_call.1} parent=135 // pred_check
          %p1228 = pneg %p606
        $region230: #{tpu_custom_call.1} parent=135 // pred_check_branch
          %1230 = sbr.rel (%p1228) target = $region232
        $region231: #{tpu_custom_call.1} parent=135 // pred_region
          %1231 = dma.done [#allocation39], 16
        $region232: #{tpu_custom_call.1} parent=135 // pred_fallthru
          _
        // Predicated region
        $region233: #{tpu_custom_call.1} parent=135 // pred_check
          %p1232 = pneg %p627
        $region234: #{tpu_custom_call.1} parent=135 // pred_check_branch
          %1234 = sbr.rel (%p1232) target = $region236
        $region235: #{tpu_custom_call.1} parent=135 // pred_region
          %1235 = dma.done [#allocation39], 16
        $region236: #{tpu_custom_call.1} parent=135 // pred_fallthru
          _
        // Predicated region
        $region237: #{tpu_custom_call.1} parent=135 // pred_check
          %p1236 = pneg %p648
        $region238: #{tpu_custom_call.1} parent=135 // pred_check_branch
          %1238 = sbr.rel (%p1236) target = $region240
        $region239: #{tpu_custom_call.1} parent=135 // pred_region
          %1239 = dma.done [#allocation42], 16
        $region240: #{tpu_custom_call.1} parent=135 // pred_fallthru
          _
        // Predicated region
        $region241: #{tpu_custom_call.1} parent=135 // pred_check
          %p1240 = pneg %p669
        $region242: #{tpu_custom_call.1} parent=135 // pred_check_branch
          %1242 = sbr.rel (%p1240) target = $region244
        $region243: #{tpu_custom_call.1} parent=135 // pred_region
          %1243 = dma.done [#allocation42], 16
        $region244: #{tpu_custom_call.1} parent=135 // pred_fallthru
          _
        // Predicated region
        $region245: #{tpu_custom_call.1} parent=135 // pred_check
          %p1244 = pneg %p690
        $region246: #{tpu_custom_call.1} parent=135 // pred_check_branch
          %1246 = sbr.rel (%p1244) target = $region248
        $region247: #{tpu_custom_call.1} parent=135 // pred_region
          %1247 = dma.done [#allocation45], 16
        $region248: #{tpu_custom_call.1} parent=135 // pred_fallthru
          _
        // Predicated region
        $region249: #{tpu_custom_call.1} parent=135 // pred_check
          %p1248 = pneg %p711
        $region250: #{tpu_custom_call.1} parent=135 // pred_check_branch
          %1250 = sbr.rel (%p1248) target = $region252
        $region251: #{tpu_custom_call.1} parent=135 // pred_region
          %1251 = dma.done [#allocation45], 16
        $region252: #{tpu_custom_call.1} parent=135 // pred_fallthru
          _
        %s1252 = sand.u32 %s100, 1
        %s1253 = scalar_lea.sflag [#allocation3], %s1252
        %s1254 = sand.u32 %s100, 1
        %s1255 = smul.addr %s1254, 8
        %s1256 = scalar_lea.vmem [#allocation2], %s1255
        %p1257 = pneg %p113
        %p1258 = pneg %p110
        %s1259 = sand.u32 %s92, 1
        %s1260 = scalar_lea.sflag [#allocation6], %s1259
        %s1261 = sand.u32 %s126, 1
        %s1262 = smul.addr %s1261, 8
        %s1263 = scalar_lea.vmem [#allocation5], %s1262
        %p1264 = pneg %p139
        %p1265 = pneg %p136
        %s1266 = sand.u32 %s92, 1
        %s1267 = scalar_lea.sflag [#allocation6], %s1266
        %s1268 = sand.u32 %s152, 1
        %s1269 = scalar_lea.vmem [#allocation7], %s1268
        %p1270 = pneg %p165
        %p1271 = pneg %p162
        %p1272 = pneg %p186
        %p1273 = pneg %p183
        %p1274 = pneg %p207
        %p1275 = pneg %p204
        %p1276 = pneg %p228
        %p1277 = pneg %p225
        %p1278 = pneg %p249
        %p1279 = pneg %p246
        %p1280 = pneg %p270
        %p1281 = pneg %p267
        %p1282 = pneg %p291
        %p1283 = pneg %p288
        %p1284 = pneg %p312
        %p1285 = pneg %p309
        %p1286 = pneg %p333
        %p1287 = pneg %p330
        %p1288 = pneg %p354
        %p1289 = pneg %p351
        %p1290 = pneg %p375
        %p1291 = pneg %p372
        %p1292 = pneg %p396
        %p1293 = pneg %p393
        %p1294 = pneg %p417
        %p1295 = pneg %p414
        %p1296 = pneg %p438
        %p1297 = pneg %p435
        %p1298 = pneg %p459
        %p1299 = pneg %p456
        %p1300 = pneg %p480
        %p1301 = pneg %p477
        %p1302 = pneg %p501
        %p1303 = pneg %p498
        %p1304 = pneg %p522
        %p1305 = pneg %p519
        %p1306 = pneg %p543
        %p1307 = pneg %p540
        %p1308 = pneg %p564
        %p1309 = pneg %p561
        %p1310 = pneg %p585
        %p1311 = pneg %p582
        %p1312 = pneg %p606
        %p1313 = pneg %p603
        %p1314 = pneg %p627
        %p1315 = pneg %p624
        %p1316 = pneg %p648
        %p1317 = pneg %p645
        %p1318 = pneg %p669
        %p1319 = pneg %p666
        %p1320 = pneg %p690
        %p1321 = pneg %p687
        %p1322 = pneg %p711
        %p1323 = pneg %p708
        %p1324 = pneg %p737
        %p1325 = pneg %p734
        %s1326 = sand.u32 %s724, 1
        %s1327 = scalar_lea.sflag [#allocation4], %s1326
        %s1328 = sand.u32 %s724, 1
        %s1329 = smul.addr %s1328, 8
        %s1330 = scalar_lea.vmem [#allocation47], %s1329
        %v1332 = vld [vmem:[%s1126] sm:$0xff]
        %v1333 = vld [vmem:[%s1135] sm:$0xff]
        %v1334 = vlaneseq
        %v1335 = vshrl.u32 %v1334, 7
        %v1336 = vlaneseq
        %v1337 = vand.u32 %v1336, 127
        %vm1338 = vcmp.ge.s32.totalorder %v1335, %v1337
        %v1339 = vsel %vm1338, 0.0, -1e+09
        %v1340 = vld [vmem:[%s1143] sm:$0x1]
        %vm1341 = vcmp.ne.s32.totalorder %v1340, 0
        %v1342 = vsel %vm1341, 0.0, -1e+09
        %v1343 = vpack.c.bf16 %v1332, %v1332
        %v1344 = vld [vmem:[#allocation8] sm:$0xf]
        %v1345 = vld [vmem:[#allocation8 + $0x4] sm:$0xf]
        %v1346 = vld [vmem:[#allocation8 + $0x8] sm:$0xf]
        %v1347 = vld [vmem:[#allocation8 + $0xc] sm:$0xf]
        %v1348 = vld [vmem:[#allocation10] sm:$0x1]
        %v1350 = vlaneseq
        %v1351 = vshrl.u32 %v1350, 7
        %v1352 = vsub.s32 0, %v1351
        %v1353 = vrot.slane %v1348, %v1352
        %v1359 = vunpack.c.l.b16 %v1344
        %v1360 = vunpack.c.l.b16 %v1345
        %v1361 = vunpack.c.l.b16 %v1346
        %v1362 = vunpack.c.l.b16 %v1347
        %v1363 = vpack.c.b16 %v1360, %v1359
        %v1364 = vpack.c.b16 %v1362, %v1361
        %vm1367 = vcmask 261120
        %v1369 = vsel %vm1367, %v1343, 0
        %1371 = vmatprep.subr.bf16.mxu0 0
        %1372 = vmatpush1.bf16.msra.mxu0 %v1363
        %1373 = vmatprep.subr.bf16.mxu0 0
        %1374 = vmatpush1.bf16.msra.mxu0 %v1364
        %1375 = vmatprep.subr.bf16.mxu0 0
        %1376 = vmatpush1.bf16.msra.mxu0 0
        %1377 = vmatprep.subr.bf16.mxu0 0
        %1378 = vmatpush1.bf16.msra.mxu0 0
        %1379 = vmatprep.subr.bf16.mxu0 0
        %1380 = vmatpush1.bf16.msra.mxu0 0
        %1381 = vmatprep.subr.bf16.mxu0 0
        %1382 = vmatpush1.bf16.msra.mxu0 0
        %1383 = vmatprep.subr.bf16.mxu0 0
        %1384 = vmatpush1.bf16.msra.mxu0 0
        %1385 = vmatprep.subr.bf16.mxu0 0
        %1386 = vmatpush1.bf16.msra.mxu0 0
        %1387 = vmatprep.subr.bf16.mxu0 0
        %1388 = vmatpush1.bf16.msra.mxu0 0
        %1389 = vmatprep.subr.bf16.mxu0 0
        %1390 = vmatpush1.bf16.msra.mxu0 0
        %1391 = vmatprep.subr.bf16.mxu0 0
        %1392 = vmatpush1.bf16.msra.mxu0 0
        %1393 = vmatprep.subr.bf16.mxu0 0
        %1394 = vmatpush1.bf16.msra.mxu0 0
        %1395 = vmatprep.subr.bf16.mxu0 0
        %1396 = vmatpush1.bf16.msra.mxu0 0
        %1397 = vmatprep.subr.bf16.mxu0 0
        %1398 = vmatpush1.bf16.msra.mxu0 0
        %1399 = vmatprep.subr.bf16.mxu0 0
        %1400 = vmatpush1.bf16.msra.mxu0 0
        %1401 = vmatprep.subr.bf16.mxu0 0
        %1402 = vmatpush1.bf16.msra.mxu0 0
        %1403 = vmatprep.mubr.bf16.mxu0 0
        %1404 = vmatmul.mubr.bf16.gmra.mrb[0].mxu0 %v1369
        %v1405 = vpop.f32.mrb[0].mxu0
        %v1406 = vadd.f32 %v1353, %v1405
        %v1407 = vpop.f32.mrb[0].mxu0
        %v1408 = vpop.f32.mrb[0].mxu0
        %v1409 = vpop.f32.mrb[0].mxu0
        %1410 = vdwg.mxu0
        %v1411 = vld [vmem:[#allocation11] sm:$0xf]
        %v1412 = vld [vmem:[#allocation11 + $0x4] sm:$0xf]
        %v1413 = vld [vmem:[#allocation11 + $0x8] sm:$0xf]
        %v1414 = vld [vmem:[#allocation11 + $0xc] sm:$0xf]
        %v1415 = vld [vmem:[#allocation13] sm:$0x1]
        %v1417 = vlaneseq
        %v1418 = vshrl.u32 %v1417, 7
        %v1419 = vsub.s32 0, %v1418
        %v1420 = vrot.slane %v1415, %v1419
        %v1426 = vunpack.c.l.b16 %v1411
        %v1427 = vunpack.c.l.b16 %v1412
        %v1428 = vunpack.c.l.b16 %v1413
        %v1429 = vunpack.c.l.b16 %v1414
        %v1430 = vpack.c.b16 %v1427, %v1426
        %v1431 = vpack.c.b16 %v1429, %v1428
        %1434 = vmatprep.subr.bf16.mxu0 0
        %1435 = vmatpush1.bf16.msra.mxu0 %v1430
        %1436 = vmatprep.subr.bf16.mxu0 0
        %1437 = vmatpush1.bf16.msra.mxu0 %v1431
        %1438 = vmatprep.subr.bf16.mxu0 0
        %1439 = vmatpush1.bf16.msra.mxu0 0
        %1440 = vmatprep.subr.bf16.mxu0 0
        %1441 = vmatpush1.bf16.msra.mxu0 0
        %1442 = vmatprep.subr.bf16.mxu0 0
        %1443 = vmatpush1.bf16.msra.mxu0 0
        %1444 = vmatprep.subr.bf16.mxu0 0
        %1445 = vmatpush1.bf16.msra.mxu0 0
        %1446 = vmatprep.subr.bf16.mxu0 0
        %1447 = vmatpush1.bf16.msra.mxu0 0
        %1448 = vmatprep.subr.bf16.mxu0 0
        %1449 = vmatpush1.bf16.msra.mxu0 0
        %1450 = vmatprep.subr.bf16.mxu0 0
        %1451 = vmatpush1.bf16.msra.mxu0 0
        %1452 = vmatprep.subr.bf16.mxu0 0
        %1453 = vmatpush1.bf16.msra.mxu0 0
        %1454 = vmatprep.subr.bf16.mxu0 0
        %1455 = vmatpush1.bf16.msra.mxu0 0
        %1456 = vmatprep.subr.bf16.mxu0 0
        %1457 = vmatpush1.bf16.msra.mxu0 0
        %1458 = vmatprep.subr.bf16.mxu0 0
        %1459 = vmatpush1.bf16.msra.mxu0 0
        %1460 = vmatprep.subr.bf16.mxu0 0
        %1461 = vmatpush1.bf16.msra.mxu0 0
        %1462 = vmatprep.subr.bf16.mxu0 0
        %1463 = vmatpush1.bf16.msra.mxu0 0
        %1464 = vmatprep.subr.bf16.mxu0 0
        %1465 = vmatpush1.bf16.msra.mxu0 0
        %1466 = vmatprep.mubr.bf16.mxu0 0
        %1467 = vmatmul.mubr.bf16.gmra.mrb[0].mxu0 %v1369
        %v1468 = vpop.f32.mrb[0].mxu0
        %v1469 = vadd.f32 %v1420, %v1468
        %v1470 = vpop.f32.mrb[0].mxu0
        %v1471 = vpop.f32.mrb[0].mxu0
        %v1472 = vpop.f32.mrb[0].mxu0
        %1473 = vdwg.mxu0
        %v1474 = vld [vmem:[#allocation14] sm:$0xf]
        %v1475 = vld [vmem:[#allocation14 + $0x4] sm:$0xf]
        %v1476 = vld [vmem:[#allocation14 + $0x8] sm:$0xf]
        %v1477 = vld [vmem:[#allocation14 + $0xc] sm:$0xf]
        %v1478 = vld [vmem:[#allocation16] sm:$0x1]
        %v1480 = vlaneseq
        %v1481 = vshrl.u32 %v1480, 7
        %v1482 = vsub.s32 0, %v1481
        %v1483 = vrot.slane %v1478, %v1482
        %v1489 = vunpack.c.l.b16 %v1474
        %v1490 = vunpack.c.l.b16 %v1475
        %v1491 = vunpack.c.l.b16 %v1476
        %v1492 = vunpack.c.l.b16 %v1477
        %v1493 = vpack.c.b16 %v1490, %v1489
        %v1494 = vpack.c.b16 %v1492, %v1491
        %1497 = vmatprep.subr.bf16.mxu0 0
        %1498 = vmatpush1.bf16.msra.mxu0 %v1493
        %1499 = vmatprep.subr.bf16.mxu0 0
        %1500 = vmatpush1.bf16.msra.mxu0 %v1494
        %1501 = vmatprep.subr.bf16.mxu0 0
        %1502 = vmatpush1.bf16.msra.mxu0 0
        %1503 = vmatprep.subr.bf16.mxu0 0
        %1504 = vmatpush1.bf16.msra.mxu0 0
        %1505 = vmatprep.subr.bf16.mxu0 0
        %1506 = vmatpush1.bf16.msra.mxu0 0
        %1507 = vmatprep.subr.bf16.mxu0 0
        %1508 = vmatpush1.bf16.msra.mxu0 0
        %1509 = vmatprep.subr.bf16.mxu0 0
        %1510 = vmatpush1.bf16.msra.mxu0 0
        %1511 = vmatprep.subr.bf16.mxu0 0
        %1512 = vmatpush1.bf16.msra.mxu0 0
        %1513 = vmatprep.subr.bf16.mxu0 0
        %1514 = vmatpush1.bf16.msra.mxu0 0
        %1515 = vmatprep.subr.bf16.mxu0 0
        %1516 = vmatpush1.bf16.msra.mxu0 0
        %1517 = vmatprep.subr.bf16.mxu0 0
        %1518 = vmatpush1.bf16.msra.mxu0 0
        %1519 = vmatprep.subr.bf16.mxu0 0
        %1520 = vmatpush1.bf16.msra.mxu0 0
        %1521 = vmatprep.subr.bf16.mxu0 0
        %1522 = vmatpush1.bf16.msra.mxu0 0
        %1523 = vmatprep.subr.bf16.mxu0 0
        %1524 = vmatpush1.bf16.msra.mxu0 0
        %1525 = vmatprep.subr.bf16.mxu0 0
        %1526 = vmatpush1.bf16.msra.mxu0 0
        %1527 = vmatprep.subr.bf16.mxu0 0
        %1528 = vmatpush1.bf16.msra.mxu0 0
        %1529 = vmatprep.mubr.bf16.mxu0 0
        %1530 = vmatmul.mubr.bf16.gmra.mrb[0].mxu0 %v1369
        %v1531 = vpop.f32.mrb[0].mxu0
        %v1532 = vadd.f32 %v1483, %v1531
        %v1533 = vpop.f32.mrb[0].mxu0
        %v1534 = vpop.f32.mrb[0].mxu0
        %v1535 = vpop.f32.mrb[0].mxu0
        %1536 = vdwg.mxu0
        %1538 = vrot.lane.b32.xlu0 %v1406, 120
        %v1539 = vpop.permute.xlu0 %1538
        %1541 = vrot.lane.b32.xlu0 %v1406, 112
        %v1542 = vpop.permute.xlu0 %1541
        %1544 = vrot.lane.b32.xlu0 %v1406, 104
        %v1545 = vpop.permute.xlu0 %1544
        %v1547 = vcombine.low %v1406, %v1542
        %v1548 = vcombine.high %v1406, %v1542
        %v1550 = vunpack.c.l.s4 1983009808
        %v1551 = vunpack.c.0.s8 %v1550
        %v1552 = vlaneseq
        %v1553 = vshrl.u32 %v1552, 7
        %v1554 = vsub.s32 %v1551, %v1553
        %v1555 = vrot.slane %v1547, %v1554
        %v1557 = vunpack.c.l.s4 1983009808
        %v1558 = vunpack.c.0.s8 %v1557
        %v1559 = vlaneseq
        %v1560 = vshrl.u32 %v1559, 7
        %v1561 = vsub.s32 %v1558, %v1560
        %v1562 = vrot.slane %v1548, %v1561
        %v1563 = vcombine.low %v1539, %v1545
        %v1564 = vcombine.high %v1539, %v1545
        %v1566 = vunpack.c.l.s4 1983009808
        %v1567 = vunpack.c.0.s8 %v1566
        %v1568 = vlaneseq
        %v1569 = vshrl.u32 %v1568, 7
        %v1570 = vsub.s32 %v1567, %v1569
        %v1571 = vrot.slane %v1563, %v1570
        %v1573 = vunpack.c.l.s4 1983009808
        %v1574 = vunpack.c.0.s8 %v1573
        %v1575 = vlaneseq
        %v1576 = vshrl.u32 %v1575, 7
        %v1577 = vsub.s32 %v1574, %v1576
        %v1578 = vrot.slane %v1564, %v1577
        %v1579 = vcombine.low %v1555, %v1571
        %v1580 = vcombine.high %v1555, %v1571
        %v1582 = vunpack.c.l.s4 1934713408
        %v1583 = vunpack.c.0.s8 %v1582
        %v1584 = vlaneseq
        %v1585 = vshrl.u32 %v1584, 7
        %v1586 = vsub.s32 %v1583, %v1585
        %v1587 = vrot.slane %v1579, %v1586
        %v1589 = vunpack.c.l.s4 1934713408
        %v1590 = vunpack.c.0.s8 %v1589
        %v1591 = vlaneseq
        %v1592 = vshrl.u32 %v1591, 7
        %v1593 = vsub.s32 %v1590, %v1592
        %v1594 = vrot.slane %v1580, %v1593
        %v1595 = vcombine.low %v1562, %v1578
        %v1596 = vcombine.high %v1562, %v1578
        %v1598 = vunpack.c.l.s4 1934713408
        %v1599 = vunpack.c.0.s8 %v1598
        %v1600 = vlaneseq
        %v1601 = vshrl.u32 %v1600, 7
        %v1602 = vsub.s32 %v1599, %v1601
        %v1603 = vrot.slane %v1595, %v1602
        %v1605 = vunpack.c.l.s4 1934713408
        %v1606 = vunpack.c.0.s8 %v1605
        %v1607 = vlaneseq
        %v1608 = vshrl.u32 %v1607, 7
        %v1609 = vsub.s32 %v1606, %v1608
        %v1610 = vrot.slane %v1596, %v1609
        %v1611 = vcombine.high %v1587, 0.0
        %v1612 = vcombine.high %v1594, 0.0
        %v1613 = vcombine.high %v1603, 0.0
        %v1614 = vcombine.high %v1610, 0.0
        %v1615 = vcombine.low %v1587, %v1594
        %v1617 = vunpack.c.l.s4 1983009808
        %v1618 = vunpack.c.0.s8 %v1617
        %v1619 = vlaneseq
        %v1620 = vshrl.u32 %v1619, 7
        %v1621 = vsub.s32 %v1618, %v1620
        %v1622 = vrot.slane %v1615, %v1621
        %v1623 = vcombine.low %v1611, %v1612
        %v1625 = vunpack.c.l.s4 1983009808
        %v1626 = vunpack.c.0.s8 %v1625
        %v1627 = vlaneseq
        %v1628 = vshrl.u32 %v1627, 7
        %v1629 = vsub.s32 %v1626, %v1628
        %v1630 = vrot.slane %v1623, %v1629
        %v1631 = vcombine.low %v1603, %v1610
        %v1633 = vunpack.c.l.s4 1983009808
        %v1634 = vunpack.c.0.s8 %v1633
        %v1635 = vlaneseq
        %v1636 = vshrl.u32 %v1635, 7
        %v1637 = vsub.s32 %v1634, %v1636
        %v1638 = vrot.slane %v1631, %v1637
        %v1639 = vcombine.low %v1613, %v1614
        %v1641 = vunpack.c.l.s4 1983009808
        %v1642 = vunpack.c.0.s8 %v1641
        %v1643 = vlaneseq
        %v1644 = vshrl.u32 %v1643, 7
        %v1645 = vsub.s32 %v1642, %v1644
        %v1646 = vrot.slane %v1639, %v1645
        %v1647 = vcombine.low %v1622, %v1630
        %v1648 = vcombine.high %v1622, %v1630
        %v1650 = vunpack.c.l.s4 1934713408
        %v1651 = vunpack.c.0.s8 %v1650
        %v1652 = vlaneseq
        %v1653 = vshrl.u32 %v1652, 7
        %v1654 = vsub.s32 %v1651, %v1653
        %v1655 = vrot.slane %v1647, %v1654
        %v1657 = vunpack.c.l.s4 1934713408
        %v1658 = vunpack.c.0.s8 %v1657
        %v1659 = vlaneseq
        %v1660 = vshrl.u32 %v1659, 7
        %v1661 = vsub.s32 %v1658, %v1660
        %v1662 = vrot.slane %v1648, %v1661
        %v1663 = vcombine.low %v1638, %v1646
        %v1664 = vcombine.high %v1638, %v1646
        %v1666 = vunpack.c.l.s4 1934713408
        %v1667 = vunpack.c.0.s8 %v1666
        %v1668 = vlaneseq
        %v1669 = vshrl.u32 %v1668, 7
        %v1670 = vsub.s32 %v1667, %v1669
        %v1671 = vrot.slane %v1663, %v1670
        %v1673 = vunpack.c.l.s4 1934713408
        %v1674 = vunpack.c.0.s8 %v1673
        %v1675 = vlaneseq
        %v1676 = vshrl.u32 %v1675, 7
        %v1677 = vsub.s32 %v1674, %v1676
        %v1678 = vrot.slane %v1664, %v1677
        %v1679 = vcombine.low %v1655, %v1671
        %v1680 = vcombine.high %v1655, %v1671
        %v1681 = vcombine.low %v1662, %v1678
        %v1682 = vcombine.high %v1662, %v1678
        %v1683 = vpack.c.bf16 %v1679, %v1679
        %v1684 = vpack.c.bf16 %v1680, %v1680
        %v1685 = vpack.c.bf16 %v1681, %v1681
        %v1686 = vpack.c.bf16 %v1682, %v1682
        %1688 = vrot.lane.b32.xlu0 %v1469, 120
        %v1689 = vpop.permute.xlu0 %1688
        %1691 = vrot.lane.b32.xlu0 %v1469, 112
        %v1692 = vpop.permute.xlu0 %1691
        %1694 = vrot.lane.b32.xlu0 %v1469, 104
        %v1695 = vpop.permute.xlu0 %1694
        %v1697 = vcombine.low %v1469, %v1692
        %v1698 = vcombine.high %v1469, %v1692
        %v1700 = vunpack.c.l.s4 1983009808
        %v1701 = vunpack.c.0.s8 %v1700
        %v1702 = vlaneseq
        %v1703 = vshrl.u32 %v1702, 7
        %v1704 = vsub.s32 %v1701, %v1703
        %v1705 = vrot.slane %v1697, %v1704
        %v1707 = vunpack.c.l.s4 1983009808
        %v1708 = vunpack.c.0.s8 %v1707
        %v1709 = vlaneseq
        %v1710 = vshrl.u32 %v1709, 7
        %v1711 = vsub.s32 %v1708, %v1710
        %v1712 = vrot.slane %v1698, %v1711
        %v1713 = vcombine.low %v1689, %v1695
        %v1714 = vcombine.high %v1689, %v1695
        %v1716 = vunpack.c.l.s4 1983009808
        %v1717 = vunpack.c.0.s8 %v1716
        %v1718 = vlaneseq
        %v1719 = vshrl.u32 %v1718, 7
        %v1720 = vsub.s32 %v1717, %v1719
        %v1721 = vrot.slane %v1713, %v1720
        %v1723 = vunpack.c.l.s4 1983009808
        %v1724 = vunpack.c.0.s8 %v1723
        %v1725 = vlaneseq
        %v1726 = vshrl.u32 %v1725, 7
        %v1727 = vsub.s32 %v1724, %v1726
        %v1728 = vrot.slane %v1714, %v1727
        %v1729 = vcombine.low %v1705, %v1721
        %v1730 = vcombine.high %v1705, %v1721
        %v1732 = vunpack.c.l.s4 1934713408
        %v1733 = vunpack.c.0.s8 %v1732
        %v1734 = vlaneseq
        %v1735 = vshrl.u32 %v1734, 7
        %v1736 = vsub.s32 %v1733, %v1735
        %v1737 = vrot.slane %v1729, %v1736
        %v1739 = vunpack.c.l.s4 1934713408
        %v1740 = vunpack.c.0.s8 %v1739
        %v1741 = vlaneseq
        %v1742 = vshrl.u32 %v1741, 7
        %v1743 = vsub.s32 %v1740, %v1742
        %v1744 = vrot.slane %v1730, %v1743
        %v1745 = vcombine.low %v1712, %v1728
        %v1746 = vcombine.high %v1712, %v1728
        %v1748 = vunpack.c.l.s4 1934713408
        %v1749 = vunpack.c.0.s8 %v1748
        %v1750 = vlaneseq
        %v1751 = vshrl.u32 %v1750, 7
        %v1752 = vsub.s32 %v1749, %v1751
        %v1753 = vrot.slane %v1745, %v1752
        %v1755 = vunpack.c.l.s4 1934713408
        %v1756 = vunpack.c.0.s8 %v1755
        %v1757 = vlaneseq
        %v1758 = vshrl.u32 %v1757, 7
        %v1759 = vsub.s32 %v1756, %v1758
        %v1760 = vrot.slane %v1746, %v1759
        %v1761 = vcombine.high %v1737, 0.0
        %v1762 = vcombine.high %v1744, 0.0
        %v1763 = vcombine.high %v1753, 0.0
        %v1764 = vcombine.high %v1760, 0.0
        %v1765 = vcombine.low %v1737, %v1744
        %v1767 = vunpack.c.l.s4 1983009808
        %v1768 = vunpack.c.0.s8 %v1767
        %v1769 = vlaneseq
        %v1770 = vshrl.u32 %v1769, 7
        %v1771 = vsub.s32 %v1768, %v1770
        %v1772 = vrot.slane %v1765, %v1771
        %v1773 = vcombine.low %v1761, %v1762
        %v1775 = vunpack.c.l.s4 1983009808
        %v1776 = vunpack.c.0.s8 %v1775
        %v1777 = vlaneseq
        %v1778 = vshrl.u32 %v1777, 7
        %v1779 = vsub.s32 %v1776, %v1778
        %v1780 = vrot.slane %v1773, %v1779
        %v1781 = vcombine.low %v1753, %v1760
        %v1783 = vunpack.c.l.s4 1983009808
        %v1784 = vunpack.c.0.s8 %v1783
        %v1785 = vlaneseq
        %v1786 = vshrl.u32 %v1785, 7
        %v1787 = vsub.s32 %v1784, %v1786
        %v1788 = vrot.slane %v1781, %v1787
        %v1789 = vcombine.low %v1763, %v1764
        %v1791 = vunpack.c.l.s4 1983009808
        %v1792 = vunpack.c.0.s8 %v1791
        %v1793 = vlaneseq
        %v1794 = vshrl.u32 %v1793, 7
        %v1795 = vsub.s32 %v1792, %v1794
        %v1796 = vrot.slane %v1789, %v1795
        %v1797 = vcombine.low %v1772, %v1780
        %v1798 = vcombine.high %v1772, %v1780
        %v1800 = vunpack.c.l.s4 1934713408
        %v1801 = vunpack.c.0.s8 %v1800
        %v1802 = vlaneseq
        %v1803 = vshrl.u32 %v1802, 7
        %v1804 = vsub.s32 %v1801, %v1803
        %v1805 = vrot.slane %v1797, %v1804
        %v1807 = vunpack.c.l.s4 1934713408
        %v1808 = vunpack.c.0.s8 %v1807
        %v1809 = vlaneseq
        %v1810 = vshrl.u32 %v1809, 7
        %v1811 = vsub.s32 %v1808, %v1810
        %v1812 = vrot.slane %v1798, %v1811
        %v1813 = vcombine.low %v1788, %v1796
        %v1814 = vcombine.high %v1788, %v1796
        %v1816 = vunpack.c.l.s4 1934713408
        %v1817 = vunpack.c.0.s8 %v1816
        %v1818 = vlaneseq
        %v1819 = vshrl.u32 %v1818, 7
        %v1820 = vsub.s32 %v1817, %v1819
        %v1821 = vrot.slane %v1813, %v1820
        %v1823 = vunpack.c.l.s4 1934713408
        %v1824 = vunpack.c.0.s8 %v1823
        %v1825 = vlaneseq
        %v1826 = vshrl.u32 %v1825, 7
        %v1827 = vsub.s32 %v1824, %v1826
        %v1828 = vrot.slane %v1814, %v1827
        %v1829 = vcombine.low %v1805, %v1821
        %v1830 = vcombine.high %v1805, %v1821
        %v1831 = vcombine.low %v1812, %v1828
        %v1832 = vcombine.high %v1812, %v1828
        %v1833 = vpack.c.bf16 %v1829, %v1829
        %v1834 = vpack.c.bf16 %v1830, %v1830
        %v1835 = vpack.c.bf16 %v1831, %v1831
        %v1836 = vpack.c.bf16 %v1832, %v1832
        %1838 = vrot.lane.b32.xlu0 %v1532, 120
        %v1839 = vpop.permute.xlu0 %1838
        %1841 = vrot.lane.b32.xlu0 %v1532, 112
        %v1842 = vpop.permute.xlu0 %1841
        %1844 = vrot.lane.b32.xlu0 %v1532, 104
        %v1845 = vpop.permute.xlu0 %1844
        %v1847 = vcombine.low %v1532, %v1842
        %v1848 = vcombine.high %v1532, %v1842
        %v1850 = vunpack.c.l.s4 1983009808
        %v1851 = vunpack.c.0.s8 %v1850
        %v1852 = vlaneseq
        %v1853 = vshrl.u32 %v1852, 7
        %v1854 = vsub.s32 %v1851, %v1853
        %v1855 = vrot.slane %v1847, %v1854
        %v1857 = vunpack.c.l.s4 1983009808
        %v1858 = vunpack.c.0.s8 %v1857
        %v1859 = vlaneseq
        %v1860 = vshrl.u32 %v1859, 7
        %v1861 = vsub.s32 %v1858, %v1860
        %v1862 = vrot.slane %v1848, %v1861
        %v1863 = vcombine.low %v1839, %v1845
        %v1864 = vcombine.high %v1839, %v1845
        %v1866 = vunpack.c.l.s4 1983009808
        %v1867 = vunpack.c.0.s8 %v1866
        %v1868 = vlaneseq
        %v1869 = vshrl.u32 %v1868, 7
        %v1870 = vsub.s32 %v1867, %v1869
        %v1871 = vrot.slane %v1863, %v1870
        %v1873 = vunpack.c.l.s4 1983009808
        %v1874 = vunpack.c.0.s8 %v1873
        %v1875 = vlaneseq
        %v1876 = vshrl.u32 %v1875, 7
        %v1877 = vsub.s32 %v1874, %v1876
        %v1878 = vrot.slane %v1864, %v1877
        %v1879 = vcombine.low %v1855, %v1871
        %v1880 = vcombine.high %v1855, %v1871
        %v1882 = vunpack.c.l.s4 1934713408
        %v1883 = vunpack.c.0.s8 %v1882
        %v1884 = vlaneseq
        %v1885 = vshrl.u32 %v1884, 7
        %v1886 = vsub.s32 %v1883, %v1885
        %v1887 = vrot.slane %v1879, %v1886
        %v1889 = vunpack.c.l.s4 1934713408
        %v1890 = vunpack.c.0.s8 %v1889
        %v1891 = vlaneseq
        %v1892 = vshrl.u32 %v1891, 7
        %v1893 = vsub.s32 %v1890, %v1892
        %v1894 = vrot.slane %v1880, %v1893
        %v1895 = vcombine.low %v1862, %v1878
        %v1896 = vcombine.high %v1862, %v1878
        %v1898 = vunpack.c.l.s4 1934713408
        %v1899 = vunpack.c.0.s8 %v1898
        %v1900 = vlaneseq
        %v1901 = vshrl.u32 %v1900, 7
        %v1902 = vsub.s32 %v1899, %v1901
        %v1903 = vrot.slane %v1895, %v1902
        %v1905 = vunpack.c.l.s4 1934713408
        %v1906 = vunpack.c.0.s8 %v1905
        %v1907 = vlaneseq
        %v1908 = vshrl.u32 %v1907, 7
        %v1909 = vsub.s32 %v1906, %v1908
        %v1910 = vrot.slane %v1896, %v1909
        %v1911 = vcombine.high %v1887, 0.0
        %v1912 = vcombine.high %v1894, 0.0
        %v1913 = vcombine.high %v1903, 0.0
        %v1914 = vcombine.high %v1910, 0.0
        %v1915 = vcombine.low %v1887, %v1894
        %v1917 = vunpack.c.l.s4 1983009808
        %v1918 = vunpack.c.0.s8 %v1917
        %v1919 = vlaneseq
        %v1920 = vshrl.u32 %v1919, 7
        %v1921 = vsub.s32 %v1918, %v1920
        %v1922 = vrot.slane %v1915, %v1921
        %v1923 = vcombine.low %v1911, %v1912
        %v1925 = vunpack.c.l.s4 1983009808
        %v1926 = vunpack.c.0.s8 %v1925
        %v1927 = vlaneseq
        %v1928 = vshrl.u32 %v1927, 7
        %v1929 = vsub.s32 %v1926, %v1928
        %v1930 = vrot.slane %v1923, %v1929
        %v1931 = vcombine.low %v1903, %v1910
        %v1933 = vunpack.c.l.s4 1983009808
        %v1934 = vunpack.c.0.s8 %v1933
        %v1935 = vlaneseq
        %v1936 = vshrl.u32 %v1935, 7
        %v1937 = vsub.s32 %v1934, %v1936
        %v1938 = vrot.slane %v1931, %v1937
        %v1939 = vcombine.low %v1913, %v1914
        %v1941 = vunpack.c.l.s4 1983009808
        %v1942 = vunpack.c.0.s8 %v1941
        %v1943 = vlaneseq
        %v1944 = vshrl.u32 %v1943, 7
        %v1945 = vsub.s32 %v1942, %v1944
        %v1946 = vrot.slane %v1939, %v1945
        %v1947 = vcombine.low %v1922, %v1930
        %v1948 = vcombine.high %v1922, %v1930
        %v1950 = vunpack.c.l.s4 1934713408
        %v1951 = vunpack.c.0.s8 %v1950
        %v1952 = vlaneseq
        %v1953 = vshrl.u32 %v1952, 7
        %v1954 = vsub.s32 %v1951, %v1953
        %v1955 = vrot.slane %v1947, %v1954
        %v1957 = vunpack.c.l.s4 1934713408
        %v1958 = vunpack.c.0.s8 %v1957
        %v1959 = vlaneseq
        %v1960 = vshrl.u32 %v1959, 7
        %v1961 = vsub.s32 %v1958, %v1960
        %v1962 = vrot.slane %v1948, %v1961
        %v1963 = vcombine.low %v1938, %v1946
        %v1964 = vcombine.high %v1938, %v1946
        %v1966 = vunpack.c.l.s4 1934713408
        %v1967 = vunpack.c.0.s8 %v1966
        %v1968 = vlaneseq
        %v1969 = vshrl.u32 %v1968, 7
        %v1970 = vsub.s32 %v1967, %v1969
        %v1971 = vrot.slane %v1963, %v1970
        %v1973 = vunpack.c.l.s4 1934713408
        %v1974 = vunpack.c.0.s8 %v1973
        %v1975 = vlaneseq
        %v1976 = vshrl.u32 %v1975, 7
        %v1977 = vsub.s32 %v1974, %v1976
        %v1978 = vrot.slane %v1964, %v1977
        %v1979 = vcombine.low %v1955, %v1971
        %v1980 = vcombine.high %v1955, %v1971
        %v1981 = vcombine.low %v1962, %v1978
        %v1982 = vcombine.high %v1962, %v1978
        %v1983 = vpack.c.bf16 %v1979, %v1979
        %v1984 = vpack.c.bf16 %v1980, %v1980
        %v1985 = vpack.c.bf16 %v1981, %v1981
        %v1986 = vpack.c.bf16 %v1982, %v1982
        %vm1987 = vcmask 64512
        %v1989 = vsel %vm1987, %v1683, 0
        %v1992 = vsel %vm1987, %v1833, 0
        %1994 = vmatprep.subr.bf16.mxu0 0
        %1995 = vmatpush1.bf16.xpose.msra.mxu0 %v1992
        %1996 = vmatprep.subr.bf16.mxu0 0
        %1997 = vmatpush1.bf16.xpose.msra.mxu0 0
        %1998 = vmatprep.subr.bf16.mxu0 0
        %1999 = vmatpush1.bf16.xpose.msra.mxu0 0
        %2000 = vmatprep.subr.bf16.mxu0 0
        %2001 = vmatpush1.bf16.xpose.msra.mxu0 0
        %2002 = vmatprep.subr.bf16.mxu0 0
        %2003 = vmatpush1.bf16.xpose.msra.mxu0 0
        %2004 = vmatprep.subr.bf16.mxu0 0
        %2005 = vmatpush1.bf16.xpose.msra.mxu0 0
        %2006 = vmatprep.subr.bf16.mxu0 0
        %2007 = vmatpush1.bf16.xpose.msra.mxu0 0
        %2008 = vmatprep.subr.bf16.mxu0 0
        %2009 = vmatpush1.bf16.xpose.msra.mxu0 0
        %2010 = vmatprep.subr.bf16.mxu0 0
        %2011 = vmatpush1.bf16.xpose.msra.mxu0 0
        %2012 = vmatprep.subr.bf16.mxu0 0
        %2013 = vmatpush1.bf16.xpose.msra.mxu0 0
        %2014 = vmatprep.subr.bf16.mxu0 0
        %2015 = vmatpush1.bf16.xpose.msra.mxu0 0
        %2016 = vmatprep.subr.bf16.mxu0 0
        %2017 = vmatpush1.bf16.xpose.msra.mxu0 0
        %2018 = vmatprep.subr.bf16.mxu0 0
        %2019 = vmatpush1.bf16.xpose.msra.mxu0 0
        %2020 = vmatprep.subr.bf16.mxu0 0
        %2021 = vmatpush1.bf16.xpose.msra.mxu0 0
        %2022 = vmatprep.subr.bf16.mxu0 0
        %2023 = vmatpush1.bf16.xpose.msra.mxu0 0
        %2024 = vmatprep.subr.bf16.mxu0 0
        %2025 = vmatpush1.bf16.xpose.msra.mxu0 0
        %2026 = vmatprep.mubr.bf16.mxu0 0
        %2027 = vmatmul.mubr.bf16.gmra.mrb[0].mxu0 %v1989
        %v2028 = vpop.f32.mrb[0].mxu0
        %v2029 = vadd.f32 %v1339, %v2028
        %v2030 = vpop.f32.mrb[0].mxu0
        %v2031 = vpop.f32.mrb[0].mxu0
        %v2032 = vpop.f32.mrb[0].mxu0
        %2033 = vdwg.mxu0
        %v2035 = vsel %vm1987, %v1684, 0
        %v2038 = vsel %vm1987, %v1834, 0
        %2040 = vmatprep.subr.bf16.mxu0 0
        %2041 = vmatpush1.bf16.xpose.msra.mxu0 %v2038
        %2042 = vmatprep.subr.bf16.mxu0 0
        %2043 = vmatpush1.bf16.xpose.msra.mxu0 0
        %2044 = vmatprep.subr.bf16.mxu0 0
        %2045 = vmatpush1.bf16.xpose.msra.mxu0 0
        %2046 = vmatprep.subr.bf16.mxu0 0
        %2047 = vmatpush1.bf16.xpose.msra.mxu0 0
        %2048 = vmatprep.subr.bf16.mxu0 0
        %2049 = vmatpush1.bf16.xpose.msra.mxu0 0
        %2050 = vmatprep.subr.bf16.mxu0 0
        %2051 = vmatpush1.bf16.xpose.msra.mxu0 0
        %2052 = vmatprep.subr.bf16.mxu0 0
        %2053 = vmatpush1.bf16.xpose.msra.mxu0 0
        %2054 = vmatprep.subr.bf16.mxu0 0
        %2055 = vmatpush1.bf16.xpose.msra.mxu0 0
        %2056 = vmatprep.subr.bf16.mxu0 0
        %2057 = vmatpush1.bf16.xpose.msra.mxu0 0
        %2058 = vmatprep.subr.bf16.mxu0 0
        %2059 = vmatpush1.bf16.xpose.msra.mxu0 0
        %2060 = vmatprep.subr.bf16.mxu0 0
        %2061 = vmatpush1.bf16.xpose.msra.mxu0 0
        %2062 = vmatprep.subr.bf16.mxu0 0
        %2063 = vmatpush1.bf16.xpose.msra.mxu0 0
        %2064 = vmatprep.subr.bf16.mxu0 0
        %2065 = vmatpush1.bf16.xpose.msra.mxu0 0
        %2066 = vmatprep.subr.bf16.mxu0 0
        %2067 = vmatpush1.bf16.xpose.msra.mxu0 0
        %2068 = vmatprep.subr.bf16.mxu0 0
        %2069 = vmatpush1.bf16.xpose.msra.mxu0 0
        %2070 = vmatprep.subr.bf16.mxu0 0
        %2071 = vmatpush1.bf16.xpose.msra.mxu0 0
        %2072 = vmatprep.mubr.bf16.mxu0 0
        %2073 = vmatmul.mubr.bf16.gmra.mrb[0].mxu0 %v2035
        %v2074 = vpop.f32.mrb[0].mxu0
        %v2075 = vadd.f32 %v1339, %v2074
        %v2076 = vpop.f32.mrb[0].mxu0
        %v2077 = vpop.f32.mrb[0].mxu0
        %v2078 = vpop.f32.mrb[0].mxu0
        %2079 = vdwg.mxu0
        %v2081 = vsel %vm1987, %v1685, 0
        %v2084 = vsel %vm1987, %v1835, 0
        %2086 = vmatprep.subr.bf16.mxu0 0
        %2087 = vmatpush1.bf16.xpose.msra.mxu0 %v2084
        %2088 = vmatprep.subr.bf16.mxu0 0
        %2089 = vmatpush1.bf16.xpose.msra.mxu0 0
        %2090 = vmatprep.subr.bf16.mxu0 0
        %2091 = vmatpush1.bf16.xpose.msra.mxu0 0
        %2092 = vmatprep.subr.bf16.mxu0 0
        %2093 = vmatpush1.bf16.xpose.msra.mxu0 0
        %2094 = vmatprep.subr.bf16.mxu0 0
        %2095 = vmatpush1.bf16.xpose.msra.mxu0 0
        %2096 = vmatprep.subr.bf16.mxu0 0
        %2097 = vmatpush1.bf16.xpose.msra.mxu0 0
        %2098 = vmatprep.subr.bf16.mxu0 0
        %2099 = vmatpush1.bf16.xpose.msra.mxu0 0
        %2100 = vmatprep.subr.bf16.mxu0 0
        %2101 = vmatpush1.bf16.xpose.msra.mxu0 0
        %2102 = vmatprep.subr.bf16.mxu0 0
        %2103 = vmatpush1.bf16.xpose.msra.mxu0 0
        %2104 = vmatprep.subr.bf16.mxu0 0
        %2105 = vmatpush1.bf16.xpose.msra.mxu0 0
        %2106 = vmatprep.subr.bf16.mxu0 0
        %2107 = vmatpush1.bf16.xpose.msra.mxu0 0
        %2108 = vmatprep.subr.bf16.mxu0 0
        %2109 = vmatpush1.bf16.xpose.msra.mxu0 0
        %2110 = vmatprep.subr.bf16.mxu0 0
        %2111 = vmatpush1.bf16.xpose.msra.mxu0 0
        %2112 = vmatprep.subr.bf16.mxu0 0
        %2113 = vmatpush1.bf16.xpose.msra.mxu0 0
        %2114 = vmatprep.subr.bf16.mxu0 0
        %2115 = vmatpush1.bf16.xpose.msra.mxu0 0
        %2116 = vmatprep.subr.bf16.mxu0 0
        %2117 = vmatpush1.bf16.xpose.msra.mxu0 0
        %2118 = vmatprep.mubr.bf16.mxu0 0
        %2119 = vmatmul.mubr.bf16.gmra.mrb[0].mxu0 %v2081
        %v2120 = vpop.f32.mrb[0].mxu0
        %v2121 = vadd.f32 %v1339, %v2120
        %v2122 = vpop.f32.mrb[0].mxu0
        %v2123 = vpop.f32.mrb[0].mxu0
        %v2124 = vpop.f32.mrb[0].mxu0
        %2125 = vdwg.mxu0
        %v2127 = vsel %vm1987, %v1686, 0
        %v2130 = vsel %vm1987, %v1836, 0
        %2132 = vmatprep.subr.bf16.mxu0 0
        %2133 = vmatpush1.bf16.xpose.msra.mxu0 %v2130
        %2134 = vmatprep.subr.bf16.mxu0 0
        %2135 = vmatpush1.bf16.xpose.msra.mxu0 0
        %2136 = vmatprep.subr.bf16.mxu0 0
        %2137 = vmatpush1.bf16.xpose.msra.mxu0 0
        %2138 = vmatprep.subr.bf16.mxu0 0
        %2139 = vmatpush1.bf16.xpose.msra.mxu0 0
        %2140 = vmatprep.subr.bf16.mxu0 0
        %2141 = vmatpush1.bf16.xpose.msra.mxu0 0
        %2142 = vmatprep.subr.bf16.mxu0 0
        %2143 = vmatpush1.bf16.xpose.msra.mxu0 0
        %2144 = vmatprep.subr.bf16.mxu0 0
        %2145 = vmatpush1.bf16.xpose.msra.mxu0 0
        %2146 = vmatprep.subr.bf16.mxu0 0
        %2147 = vmatpush1.bf16.xpose.msra.mxu0 0
        %2148 = vmatprep.subr.bf16.mxu0 0
        %2149 = vmatpush1.bf16.xpose.msra.mxu0 0
        %2150 = vmatprep.subr.bf16.mxu0 0
        %2151 = vmatpush1.bf16.xpose.msra.mxu0 0
        %2152 = vmatprep.subr.bf16.mxu0 0
        %2153 = vmatpush1.bf16.xpose.msra.mxu0 0
        %2154 = vmatprep.subr.bf16.mxu0 0
        %2155 = vmatpush1.bf16.xpose.msra.mxu0 0
        %2156 = vmatprep.subr.bf16.mxu0 0
        %2157 = vmatpush1.bf16.xpose.msra.mxu0 0
        %2158 = vmatprep.subr.bf16.mxu0 0
        %2159 = vmatpush1.bf16.xpose.msra.mxu0 0
        %2160 = vmatprep.subr.bf16.mxu0 0
        %2161 = vmatpush1.bf16.xpose.msra.mxu0 0
        %2162 = vmatprep.subr.bf16.mxu0 0
        %2163 = vmatpush1.bf16.xpose.msra.mxu0 0
        %2164 = vmatprep.mubr.bf16.mxu0 0
        %2165 = vmatmul.mubr.bf16.gmra.mrb[0].mxu0 %v2127
        %v2166 = vpop.f32.mrb[0].mxu0
        %v2167 = vadd.f32 %v1339, %v2166
        %v2168 = vpop.f32.mrb[0].mxu0
        %v2169 = vpop.f32.mrb[0].mxu0
        %v2170 = vpop.f32.mrb[0].mxu0
        %2171 = vdwg.mxu0
        %v2172 = vsel %vm1987, %v2029, -inf
        %2173 = vmax.xlane.f32.xlu0 %v2172
        %v2174 = vpop.xlane.xlu0 %2173
        %v2175 = vsel %vm1987, %v2075, -inf
        %2176 = vmax.xlane.f32.xlu0 %v2175
        %v2177 = vpop.xlane.xlu0 %2176
        %v2178 = vsel %vm1987, %v2121, -inf
        %2179 = vmax.xlane.f32.xlu0 %v2178
        %v2180 = vpop.xlane.xlu0 %2179
        %v2181 = vsel %vm1987, %v2167, -inf
        %2182 = vmax.xlane.f32.xlu0 %v2181
        %v2183 = vpop.xlane.xlu0 %2182
        %v2184 = vsub.f32 %v2029, %v2174
        %v2185 = vsub.f32 %v2075, %v2177
        %v2186 = vsub.f32 %v2121, %v2180
        %v2187 = vsub.f32 %v2167, %v2183
        %v2188 = vmul.f32 %v2184, 1.442695
        %v2189 = vpow.pop %v2188
        %v2190 = vmul.f32 %v2185, 1.442695
        %v2191 = vpow.pop %v2190
        %v2192 = vmul.f32 %v2186, 1.442695
        %v2193 = vpow.pop %v2192
        %v2194 = vmul.f32 %v2187, 1.442695
        %v2195 = vpow.pop %v2194
        %v2196 = vsel %vm1987, %v2189, 0.0
        %2197 = vadd.xlane.f32.xlu0 %v2196
        %v2198 = vpop.xlane.xlu0 %2197
        %v2199 = vsel %vm1987, %v2191, 0.0
        %2200 = vadd.xlane.f32.xlu0 %v2199
        %v2201 = vpop.xlane.xlu0 %2200
        %v2202 = vsel %vm1987, %v2193, 0.0
        %2203 = vadd.xlane.f32.xlu0 %v2202
        %v2204 = vpop.xlane.xlu0 %2203
        %v2205 = vsel %vm1987, %v2195, 0.0
        %2206 = vadd.xlane.f32.xlu0 %v2205
        %v2207 = vpop.xlane.xlu0 %2206
        %v2208 = vrcp.pop %v2198
        %v2209 = vrcp.pop %v2201
        %v2210 = vrcp.pop %v2204
        %v2211 = vrcp.pop %v2207
        %v2212 = vmul.f32 %v2189, %v2208
        %v2213 = vmul.f32 %v2191, %v2209
        %v2214 = vmul.f32 %v2193, %v2210
        %v2215 = vmul.f32 %v2195, %v2211
        %v2216 = vpack.c.bf16 %v2212, %v2212
        %v2217 = vpack.c.bf16 %v2213, %v2213
        %v2218 = vpack.c.bf16 %v2214, %v2214
        %v2219 = vpack.c.bf16 %v2215, %v2215
        %v2221 = vsel %vm1987, %v2216, 0
        %vm2223 = vcmask 1043456
        %v2225 = vsel %vm2223, %v1983, 0
        %2227 = vmatprep.subr.bf16.mxu0 0
        %2228 = vmatpush1.bf16.msra.mxu0 %v2225
        %2229 = vmatprep.subr.bf16.mxu0 0
        %2230 = vmatpush1.bf16.msra.mxu0 0
        %2231 = vmatprep.subr.bf16.mxu0 0
        %2232 = vmatpush1.bf16.msra.mxu0 0
        %2233 = vmatprep.subr.bf16.mxu0 0
        %2234 = vmatpush1.bf16.msra.mxu0 0
        %2235 = vmatprep.subr.bf16.mxu0 0
        %2236 = vmatpush1.bf16.msra.mxu0 0
        %2237 = vmatprep.subr.bf16.mxu0 0
        %2238 = vmatpush1.bf16.msra.mxu0 0
        %2239 = vmatprep.subr.bf16.mxu0 0
        %2240 = vmatpush1.bf16.msra.mxu0 0
        %2241 = vmatprep.subr.bf16.mxu0 0
        %2242 = vmatpush1.bf16.msra.mxu0 0
        %2243 = vmatprep.subr.bf16.mxu0 0
        %2244 = vmatpush1.bf16.msra.mxu0 0
        %2245 = vmatprep.subr.bf16.mxu0 0
        %2246 = vmatpush1.bf16.msra.mxu0 0
        %2247 = vmatprep.subr.bf16.mxu0 0
        %2248 = vmatpush1.bf16.msra.mxu0 0
        %2249 = vmatprep.subr.bf16.mxu0 0
        %2250 = vmatpush1.bf16.msra.mxu0 0
        %2251 = vmatprep.subr.bf16.mxu0 0
        %2252 = vmatpush1.bf16.msra.mxu0 0
        %2253 = vmatprep.subr.bf16.mxu0 0
        %2254 = vmatpush1.bf16.msra.mxu0 0
        %2255 = vmatprep.subr.bf16.mxu0 0
        %2256 = vmatpush1.bf16.msra.mxu0 0
        %2257 = vmatprep.subr.bf16.mxu0 0
        %2258 = vmatpush1.bf16.msra.mxu0 0
        %2259 = vmatprep.mubr.bf16.mxu0 0
        %2260 = vmatmul.mubr.bf16.gmra.mrb[0].mxu0 %v2221
        %v2261 = vpop.f32.mrb[0].mxu0
        %v2262 = vadd.f32 0.0, %v2261
        %v2263 = vpop.f32.mrb[0].mxu0
        %v2264 = vpop.f32.mrb[0].mxu0
        %v2265 = vpop.f32.mrb[0].mxu0
        %2266 = vdwg.mxu0
        %v2268 = vsel %vm1987, %v2217, 0
        %v2271 = vsel %vm2223, %v1984, 0
        %2273 = vmatprep.subr.bf16.mxu0 0
        %2274 = vmatpush1.bf16.msra.mxu0 %v2271
        %2275 = vmatprep.subr.bf16.mxu0 0
        %2276 = vmatpush1.bf16.msra.mxu0 0
        %2277 = vmatprep.subr.bf16.mxu0 0
        %2278 = vmatpush1.bf16.msra.mxu0 0
        %2279 = vmatprep.subr.bf16.mxu0 0
        %2280 = vmatpush1.bf16.msra.mxu0 0
        %2281 = vmatprep.subr.bf16.mxu0 0
        %2282 = vmatpush1.bf16.msra.mxu0 0
        %2283 = vmatprep.subr.bf16.mxu0 0
        %2284 = vmatpush1.bf16.msra.mxu0 0
        %2285 = vmatprep.subr.bf16.mxu0 0
        %2286 = vmatpush1.bf16.msra.mxu0 0
        %2287 = vmatprep.subr.bf16.mxu0 0
        %2288 = vmatpush1.bf16.msra.mxu0 0
        %2289 = vmatprep.subr.bf16.mxu0 0
        %2290 = vmatpush1.bf16.msra.mxu0 0
        %2291 = vmatprep.subr.bf16.mxu0 0
        %2292 = vmatpush1.bf16.msra.mxu0 0
        %2293 = vmatprep.subr.bf16.mxu0 0
        %2294 = vmatpush1.bf16.msra.mxu0 0
        %2295 = vmatprep.subr.bf16.mxu0 0
        %2296 = vmatpush1.bf16.msra.mxu0 0
        %2297 = vmatprep.subr.bf16.mxu0 0
        %2298 = vmatpush1.bf16.msra.mxu0 0
        %2299 = vmatprep.subr.bf16.mxu0 0
        %2300 = vmatpush1.bf16.msra.mxu0 0
        %2301 = vmatprep.subr.bf16.mxu0 0
        %2302 = vmatpush1.bf16.msra.mxu0 0
        %2303 = vmatprep.subr.bf16.mxu0 0
        %2304 = vmatpush1.bf16.msra.mxu0 0
        %2305 = vmatprep.mubr.bf16.mxu0 0
        %2306 = vmatmul.mubr.bf16.gmra.mrb[0].mxu0 %v2268
        %v2307 = vpop.f32.mrb[0].mxu0
        %v2308 = vadd.f32 0.0, %v2307
        %v2309 = vpop.f32.mrb[0].mxu0
        %v2310 = vpop.f32.mrb[0].mxu0
        %v2311 = vpop.f32.mrb[0].mxu0
        %2312 = vdwg.mxu0
        %v2314 = vsel %vm1987, %v2218, 0
        %v2317 = vsel %vm2223, %v1985, 0
        %2319 = vmatprep.subr.bf16.mxu0 0
        %2320 = vmatpush1.bf16.msra.mxu0 %v2317
        %2321 = vmatprep.subr.bf16.mxu0 0
        %2322 = vmatpush1.bf16.msra.mxu0 0
        %2323 = vmatprep.subr.bf16.mxu0 0
        %2324 = vmatpush1.bf16.msra.mxu0 0
        %2325 = vmatprep.subr.bf16.mxu0 0
        %2326 = vmatpush1.bf16.msra.mxu0 0
        %2327 = vmatprep.subr.bf16.mxu0 0
        %2328 = vmatpush1.bf16.msra.mxu0 0
        %2329 = vmatprep.subr.bf16.mxu0 0
        %2330 = vmatpush1.bf16.msra.mxu0 0
        %2331 = vmatprep.subr.bf16.mxu0 0
        %2332 = vmatpush1.bf16.msra.mxu0 0
        %2333 = vmatprep.subr.bf16.mxu0 0
        %2334 = vmatpush1.bf16.msra.mxu0 0
        %2335 = vmatprep.subr.bf16.mxu0 0
        %2336 = vmatpush1.bf16.msra.mxu0 0
        %2337 = vmatprep.subr.bf16.mxu0 0
        %2338 = vmatpush1.bf16.msra.mxu0 0
        %2339 = vmatprep.subr.bf16.mxu0 0
        %2340 = vmatpush1.bf16.msra.mxu0 0
        %2341 = vmatprep.subr.bf16.mxu0 0
        %2342 = vmatpush1.bf16.msra.mxu0 0
        %2343 = vmatprep.subr.bf16.mxu0 0
        %2344 = vmatpush1.bf16.msra.mxu0 0
        %2345 = vmatprep.subr.bf16.mxu0 0
        %2346 = vmatpush1.bf16.msra.mxu0 0
        %2347 = vmatprep.subr.bf16.mxu0 0
        %2348 = vmatpush1.bf16.msra.mxu0 0
        %2349 = vmatprep.subr.bf16.mxu0 0
        %2350 = vmatpush1.bf16.msra.mxu0 0
        %2351 = vmatprep.mubr.bf16.mxu0 0
        %2352 = vmatmul.mubr.bf16.gmra.mrb[0].mxu0 %v2314
        %v2353 = vpop.f32.mrb[0].mxu0
        %v2354 = vadd.f32 0.0, %v2353
        %v2355 = vpop.f32.mrb[0].mxu0
        %v2356 = vpop.f32.mrb[0].mxu0
        %v2357 = vpop.f32.mrb[0].mxu0
        %2358 = vdwg.mxu0
        %v2360 = vsel %vm1987, %v2219, 0
        %v2363 = vsel %vm2223, %v1986, 0
        %2365 = vmatprep.subr.bf16.mxu0 0
        %2366 = vmatpush1.bf16.msra.mxu0 %v2363
        %2367 = vmatprep.subr.bf16.mxu0 0
        %2368 = vmatpush1.bf16.msra.mxu0 0
        %2369 = vmatprep.subr.bf16.mxu0 0
        %2370 = vmatpush1.bf16.msra.mxu0 0
        %2371 = vmatprep.subr.bf16.mxu0 0
        %2372 = vmatpush1.bf16.msra.mxu0 0
        %2373 = vmatprep.subr.bf16.mxu0 0
        %2374 = vmatpush1.bf16.msra.mxu0 0
        %2375 = vmatprep.subr.bf16.mxu0 0
        %2376 = vmatpush1.bf16.msra.mxu0 0
        %2377 = vmatprep.subr.bf16.mxu0 0
        %2378 = vmatpush1.bf16.msra.mxu0 0
        %2379 = vmatprep.subr.bf16.mxu0 0
        %2380 = vmatpush1.bf16.msra.mxu0 0
        %2381 = vmatprep.subr.bf16.mxu0 0
        %2382 = vmatpush1.bf16.msra.mxu0 0
        %2383 = vmatprep.subr.bf16.mxu0 0
        %2384 = vmatpush1.bf16.msra.mxu0 0
        %2385 = vmatprep.subr.bf16.mxu0 0
        %2386 = vmatpush1.bf16.msra.mxu0 0
        %2387 = vmatprep.subr.bf16.mxu0 0
        %2388 = vmatpush1.bf16.msra.mxu0 0
        %2389 = vmatprep.subr.bf16.mxu0 0
        %2390 = vmatpush1.bf16.msra.mxu0 0
        %2391 = vmatprep.subr.bf16.mxu0 0
        %2392 = vmatpush1.bf16.msra.mxu0 0
        %2393 = vmatprep.subr.bf16.mxu0 0
        %2394 = vmatpush1.bf16.msra.mxu0 0
        %2395 = vmatprep.subr.bf16.mxu0 0
        %2396 = vmatpush1.bf16.msra.mxu0 0
        %2397 = vmatprep.mubr.bf16.mxu0 0
        %2398 = vmatmul.mubr.bf16.gmra.mrb[0].mxu0 %v2360
        %v2399 = vpop.f32.mrb[0].mxu0
        %v2400 = vadd.f32 0.0, %v2399
        %v2401 = vpop.f32.mrb[0].mxu0
        %v2402 = vpop.f32.mrb[0].mxu0
        %v2403 = vpop.f32.mrb[0].mxu0
        %2404 = vdwg.mxu0
        %v2405 = vcombine.low %v2262, %v2354
        %v2406 = vcombine.high %v2262, %v2354
        %v2408 = vunpack.c.l.s4 1983009808
        %v2409 = vunpack.c.0.s8 %v2408
        %v2410 = vlaneseq
        %v2411 = vshrl.u32 %v2410, 7
        %v2412 = vsub.s32 %v2409, %v2411
        %v2413 = vrot.slane %v2405, %v2412
        %v2415 = vunpack.c.l.s4 1983009808
        %v2416 = vunpack.c.0.s8 %v2415
        %v2417 = vlaneseq
        %v2418 = vshrl.u32 %v2417, 7
        %v2419 = vsub.s32 %v2416, %v2418
        %v2420 = vrot.slane %v2406, %v2419
        %v2421 = vcombine.low %v2308, %v2400
        %v2422 = vcombine.high %v2308, %v2400
        %v2424 = vunpack.c.l.s4 1983009808
        %v2425 = vunpack.c.0.s8 %v2424
        %v2426 = vlaneseq
        %v2427 = vshrl.u32 %v2426, 7
        %v2428 = vsub.s32 %v2425, %v2427
        %v2429 = vrot.slane %v2421, %v2428
        %v2431 = vunpack.c.l.s4 1983009808
        %v2432 = vunpack.c.0.s8 %v2431
        %v2433 = vlaneseq
        %v2434 = vshrl.u32 %v2433, 7
        %v2435 = vsub.s32 %v2432, %v2434
        %v2436 = vrot.slane %v2422, %v2435
        %v2437 = vcombine.low %v2413, %v2429
        %v2438 = vcombine.high %v2413, %v2429
        %v2440 = vunpack.c.l.s4 1934713408
        %v2441 = vunpack.c.0.s8 %v2440
        %v2442 = vlaneseq
        %v2443 = vshrl.u32 %v2442, 7
        %v2444 = vsub.s32 %v2441, %v2443
        %v2445 = vrot.slane %v2437, %v2444
        %v2447 = vunpack.c.l.s4 1934713408
        %v2448 = vunpack.c.0.s8 %v2447
        %v2449 = vlaneseq
        %v2450 = vshrl.u32 %v2449, 7
        %v2451 = vsub.s32 %v2448, %v2450
        %v2452 = vrot.slane %v2438, %v2451
        %v2453 = vcombine.low %v2420, %v2436
        %v2454 = vcombine.high %v2420, %v2436
        %v2456 = vunpack.c.l.s4 1934713408
        %v2457 = vunpack.c.0.s8 %v2456
        %v2458 = vlaneseq
        %v2459 = vshrl.u32 %v2458, 7
        %v2460 = vsub.s32 %v2457, %v2459
        %v2461 = vrot.slane %v2453, %v2460
        %v2463 = vunpack.c.l.s4 1934713408
        %v2464 = vunpack.c.0.s8 %v2463
        %v2465 = vlaneseq
        %v2466 = vshrl.u32 %v2465, 7
        %v2467 = vsub.s32 %v2464, %v2466
        %v2468 = vrot.slane %v2454, %v2467
        %v2469 = vcombine.high %v2445, 0.0
        %v2470 = vcombine.high %v2452, 0.0
        %v2471 = vcombine.high %v2461, 0.0
        %v2472 = vcombine.high %v2468, 0.0
        %v2473 = vcombine.low %v2445, %v2452
        %v2475 = vunpack.c.l.s4 1983009808
        %v2476 = vunpack.c.0.s8 %v2475
        %v2477 = vlaneseq
        %v2478 = vshrl.u32 %v2477, 7
        %v2479 = vsub.s32 %v2476, %v2478
        %v2480 = vrot.slane %v2473, %v2479
        %v2481 = vcombine.low %v2469, %v2470
        %v2483 = vunpack.c.l.s4 1983009808
        %v2484 = vunpack.c.0.s8 %v2483
        %v2485 = vlaneseq
        %v2486 = vshrl.u32 %v2485, 7
        %v2487 = vsub.s32 %v2484, %v2486
        %v2488 = vrot.slane %v2481, %v2487
        %v2489 = vcombine.low %v2461, %v2468
        %v2491 = vunpack.c.l.s4 1983009808
        %v2492 = vunpack.c.0.s8 %v2491
        %v2493 = vlaneseq
        %v2494 = vshrl.u32 %v2493, 7
        %v2495 = vsub.s32 %v2492, %v2494
        %v2496 = vrot.slane %v2489, %v2495
        %v2497 = vcombine.low %v2471, %v2472
        %v2499 = vunpack.c.l.s4 1983009808
        %v2500 = vunpack.c.0.s8 %v2499
        %v2501 = vlaneseq
        %v2502 = vshrl.u32 %v2501, 7
        %v2503 = vsub.s32 %v2500, %v2502
        %v2504 = vrot.slane %v2497, %v2503
        %v2505 = vcombine.low %v2480, %v2488
        %v2506 = vcombine.high %v2480, %v2488
        %v2508 = vunpack.c.l.s4 1934713408
        %v2509 = vunpack.c.0.s8 %v2508
        %v2510 = vlaneseq
        %v2511 = vshrl.u32 %v2510, 7
        %v2512 = vsub.s32 %v2509, %v2511
        %v2513 = vrot.slane %v2505, %v2512
        %v2515 = vunpack.c.l.s4 1934713408
        %v2516 = vunpack.c.0.s8 %v2515
        %v2517 = vlaneseq
        %v2518 = vshrl.u32 %v2517, 7
        %v2519 = vsub.s32 %v2516, %v2518
        %v2520 = vrot.slane %v2506, %v2519
        %v2521 = vcombine.low %v2496, %v2504
        %v2522 = vcombine.high %v2496, %v2504
        %v2524 = vunpack.c.l.s4 1934713408
        %v2525 = vunpack.c.0.s8 %v2524
        %v2526 = vlaneseq
        %v2527 = vshrl.u32 %v2526, 7
        %v2528 = vsub.s32 %v2525, %v2527
        %v2529 = vrot.slane %v2521, %v2528
        %v2531 = vunpack.c.l.s4 1934713408
        %v2532 = vunpack.c.0.s8 %v2531
        %v2533 = vlaneseq
        %v2534 = vshrl.u32 %v2533, 7
        %v2535 = vsub.s32 %v2532, %v2534
        %v2536 = vrot.slane %v2522, %v2535
        %v2537 = vcombine.low %v2513, %v2529
        %v2538 = vcombine.high %v2513, %v2529
        %v2539 = vcombine.low %v2520, %v2536
        %v2540 = vcombine.high %v2520, %v2536
        %2542 = vrot.lane.b32.xlu0 %v2538, 8
        %v2543 = vpop.permute.xlu0 %2542
        %2546 = vrot.lane.b32.xlu0 %v2539, 16
        %v2547 = vpop.permute.xlu0 %2546
        %2550 = vrot.lane.b32.xlu0 %v2540, 24
        %v2551 = vpop.permute.xlu0 %2550
        %v2553 = vsel %vm1987, %v2537, %v2543
        %vm2554 = vcmask 130048
        %v2555 = vsel %vm2554, %v2553, %v2547
        %vm2556 = vcmask 195584
        %v2557 = vsel %vm2556, %v2555, %v2551
        %v2558 = vpack.c.bf16 %v2557, %v2557
        %v2559 = vld [vmem:[#allocation17] sm:$0xf]
        %v2560 = vld [vmem:[#allocation17 + $0x4] sm:$0xf]
        %v2561 = vld [vmem:[#allocation17 + $0x8] sm:$0xf]
        %v2562 = vld [vmem:[#allocation17 + $0xc] sm:$0xf]
        %v2563 = vld [vmem:[#allocation19] sm:$0x1]
        %v2565 = vlaneseq
        %v2566 = vshrl.u32 %v2565, 7
        %v2567 = vsub.s32 0, %v2566
        %v2568 = vrot.slane %v2563, %v2567
        %v2574 = vunpack.c.l.b16 %v2559
        %v2575 = vunpack.c.l.b16 %v2560
        %v2576 = vunpack.c.l.b16 %v2561
        %v2577 = vunpack.c.l.b16 %v2562
        %v2578 = vpack.c.b16 %v2575, %v2574
        %v2579 = vpack.c.b16 %v2577, %v2576
        %v2583 = vsel %vm1367, %v2558, 0
        %2585 = vmatprep.subr.bf16.mxu0 0
        %2586 = vmatpush1.bf16.msra.mxu0 %v2578
        %2587 = vmatprep.subr.bf16.mxu0 0
        %2588 = vmatpush1.bf16.msra.mxu0 %v2579
        %2589 = vmatprep.subr.bf16.mxu0 0
        %2590 = vmatpush1.bf16.msra.mxu0 0
        %2591 = vmatprep.subr.bf16.mxu0 0
        %2592 = vmatpush1.bf16.msra.mxu0 0
        %2593 = vmatprep.subr.bf16.mxu0 0
        %2594 = vmatpush1.bf16.msra.mxu0 0
        %2595 = vmatprep.subr.bf16.mxu0 0
        %2596 = vmatpush1.bf16.msra.mxu0 0
        %2597 = vmatprep.subr.bf16.mxu0 0
        %2598 = vmatpush1.bf16.msra.mxu0 0
        %2599 = vmatprep.subr.bf16.mxu0 0
        %2600 = vmatpush1.bf16.msra.mxu0 0
        %2601 = vmatprep.subr.bf16.mxu0 0
        %2602 = vmatpush1.bf16.msra.mxu0 0
        %2603 = vmatprep.subr.bf16.mxu0 0
        %2604 = vmatpush1.bf16.msra.mxu0 0
        %2605 = vmatprep.subr.bf16.mxu0 0
        %2606 = vmatpush1.bf16.msra.mxu0 0
        %2607 = vmatprep.subr.bf16.mxu0 0
        %2608 = vmatpush1.bf16.msra.mxu0 0
        %2609 = vmatprep.subr.bf16.mxu0 0
        %2610 = vmatpush1.bf16.msra.mxu0 0
        %2611 = vmatprep.subr.bf16.mxu0 0
        %2612 = vmatpush1.bf16.msra.mxu0 0
        %2613 = vmatprep.subr.bf16.mxu0 0
        %2614 = vmatpush1.bf16.msra.mxu0 0
        %2615 = vmatprep.subr.bf16.mxu0 0
        %2616 = vmatpush1.bf16.msra.mxu0 0
        %2617 = vmatprep.mubr.bf16.mxu0 0
        %2618 = vmatmul.mubr.bf16.gmra.mrb[0].mxu0 %v2583
        %v2619 = vpop.f32.mrb[0].mxu0
        %v2620 = vadd.f32 %v2568, %v2619
        %v2621 = vpop.f32.mrb[0].mxu0
        %v2622 = vpop.f32.mrb[0].mxu0
        %v2623 = vpop.f32.mrb[0].mxu0
        %2624 = vdwg.mxu0
        %v2625 = vadd.f32 %v1332, %v2620
        %v2626 = vld [vmem:[#allocation38] sm:$0x1]
        %v2627 = vld [vmem:[#allocation40] sm:$0x1]
        %v2628 = vsel %vm1367, %v2625, 0.0
        %2629 = vadd.xlane.f32.xlu0 %v2628
        %v2630 = vpop.xlane.xlu0 %2629
        %v2631 = vrcp.pop 32.0
        %v2632 = vmul.f32 %v2630, %v2631
        %v2633 = vsub.f32 %v2625, %v2632
        %v2634 = vmul.f32 %v2633, %v2633
        %v2635 = vsel %vm1367, %v2634, 0.0
        %2636 = vadd.xlane.f32.xlu0 %v2635
        %v2637 = vpop.xlane.xlu0 %2636
        %v2638 = vrcp.pop 31.0
        %v2639 = vmul.f32 %v2637, %v2638
        %v2641 = vlaneseq
        %v2642 = vshrl.u32 %v2641, 7
        %v2643 = vsub.s32 0, %v2642
        %v2644 = vrot.slane %v2626, %v2643
        %v2646 = vmul.f32 %v2644, %v2633
        %v2647 = vrsqrt.pop %v2639
        %v2648 = vmul.f32 %v2639, %v2647
        %vm2649 = vcmp.eq.f32.partialorder %v2639, inf
        %v2650 = vsel %vm2649, %v2639, %v2648
        %vm2651 = vcmp.eq.f32.partialorder %v2639, 0.0
        %v2652 = vand.u32 %v2639, 2147483648
        %v2653 = vsel %vm2651, %v2652, %v2650
        %v2654 = vadd.f32 %v2653, 1e-06
        %v2655 = vrcp.pop %v2654
        %v2656 = vmul.f32 %v2646, %v2655
        %v2658 = vlaneseq
        %v2659 = vshrl.u32 %v2658, 7
        %v2660 = vsub.s32 0, %v2659
        %v2661 = vrot.slane %v2627, %v2660
        %v2663 = vadd.f32 %v2656, %v2661
        %v2664 = vpack.c.bf16 %v2663, %v2663
        %v2665 = vpack.c.bf16 %v1333, %v1333
        %v2666 = vld [vmem:[#allocation20] sm:$0xf]
        %v2667 = vld [vmem:[#allocation20 + $0x4] sm:$0xf]
        %v2668 = vld [vmem:[#allocation20 + $0x8] sm:$0xf]
        %v2669 = vld [vmem:[#allocation20 + $0xc] sm:$0xf]
        %v2670 = vld [vmem:[#allocation22] sm:$0x1]
        %v2672 = vlaneseq
        %v2673 = vshrl.u32 %v2672, 7
        %v2674 = vsub.s32 0, %v2673
        %v2675 = vrot.slane %v2670, %v2674
        %v2681 = vunpack.c.l.b16 %v2666
        %v2682 = vunpack.c.l.b16 %v2667
        %v2683 = vunpack.c.l.b16 %v2668
        %v2684 = vunpack.c.l.b16 %v2669
        %v2685 = vpack.c.b16 %v2682, %v2681
        %v2686 = vpack.c.b16 %v2684, %v2683
        %v2690 = vsel %vm1367, %v2664, 0
        %2692 = vmatprep.subr.bf16.mxu0 0
        %2693 = vmatpush1.bf16.msra.mxu0 %v2685
        %2694 = vmatprep.subr.bf16.mxu0 0
        %2695 = vmatpush1.bf16.msra.mxu0 %v2686
        %2696 = vmatprep.subr.bf16.mxu0 0
        %2697 = vmatpush1.bf16.msra.mxu0 0
        %2698 = vmatprep.subr.bf16.mxu0 0
        %2699 = vmatpush1.bf16.msra.mxu0 0
        %2700 = vmatprep.subr.bf16.mxu0 0
        %2701 = vmatpush1.bf16.msra.mxu0 0
        %2702 = vmatprep.subr.bf16.mxu0 0
        %2703 = vmatpush1.bf16.msra.mxu0 0
        %2704 = vmatprep.subr.bf16.mxu0 0
        %2705 = vmatpush1.bf16.msra.mxu0 0
        %2706 = vmatprep.subr.bf16.mxu0 0
        %2707 = vmatpush1.bf16.msra.mxu0 0
        %2708 = vmatprep.subr.bf16.mxu0 0
        %2709 = vmatpush1.bf16.msra.mxu0 0
        %2710 = vmatprep.subr.bf16.mxu0 0
        %2711 = vmatpush1.bf16.msra.mxu0 0
        %2712 = vmatprep.subr.bf16.mxu0 0
        %2713 = vmatpush1.bf16.msra.mxu0 0
        %2714 = vmatprep.subr.bf16.mxu0 0
        %2715 = vmatpush1.bf16.msra.mxu0 0
        %2716 = vmatprep.subr.bf16.mxu0 0
        %2717 = vmatpush1.bf16.msra.mxu0 0
        %2718 = vmatprep.subr.bf16.mxu0 0
        %2719 = vmatpush1.bf16.msra.mxu0 0
        %2720 = vmatprep.subr.bf16.mxu0 0
        %2721 = vmatpush1.bf16.msra.mxu0 0
        %2722 = vmatprep.subr.bf16.mxu0 0
        %2723 = vmatpush1.bf16.msra.mxu0 0
        %2724 = vmatprep.mubr.bf16.mxu0 0
        %2725 = vmatmul.mubr.bf16.gmra.mrb[0].mxu0 %v2690
        %v2726 = vpop.f32.mrb[0].mxu0
        %v2727 = vadd.f32 %v2675, %v2726
        %v2728 = vpop.f32.mrb[0].mxu0
        %v2729 = vpop.f32.mrb[0].mxu0
        %v2730 = vpop.f32.mrb[0].mxu0
        %2731 = vdwg.mxu0
        %v2732 = vld [vmem:[#allocation23] sm:$0xf]
        %v2733 = vld [vmem:[#allocation23 + $0x4] sm:$0xf]
        %v2734 = vld [vmem:[#allocation23 + $0x8] sm:$0xf]
        %v2735 = vld [vmem:[#allocation23 + $0xc] sm:$0xf]
        %v2736 = vld [vmem:[#allocation25] sm:$0x1]
        %v2738 = vlaneseq
        %v2739 = vshrl.u32 %v2738, 7
        %v2740 = vsub.s32 0, %v2739
        %v2741 = vrot.slane %v2736, %v2740
        %v2747 = vunpack.c.l.b16 %v2732
        %v2748 = vunpack.c.l.b16 %v2733
        %v2749 = vunpack.c.l.b16 %v2734
        %v2750 = vunpack.c.l.b16 %v2735
        %v2751 = vpack.c.b16 %v2748, %v2747
        %v2752 = vpack.c.b16 %v2750, %v2749
        %v2756 = vsel %vm1367, %v2665, 0
        %2758 = vmatprep.subr.bf16.mxu0 0
        %2759 = vmatpush1.bf16.msra.mxu0 %v2751
        %2760 = vmatprep.subr.bf16.mxu0 0
        %2761 = vmatpush1.bf16.msra.mxu0 %v2752
        %2762 = vmatprep.subr.bf16.mxu0 0
        %2763 = vmatpush1.bf16.msra.mxu0 0
        %2764 = vmatprep.subr.bf16.mxu0 0
        %2765 = vmatpush1.bf16.msra.mxu0 0
        %2766 = vmatprep.subr.bf16.mxu0 0
        %2767 = vmatpush1.bf16.msra.mxu0 0
        %2768 = vmatprep.subr.bf16.mxu0 0
        %2769 = vmatpush1.bf16.msra.mxu0 0
        %2770 = vmatprep.subr.bf16.mxu0 0
        %2771 = vmatpush1.bf16.msra.mxu0 0
        %2772 = vmatprep.subr.bf16.mxu0 0
        %2773 = vmatpush1.bf16.msra.mxu0 0
        %2774 = vmatprep.subr.bf16.mxu0 0
        %2775 = vmatpush1.bf16.msra.mxu0 0
        %2776 = vmatprep.subr.bf16.mxu0 0
        %2777 = vmatpush1.bf16.msra.mxu0 0
        %2778 = vmatprep.subr.bf16.mxu0 0
        %2779 = vmatpush1.bf16.msra.mxu0 0
        %2780 = vmatprep.subr.bf16.mxu0 0
        %2781 = vmatpush1.bf16.msra.mxu0 0
        %2782 = vmatprep.subr.bf16.mxu0 0
        %2783 = vmatpush1.bf16.msra.mxu0 0
        %2784 = vmatprep.subr.bf16.mxu0 0
        %2785 = vmatpush1.bf16.msra.mxu0 0
        %2786 = vmatprep.subr.bf16.mxu0 0
        %2787 = vmatpush1.bf16.msra.mxu0 0
        %2788 = vmatprep.subr.bf16.mxu0 0
        %2789 = vmatpush1.bf16.msra.mxu0 0
        %2790 = vmatprep.mubr.bf16.mxu0 0
        %2791 = vmatmul.mubr.bf16.gmra.mrb[0].mxu0 %v2756
        %v2792 = vpop.f32.mrb[0].mxu0
        %v2793 = vadd.f32 %v2741, %v2792
        %v2794 = vpop.f32.mrb[0].mxu0
        %v2795 = vpop.f32.mrb[0].mxu0
        %v2796 = vpop.f32.mrb[0].mxu0
        %2797 = vdwg.mxu0
        %v2798 = vld [vmem:[#allocation26] sm:$0xf]
        %v2799 = vld [vmem:[#allocation26 + $0x4] sm:$0xf]
        %v2800 = vld [vmem:[#allocation26 + $0x8] sm:$0xf]
        %v2801 = vld [vmem:[#allocation26 + $0xc] sm:$0xf]
        %v2802 = vld [vmem:[#allocation28] sm:$0x1]
        %v2804 = vlaneseq
        %v2805 = vshrl.u32 %v2804, 7
        %v2806 = vsub.s32 0, %v2805
        %v2807 = vrot.slane %v2802, %v2806
        %v2813 = vunpack.c.l.b16 %v2798
        %v2814 = vunpack.c.l.b16 %v2799
        %v2815 = vunpack.c.l.b16 %v2800
        %v2816 = vunpack.c.l.b16 %v2801
        %v2817 = vpack.c.b16 %v2814, %v2813
        %v2818 = vpack.c.b16 %v2816, %v2815
        %2821 = vmatprep.subr.bf16.mxu0 0
        %2822 = vmatpush1.bf16.msra.mxu0 %v2817
        %2823 = vmatprep.subr.bf16.mxu0 0
        %2824 = vmatpush1.bf16.msra.mxu0 %v2818
        %2825 = vmatprep.subr.bf16.mxu0 0
        %2826 = vmatpush1.bf16.msra.mxu0 0
        %2827 = vmatprep.subr.bf16.mxu0 0
        %2828 = vmatpush1.bf16.msra.mxu0 0
        %2829 = vmatprep.subr.bf16.mxu0 0
        %2830 = vmatpush1.bf16.msra.mxu0 0
        %2831 = vmatprep.subr.bf16.mxu0 0
        %2832 = vmatpush1.bf16.msra.mxu0 0
        %2833 = vmatprep.subr.bf16.mxu0 0
        %2834 = vmatpush1.bf16.msra.mxu0 0
        %2835 = vmatprep.subr.bf16.mxu0 0
        %2836 = vmatpush1.bf16.msra.mxu0 0
        %2837 = vmatprep.subr.bf16.mxu0 0
        %2838 = vmatpush1.bf16.msra.mxu0 0
        %2839 = vmatprep.subr.bf16.mxu0 0
        %2840 = vmatpush1.bf16.msra.mxu0 0
        %2841 = vmatprep.subr.bf16.mxu0 0
        %2842 = vmatpush1.bf16.msra.mxu0 0
        %2843 = vmatprep.subr.bf16.mxu0 0
        %2844 = vmatpush1.bf16.msra.mxu0 0
        %2845 = vmatprep.subr.bf16.mxu0 0
        %2846 = vmatpush1.bf16.msra.mxu0 0
        %2847 = vmatprep.subr.bf16.mxu0 0
        %2848 = vmatpush1.bf16.msra.mxu0 0
        %2849 = vmatprep.subr.bf16.mxu0 0
        %2850 = vmatpush1.bf16.msra.mxu0 0
        %2851 = vmatprep.subr.bf16.mxu0 0
        %2852 = vmatpush1.bf16.msra.mxu0 0
        %2853 = vmatprep.mubr.bf16.mxu0 0
        %2854 = vmatmul.mubr.bf16.gmra.mrb[0].mxu0 %v2756
        %v2855 = vpop.f32.mrb[0].mxu0
        %v2856 = vadd.f32 %v2807, %v2855
        %v2857 = vpop.f32.mrb[0].mxu0
        %v2858 = vpop.f32.mrb[0].mxu0
        %v2859 = vpop.f32.mrb[0].mxu0
        %2860 = vdwg.mxu0
        %2862 = vrot.lane.b32.xlu0 %v2727, 120
        %v2863 = vpop.permute.xlu0 %2862
        %2865 = vrot.lane.b32.xlu0 %v2727, 112
        %v2866 = vpop.permute.xlu0 %2865
        %2868 = vrot.lane.b32.xlu0 %v2727, 104
        %v2869 = vpop.permute.xlu0 %2868
        %v2871 = vcombine.low %v2727, %v2866
        %v2872 = vcombine.high %v2727, %v2866
        %v2874 = vunpack.c.l.s4 1983009808
        %v2875 = vunpack.c.0.s8 %v2874
        %v2876 = vlaneseq
        %v2877 = vshrl.u32 %v2876, 7
        %v2878 = vsub.s32 %v2875, %v2877
        %v2879 = vrot.slane %v2871, %v2878
        %v2881 = vunpack.c.l.s4 1983009808
        %v2882 = vunpack.c.0.s8 %v2881
        %v2883 = vlaneseq
        %v2884 = vshrl.u32 %v2883, 7
        %v2885 = vsub.s32 %v2882, %v2884
        %v2886 = vrot.slane %v2872, %v2885
        %v2887 = vcombine.low %v2863, %v2869
        %v2888 = vcombine.high %v2863, %v2869
        %v2890 = vunpack.c.l.s4 1983009808
        %v2891 = vunpack.c.0.s8 %v2890
        %v2892 = vlaneseq
        %v2893 = vshrl.u32 %v2892, 7
        %v2894 = vsub.s32 %v2891, %v2893
        %v2895 = vrot.slane %v2887, %v2894
        %v2897 = vunpack.c.l.s4 1983009808
        %v2898 = vunpack.c.0.s8 %v2897
        %v2899 = vlaneseq
        %v2900 = vshrl.u32 %v2899, 7
        %v2901 = vsub.s32 %v2898, %v2900
        %v2902 = vrot.slane %v2888, %v2901
        %v2903 = vcombine.low %v2879, %v2895
        %v2904 = vcombine.high %v2879, %v2895
        %v2906 = vunpack.c.l.s4 1934713408
        %v2907 = vunpack.c.0.s8 %v2906
        %v2908 = vlaneseq
        %v2909 = vshrl.u32 %v2908, 7
        %v2910 = vsub.s32 %v2907, %v2909
        %v2911 = vrot.slane %v2903, %v2910
        %v2913 = vunpack.c.l.s4 1934713408
        %v2914 = vunpack.c.0.s8 %v2913
        %v2915 = vlaneseq
        %v2916 = vshrl.u32 %v2915, 7
        %v2917 = vsub.s32 %v2914, %v2916
        %v2918 = vrot.slane %v2904, %v2917
        %v2919 = vcombine.low %v2886, %v2902
        %v2920 = vcombine.high %v2886, %v2902
        %v2922 = vunpack.c.l.s4 1934713408
        %v2923 = vunpack.c.0.s8 %v2922
        %v2924 = vlaneseq
        %v2925 = vshrl.u32 %v2924, 7
        %v2926 = vsub.s32 %v2923, %v2925
        %v2927 = vrot.slane %v2919, %v2926
        %v2929 = vunpack.c.l.s4 1934713408
        %v2930 = vunpack.c.0.s8 %v2929
        %v2931 = vlaneseq
        %v2932 = vshrl.u32 %v2931, 7
        %v2933 = vsub.s32 %v2930, %v2932
        %v2934 = vrot.slane %v2920, %v2933
        %v2935 = vcombine.high %v2911, 0.0
        %v2936 = vcombine.high %v2918, 0.0
        %v2937 = vcombine.high %v2927, 0.0
        %v2938 = vcombine.high %v2934, 0.0
        %v2939 = vcombine.low %v2911, %v2918
        %v2941 = vunpack.c.l.s4 1983009808
        %v2942 = vunpack.c.0.s8 %v2941
        %v2943 = vlaneseq
        %v2944 = vshrl.u32 %v2943, 7
        %v2945 = vsub.s32 %v2942, %v2944
        %v2946 = vrot.slane %v2939, %v2945
        %v2947 = vcombine.low %v2935, %v2936
        %v2949 = vunpack.c.l.s4 1983009808
        %v2950 = vunpack.c.0.s8 %v2949
        %v2951 = vlaneseq
        %v2952 = vshrl.u32 %v2951, 7
        %v2953 = vsub.s32 %v2950, %v2952
        %v2954 = vrot.slane %v2947, %v2953
        %v2955 = vcombine.low %v2927, %v2934
        %v2957 = vunpack.c.l.s4 1983009808
        %v2958 = vunpack.c.0.s8 %v2957
        %v2959 = vlaneseq
        %v2960 = vshrl.u32 %v2959, 7
        %v2961 = vsub.s32 %v2958, %v2960
        %v2962 = vrot.slane %v2955, %v2961
        %v2963 = vcombine.low %v2937, %v2938
        %v2965 = vunpack.c.l.s4 1983009808
        %v2966 = vunpack.c.0.s8 %v2965
        %v2967 = vlaneseq
        %v2968 = vshrl.u32 %v2967, 7
        %v2969 = vsub.s32 %v2966, %v2968
        %v2970 = vrot.slane %v2963, %v2969
        %v2971 = vcombine.low %v2946, %v2954
        %v2972 = vcombine.high %v2946, %v2954
        %v2974 = vunpack.c.l.s4 1934713408
        %v2975 = vunpack.c.0.s8 %v2974
        %v2976 = vlaneseq
        %v2977 = vshrl.u32 %v2976, 7
        %v2978 = vsub.s32 %v2975, %v2977
        %v2979 = vrot.slane %v2971, %v2978
        %v2981 = vunpack.c.l.s4 1934713408
        %v2982 = vunpack.c.0.s8 %v2981
        %v2983 = vlaneseq
        %v2984 = vshrl.u32 %v2983, 7
        %v2985 = vsub.s32 %v2982, %v2984
        %v2986 = vrot.slane %v2972, %v2985
        %v2987 = vcombine.low %v2962, %v2970
        %v2988 = vcombine.high %v2962, %v2970
        %v2990 = vunpack.c.l.s4 1934713408
        %v2991 = vunpack.c.0.s8 %v2990
        %v2992 = vlaneseq
        %v2993 = vshrl.u32 %v2992, 7
        %v2994 = vsub.s32 %v2991, %v2993
        %v2995 = vrot.slane %v2987, %v2994
        %v2997 = vunpack.c.l.s4 1934713408
        %v2998 = vunpack.c.0.s8 %v2997
        %v2999 = vlaneseq
        %v3000 = vshrl.u32 %v2999, 7
        %v3001 = vsub.s32 %v2998, %v3000
        %v3002 = vrot.slane %v2988, %v3001
        %v3003 = vcombine.low %v2979, %v2995
        %v3004 = vcombine.high %v2979, %v2995
        %v3005 = vcombine.low %v2986, %v3002
        %v3006 = vcombine.high %v2986, %v3002
        %v3007 = vpack.c.bf16 %v3003, %v3003
        %v3008 = vpack.c.bf16 %v3004, %v3004
        %v3009 = vpack.c.bf16 %v3005, %v3005
        %v3010 = vpack.c.bf16 %v3006, %v3006
        %3012 = vrot.lane.b32.xlu0 %v2793, 120
        %v3013 = vpop.permute.xlu0 %3012
        %3015 = vrot.lane.b32.xlu0 %v2793, 112
        %v3016 = vpop.permute.xlu0 %3015
        %3018 = vrot.lane.b32.xlu0 %v2793, 104
        %v3019 = vpop.permute.xlu0 %3018
        %v3021 = vcombine.low %v2793, %v3016
        %v3022 = vcombine.high %v2793, %v3016
        %v3024 = vunpack.c.l.s4 1983009808
        %v3025 = vunpack.c.0.s8 %v3024
        %v3026 = vlaneseq
        %v3027 = vshrl.u32 %v3026, 7
        %v3028 = vsub.s32 %v3025, %v3027
        %v3029 = vrot.slane %v3021, %v3028
        %v3031 = vunpack.c.l.s4 1983009808
        %v3032 = vunpack.c.0.s8 %v3031
        %v3033 = vlaneseq
        %v3034 = vshrl.u32 %v3033, 7
        %v3035 = vsub.s32 %v3032, %v3034
        %v3036 = vrot.slane %v3022, %v3035
        %v3037 = vcombine.low %v3013, %v3019
        %v3038 = vcombine.high %v3013, %v3019
        %v3040 = vunpack.c.l.s4 1983009808
        %v3041 = vunpack.c.0.s8 %v3040
        %v3042 = vlaneseq
        %v3043 = vshrl.u32 %v3042, 7
        %v3044 = vsub.s32 %v3041, %v3043
        %v3045 = vrot.slane %v3037, %v3044
        %v3047 = vunpack.c.l.s4 1983009808
        %v3048 = vunpack.c.0.s8 %v3047
        %v3049 = vlaneseq
        %v3050 = vshrl.u32 %v3049, 7
        %v3051 = vsub.s32 %v3048, %v3050
        %v3052 = vrot.slane %v3038, %v3051
        %v3053 = vcombine.low %v3029, %v3045
        %v3054 = vcombine.high %v3029, %v3045
        %v3056 = vunpack.c.l.s4 1934713408
        %v3057 = vunpack.c.0.s8 %v3056
        %v3058 = vlaneseq
        %v3059 = vshrl.u32 %v3058, 7
        %v3060 = vsub.s32 %v3057, %v3059
        %v3061 = vrot.slane %v3053, %v3060
        %v3063 = vunpack.c.l.s4 1934713408
        %v3064 = vunpack.c.0.s8 %v3063
        %v3065 = vlaneseq
        %v3066 = vshrl.u32 %v3065, 7
        %v3067 = vsub.s32 %v3064, %v3066
        %v3068 = vrot.slane %v3054, %v3067
        %v3069 = vcombine.low %v3036, %v3052
        %v3070 = vcombine.high %v3036, %v3052
        %v3072 = vunpack.c.l.s4 1934713408
        %v3073 = vunpack.c.0.s8 %v3072
        %v3074 = vlaneseq
        %v3075 = vshrl.u32 %v3074, 7
        %v3076 = vsub.s32 %v3073, %v3075
        %v3077 = vrot.slane %v3069, %v3076
        %v3079 = vunpack.c.l.s4 1934713408
        %v3080 = vunpack.c.0.s8 %v3079
        %v3081 = vlaneseq
        %v3082 = vshrl.u32 %v3081, 7
        %v3083 = vsub.s32 %v3080, %v3082
        %v3084 = vrot.slane %v3070, %v3083
        %v3085 = vcombine.high %v3061, 0.0
        %v3086 = vcombine.high %v3068, 0.0
        %v3087 = vcombine.high %v3077, 0.0
        %v3088 = vcombine.high %v3084, 0.0
        %v3089 = vcombine.low %v3061, %v3068
        %v3091 = vunpack.c.l.s4 1983009808
        %v3092 = vunpack.c.0.s8 %v3091
        %v3093 = vlaneseq
        %v3094 = vshrl.u32 %v3093, 7
        %v3095 = vsub.s32 %v3092, %v3094
        %v3096 = vrot.slane %v3089, %v3095
        %v3097 = vcombine.low %v3085, %v3086
        %v3099 = vunpack.c.l.s4 1983009808
        %v3100 = vunpack.c.0.s8 %v3099
        %v3101 = vlaneseq
        %v3102 = vshrl.u32 %v3101, 7
        %v3103 = vsub.s32 %v3100, %v3102
        %v3104 = vrot.slane %v3097, %v3103
        %v3105 = vcombine.low %v3077, %v3084
        %v3107 = vunpack.c.l.s4 1983009808
        %v3108 = vunpack.c.0.s8 %v3107
        %v3109 = vlaneseq
        %v3110 = vshrl.u32 %v3109, 7
        %v3111 = vsub.s32 %v3108, %v3110
        %v3112 = vrot.slane %v3105, %v3111
        %v3113 = vcombine.low %v3087, %v3088
        %v3115 = vunpack.c.l.s4 1983009808
        %v3116 = vunpack.c.0.s8 %v3115
        %v3117 = vlaneseq
        %v3118 = vshrl.u32 %v3117, 7
        %v3119 = vsub.s32 %v3116, %v3118
        %v3120 = vrot.slane %v3113, %v3119
        %v3121 = vcombine.low %v3096, %v3104
        %v3122 = vcombine.high %v3096, %v3104
        %v3124 = vunpack.c.l.s4 1934713408
        %v3125 = vunpack.c.0.s8 %v3124
        %v3126 = vlaneseq
        %v3127 = vshrl.u32 %v3126, 7
        %v3128 = vsub.s32 %v3125, %v3127
        %v3129 = vrot.slane %v3121, %v3128
        %v3131 = vunpack.c.l.s4 1934713408
        %v3132 = vunpack.c.0.s8 %v3131
        %v3133 = vlaneseq
        %v3134 = vshrl.u32 %v3133, 7
        %v3135 = vsub.s32 %v3132, %v3134
        %v3136 = vrot.slane %v3122, %v3135
        %v3137 = vcombine.low %v3112, %v3120
        %v3138 = vcombine.high %v3112, %v3120
        %v3140 = vunpack.c.l.s4 1934713408
        %v3141 = vunpack.c.0.s8 %v3140
        %v3142 = vlaneseq
        %v3143 = vshrl.u32 %v3142, 7
        %v3144 = vsub.s32 %v3141, %v3143
        %v3145 = vrot.slane %v3137, %v3144
        %v3147 = vunpack.c.l.s4 1934713408
        %v3148 = vunpack.c.0.s8 %v3147
        %v3149 = vlaneseq
        %v3150 = vshrl.u32 %v3149, 7
        %v3151 = vsub.s32 %v3148, %v3150
        %v3152 = vrot.slane %v3138, %v3151
        %v3153 = vcombine.low %v3129, %v3145
        %v3154 = vcombine.high %v3129, %v3145
        %v3155 = vcombine.low %v3136, %v3152
        %v3156 = vcombine.high %v3136, %v3152
        %v3157 = vpack.c.bf16 %v3153, %v3153
        %v3158 = vpack.c.bf16 %v3154, %v3154
        %v3159 = vpack.c.bf16 %v3155, %v3155
        %v3160 = vpack.c.bf16 %v3156, %v3156
        %3162 = vrot.lane.b32.xlu0 %v2856, 120
        %v3163 = vpop.permute.xlu0 %3162
        %3165 = vrot.lane.b32.xlu0 %v2856, 112
        %v3166 = vpop.permute.xlu0 %3165
        %3168 = vrot.lane.b32.xlu0 %v2856, 104
        %v3169 = vpop.permute.xlu0 %3168
        %v3171 = vcombine.low %v2856, %v3166
        %v3172 = vcombine.high %v2856, %v3166
        %v3174 = vunpack.c.l.s4 1983009808
        %v3175 = vunpack.c.0.s8 %v3174
        %v3176 = vlaneseq
        %v3177 = vshrl.u32 %v3176, 7
        %v3178 = vsub.s32 %v3175, %v3177
        %v3179 = vrot.slane %v3171, %v3178
        %v3181 = vunpack.c.l.s4 1983009808
        %v3182 = vunpack.c.0.s8 %v3181
        %v3183 = vlaneseq
        %v3184 = vshrl.u32 %v3183, 7
        %v3185 = vsub.s32 %v3182, %v3184
        %v3186 = vrot.slane %v3172, %v3185
        %v3187 = vcombine.low %v3163, %v3169
        %v3188 = vcombine.high %v3163, %v3169
        %v3190 = vunpack.c.l.s4 1983009808
        %v3191 = vunpack.c.0.s8 %v3190
        %v3192 = vlaneseq
        %v3193 = vshrl.u32 %v3192, 7
        %v3194 = vsub.s32 %v3191, %v3193
        %v3195 = vrot.slane %v3187, %v3194
        %v3197 = vunpack.c.l.s4 1983009808
        %v3198 = vunpack.c.0.s8 %v3197
        %v3199 = vlaneseq
        %v3200 = vshrl.u32 %v3199, 7
        %v3201 = vsub.s32 %v3198, %v3200
        %v3202 = vrot.slane %v3188, %v3201
        %v3203 = vcombine.low %v3179, %v3195
        %v3204 = vcombine.high %v3179, %v3195
        %v3206 = vunpack.c.l.s4 1934713408
        %v3207 = vunpack.c.0.s8 %v3206
        %v3208 = vlaneseq
        %v3209 = vshrl.u32 %v3208, 7
        %v3210 = vsub.s32 %v3207, %v3209
        %v3211 = vrot.slane %v3203, %v3210
        %v3213 = vunpack.c.l.s4 1934713408
        %v3214 = vunpack.c.0.s8 %v3213
        %v3215 = vlaneseq
        %v3216 = vshrl.u32 %v3215, 7
        %v3217 = vsub.s32 %v3214, %v3216
        %v3218 = vrot.slane %v3204, %v3217
        %v3219 = vcombine.low %v3186, %v3202
        %v3220 = vcombine.high %v3186, %v3202
        %v3222 = vunpack.c.l.s4 1934713408
        %v3223 = vunpack.c.0.s8 %v3222
        %v3224 = vlaneseq
        %v3225 = vshrl.u32 %v3224, 7
        %v3226 = vsub.s32 %v3223, %v3225
        %v3227 = vrot.slane %v3219, %v3226
        %v3229 = vunpack.c.l.s4 1934713408
        %v3230 = vunpack.c.0.s8 %v3229
        %v3231 = vlaneseq
        %v3232 = vshrl.u32 %v3231, 7
        %v3233 = vsub.s32 %v3230, %v3232
        %v3234 = vrot.slane %v3220, %v3233
        %v3235 = vcombine.high %v3211, 0.0
        %v3236 = vcombine.high %v3218, 0.0
        %v3237 = vcombine.high %v3227, 0.0
        %v3238 = vcombine.high %v3234, 0.0
        %v3239 = vcombine.low %v3211, %v3218
        %v3241 = vunpack.c.l.s4 1983009808
        %v3242 = vunpack.c.0.s8 %v3241
        %v3243 = vlaneseq
        %v3244 = vshrl.u32 %v3243, 7
        %v3245 = vsub.s32 %v3242, %v3244
        %v3246 = vrot.slane %v3239, %v3245
        %v3247 = vcombine.low %v3235, %v3236
        %v3249 = vunpack.c.l.s4 1983009808
        %v3250 = vunpack.c.0.s8 %v3249
        %v3251 = vlaneseq
        %v3252 = vshrl.u32 %v3251, 7
        %v3253 = vsub.s32 %v3250, %v3252
        %v3254 = vrot.slane %v3247, %v3253
        %v3255 = vcombine.low %v3227, %v3234
        %v3257 = vunpack.c.l.s4 1983009808
        %v3258 = vunpack.c.0.s8 %v3257
        %v3259 = vlaneseq
        %v3260 = vshrl.u32 %v3259, 7
        %v3261 = vsub.s32 %v3258, %v3260
        %v3262 = vrot.slane %v3255, %v3261
        %v3263 = vcombine.low %v3237, %v3238
        %v3265 = vunpack.c.l.s4 1983009808
        %v3266 = vunpack.c.0.s8 %v3265
        %v3267 = vlaneseq
        %v3268 = vshrl.u32 %v3267, 7
        %v3269 = vsub.s32 %v3266, %v3268
        %v3270 = vrot.slane %v3263, %v3269
        %v3271 = vcombine.low %v3246, %v3254
        %v3272 = vcombine.high %v3246, %v3254
        %v3274 = vunpack.c.l.s4 1934713408
        %v3275 = vunpack.c.0.s8 %v3274
        %v3276 = vlaneseq
        %v3277 = vshrl.u32 %v3276, 7
        %v3278 = vsub.s32 %v3275, %v3277
        %v3279 = vrot.slane %v3271, %v3278
        %v3281 = vunpack.c.l.s4 1934713408
        %v3282 = vunpack.c.0.s8 %v3281
        %v3283 = vlaneseq
        %v3284 = vshrl.u32 %v3283, 7
        %v3285 = vsub.s32 %v3282, %v3284
        %v3286 = vrot.slane %v3272, %v3285
        %v3287 = vcombine.low %v3262, %v3270
        %v3288 = vcombine.high %v3262, %v3270
        %v3290 = vunpack.c.l.s4 1934713408
        %v3291 = vunpack.c.0.s8 %v3290
        %v3292 = vlaneseq
        %v3293 = vshrl.u32 %v3292, 7
        %v3294 = vsub.s32 %v3291, %v3293
        %v3295 = vrot.slane %v3287, %v3294
        %v3297 = vunpack.c.l.s4 1934713408
        %v3298 = vunpack.c.0.s8 %v3297
        %v3299 = vlaneseq
        %v3300 = vshrl.u32 %v3299, 7
        %v3301 = vsub.s32 %v3298, %v3300
        %v3302 = vrot.slane %v3288, %v3301
        %v3303 = vcombine.low %v3279, %v3295
        %v3304 = vcombine.high %v3279, %v3295
        %v3305 = vcombine.low %v3286, %v3302
        %v3306 = vcombine.high %v3286, %v3302
        %v3307 = vpack.c.bf16 %v3303, %v3303
        %v3308 = vpack.c.bf16 %v3304, %v3304
        %v3309 = vpack.c.bf16 %v3305, %v3305
        %v3310 = vpack.c.bf16 %v3306, %v3306
        %v3312 = vlaneseq
        %v3313 = vshrl.u32 %v3312, 7
        %v3314 = vsub.s32 0, %v3313
        %v3315 = vrot.slane %v1342, %v3314
        %v3318 = vsel %vm1987, %v3007, 0
        %v3321 = vsel %vm1987, %v3157, 0
        %3323 = vmatprep.subr.bf16.mxu0 0
        %3324 = vmatpush1.bf16.xpose.msra.mxu0 %v3321
        %3325 = vmatprep.subr.bf16.mxu0 0
        %3326 = vmatpush1.bf16.xpose.msra.mxu0 0
        %3327 = vmatprep.subr.bf16.mxu0 0
        %3328 = vmatpush1.bf16.xpose.msra.mxu0 0
        %3329 = vmatprep.subr.bf16.mxu0 0
        %3330 = vmatpush1.bf16.xpose.msra.mxu0 0
        %3331 = vmatprep.subr.bf16.mxu0 0
        %3332 = vmatpush1.bf16.xpose.msra.mxu0 0
        %3333 = vmatprep.subr.bf16.mxu0 0
        %3334 = vmatpush1.bf16.xpose.msra.mxu0 0
        %3335 = vmatprep.subr.bf16.mxu0 0
        %3336 = vmatpush1.bf16.xpose.msra.mxu0 0
        %3337 = vmatprep.subr.bf16.mxu0 0
        %3338 = vmatpush1.bf16.xpose.msra.mxu0 0
        %3339 = vmatprep.subr.bf16.mxu0 0
        %3340 = vmatpush1.bf16.xpose.msra.mxu0 0
        %3341 = vmatprep.subr.bf16.mxu0 0
        %3342 = vmatpush1.bf16.xpose.msra.mxu0 0
        %3343 = vmatprep.subr.bf16.mxu0 0
        %3344 = vmatpush1.bf16.xpose.msra.mxu0 0
        %3345 = vmatprep.subr.bf16.mxu0 0
        %3346 = vmatpush1.bf16.xpose.msra.mxu0 0
        %3347 = vmatprep.subr.bf16.mxu0 0
        %3348 = vmatpush1.bf16.xpose.msra.mxu0 0
        %3349 = vmatprep.subr.bf16.mxu0 0
        %3350 = vmatpush1.bf16.xpose.msra.mxu0 0
        %3351 = vmatprep.subr.bf16.mxu0 0
        %3352 = vmatpush1.bf16.xpose.msra.mxu0 0
        %3353 = vmatprep.subr.bf16.mxu0 0
        %3354 = vmatpush1.bf16.xpose.msra.mxu0 0
        %3355 = vmatprep.mubr.bf16.mxu0 0
        %3356 = vmatmul.mubr.bf16.gmra.mrb[0].mxu0 %v3318
        %v3357 = vpop.f32.mrb[0].mxu0
        %v3358 = vadd.f32 %v3315, %v3357
        %v3359 = vpop.f32.mrb[0].mxu0
        %v3360 = vpop.f32.mrb[0].mxu0
        %v3361 = vpop.f32.mrb[0].mxu0
        %3362 = vdwg.mxu0
        %v3364 = vsel %vm1987, %v3008, 0
        %v3367 = vsel %vm1987, %v3158, 0
        %3369 = vmatprep.subr.bf16.mxu0 0
        %3370 = vmatpush1.bf16.xpose.msra.mxu0 %v3367
        %3371 = vmatprep.subr.bf16.mxu0 0
        %3372 = vmatpush1.bf16.xpose.msra.mxu0 0
        %3373 = vmatprep.subr.bf16.mxu0 0
        %3374 = vmatpush1.bf16.xpose.msra.mxu0 0
        %3375 = vmatprep.subr.bf16.mxu0 0
        %3376 = vmatpush1.bf16.xpose.msra.mxu0 0
        %3377 = vmatprep.subr.bf16.mxu0 0
        %3378 = vmatpush1.bf16.xpose.msra.mxu0 0
        %3379 = vmatprep.subr.bf16.mxu0 0
        %3380 = vmatpush1.bf16.xpose.msra.mxu0 0
        %3381 = vmatprep.subr.bf16.mxu0 0
        %3382 = vmatpush1.bf16.xpose.msra.mxu0 0
        %3383 = vmatprep.subr.bf16.mxu0 0
        %3384 = vmatpush1.bf16.xpose.msra.mxu0 0
        %3385 = vmatprep.subr.bf16.mxu0 0
        %3386 = vmatpush1.bf16.xpose.msra.mxu0 0
        %3387 = vmatprep.subr.bf16.mxu0 0
        %3388 = vmatpush1.bf16.xpose.msra.mxu0 0
        %3389 = vmatprep.subr.bf16.mxu0 0
        %3390 = vmatpush1.bf16.xpose.msra.mxu0 0
        %3391 = vmatprep.subr.bf16.mxu0 0
        %3392 = vmatpush1.bf16.xpose.msra.mxu0 0
        %3393 = vmatprep.subr.bf16.mxu0 0
        %3394 = vmatpush1.bf16.xpose.msra.mxu0 0
        %3395 = vmatprep.subr.bf16.mxu0 0
        %3396 = vmatpush1.bf16.xpose.msra.mxu0 0
        %3397 = vmatprep.subr.bf16.mxu0 0
        %3398 = vmatpush1.bf16.xpose.msra.mxu0 0
        %3399 = vmatprep.subr.bf16.mxu0 0
        %3400 = vmatpush1.bf16.xpose.msra.mxu0 0
        %3401 = vmatprep.mubr.bf16.mxu0 0
        %3402 = vmatmul.mubr.bf16.gmra.mrb[0].mxu0 %v3364
        %v3403 = vpop.f32.mrb[0].mxu0
        %v3404 = vadd.f32 %v3315, %v3403
        %v3405 = vpop.f32.mrb[0].mxu0
        %v3406 = vpop.f32.mrb[0].mxu0
        %v3407 = vpop.f32.mrb[0].mxu0
        %3408 = vdwg.mxu0
        %v3410 = vsel %vm1987, %v3009, 0
        %v3413 = vsel %vm1987, %v3159, 0
        %3415 = vmatprep.subr.bf16.mxu0 0
        %3416 = vmatpush1.bf16.xpose.msra.mxu0 %v3413
        %3417 = vmatprep.subr.bf16.mxu0 0
        %3418 = vmatpush1.bf16.xpose.msra.mxu0 0
        %3419 = vmatprep.subr.bf16.mxu0 0
        %3420 = vmatpush1.bf16.xpose.msra.mxu0 0
        %3421 = vmatprep.subr.bf16.mxu0 0
        %3422 = vmatpush1.bf16.xpose.msra.mxu0 0
        %3423 = vmatprep.subr.bf16.mxu0 0
        %3424 = vmatpush1.bf16.xpose.msra.mxu0 0
        %3425 = vmatprep.subr.bf16.mxu0 0
        %3426 = vmatpush1.bf16.xpose.msra.mxu0 0
        %3427 = vmatprep.subr.bf16.mxu0 0
        %3428 = vmatpush1.bf16.xpose.msra.mxu0 0
        %3429 = vmatprep.subr.bf16.mxu0 0
        %3430 = vmatpush1.bf16.xpose.msra.mxu0 0
        %3431 = vmatprep.subr.bf16.mxu0 0
        %3432 = vmatpush1.bf16.xpose.msra.mxu0 0
        %3433 = vmatprep.subr.bf16.mxu0 0
        %3434 = vmatpush1.bf16.xpose.msra.mxu0 0
        %3435 = vmatprep.subr.bf16.mxu0 0
        %3436 = vmatpush1.bf16.xpose.msra.mxu0 0
        %3437 = vmatprep.subr.bf16.mxu0 0
        %3438 = vmatpush1.bf16.xpose.msra.mxu0 0
        %3439 = vmatprep.subr.bf16.mxu0 0
        %3440 = vmatpush1.bf16.xpose.msra.mxu0 0
        %3441 = vmatprep.subr.bf16.mxu0 0
        %3442 = vmatpush1.bf16.xpose.msra.mxu0 0
        %3443 = vmatprep.subr.bf16.mxu0 0
        %3444 = vmatpush1.bf16.xpose.msra.mxu0 0
        %3445 = vmatprep.subr.bf16.mxu0 0
        %3446 = vmatpush1.bf16.xpose.msra.mxu0 0
        %3447 = vmatprep.mubr.bf16.mxu0 0
        %3448 = vmatmul.mubr.bf16.gmra.mrb[0].mxu0 %v3410
        %v3449 = vpop.f32.mrb[0].mxu0
        %v3450 = vadd.f32 %v3315, %v3449
        %v3451 = vpop.f32.mrb[0].mxu0
        %v3452 = vpop.f32.mrb[0].mxu0
        %v3453 = vpop.f32.mrb[0].mxu0
        %3454 = vdwg.mxu0
        %v3456 = vsel %vm1987, %v3010, 0
        %v3459 = vsel %vm1987, %v3160, 0
        %3461 = vmatprep.subr.bf16.mxu0 0
        %3462 = vmatpush1.bf16.xpose.msra.mxu0 %v3459
        %3463 = vmatprep.subr.bf16.mxu0 0
        %3464 = vmatpush1.bf16.xpose.msra.mxu0 0
        %3465 = vmatprep.subr.bf16.mxu0 0
        %3466 = vmatpush1.bf16.xpose.msra.mxu0 0
        %3467 = vmatprep.subr.bf16.mxu0 0
        %3468 = vmatpush1.bf16.xpose.msra.mxu0 0
        %3469 = vmatprep.subr.bf16.mxu0 0
        %3470 = vmatpush1.bf16.xpose.msra.mxu0 0
        %3471 = vmatprep.subr.bf16.mxu0 0
        %3472 = vmatpush1.bf16.xpose.msra.mxu0 0
        %3473 = vmatprep.subr.bf16.mxu0 0
        %3474 = vmatpush1.bf16.xpose.msra.mxu0 0
        %3475 = vmatprep.subr.bf16.mxu0 0
        %3476 = vmatpush1.bf16.xpose.msra.mxu0 0
        %3477 = vmatprep.subr.bf16.mxu0 0
        %3478 = vmatpush1.bf16.xpose.msra.mxu0 0
        %3479 = vmatprep.subr.bf16.mxu0 0
        %3480 = vmatpush1.bf16.xpose.msra.mxu0 0
        %3481 = vmatprep.subr.bf16.mxu0 0
        %3482 = vmatpush1.bf16.xpose.msra.mxu0 0
        %3483 = vmatprep.subr.bf16.mxu0 0
        %3484 = vmatpush1.bf16.xpose.msra.mxu0 0
        %3485 = vmatprep.subr.bf16.mxu0 0
        %3486 = vmatpush1.bf16.xpose.msra.mxu0 0
        %3487 = vmatprep.subr.bf16.mxu0 0
        %3488 = vmatpush1.bf16.xpose.msra.mxu0 0
        %3489 = vmatprep.subr.bf16.mxu0 0
        %3490 = vmatpush1.bf16.xpose.msra.mxu0 0
        %3491 = vmatprep.subr.bf16.mxu0 0
        %3492 = vmatpush1.bf16.xpose.msra.mxu0 0
        %3493 = vmatprep.mubr.bf16.mxu0 0
        %3494 = vmatmul.mubr.bf16.gmra.mrb[0].mxu0 %v3456
        %v3495 = vpop.f32.mrb[0].mxu0
        %v3496 = vadd.f32 %v3315, %v3495
        %v3497 = vpop.f32.mrb[0].mxu0
        %v3498 = vpop.f32.mrb[0].mxu0
        %v3499 = vpop.f32.mrb[0].mxu0
        %3500 = vdwg.mxu0
        %v3501 = vsel %vm1987, %v3358, -inf
        %3502 = vmax.xlane.f32.xlu0 %v3501
        %v3503 = vpop.xlane.xlu0 %3502
        %v3504 = vsel %vm1987, %v3404, -inf
        %3505 = vmax.xlane.f32.xlu0 %v3504
        %v3506 = vpop.xlane.xlu0 %3505
        %v3507 = vsel %vm1987, %v3450, -inf
        %3508 = vmax.xlane.f32.xlu0 %v3507
        %v3509 = vpop.xlane.xlu0 %3508
        %v3510 = vsel %vm1987, %v3496, -inf
        %3511 = vmax.xlane.f32.xlu0 %v3510
        %v3512 = vpop.xlane.xlu0 %3511
        %v3513 = vsub.f32 %v3358, %v3503
        %v3514 = vsub.f32 %v3404, %v3506
        %v3515 = vsub.f32 %v3450, %v3509
        %v3516 = vsub.f32 %v3496, %v3512
        %v3517 = vmul.f32 %v3513, 1.442695
        %v3518 = vpow.pop %v3517
        %v3519 = vmul.f32 %v3514, 1.442695
        %v3520 = vpow.pop %v3519
        %v3521 = vmul.f32 %v3515, 1.442695
        %v3522 = vpow.pop %v3521
        %v3523 = vmul.f32 %v3516, 1.442695
        %v3524 = vpow.pop %v3523
        %v3525 = vsel %vm1987, %v3518, 0.0
        %3526 = vadd.xlane.f32.xlu0 %v3525
        %v3527 = vpop.xlane.xlu0 %3526
        %v3528 = vsel %vm1987, %v3520, 0.0
        %3529 = vadd.xlane.f32.xlu0 %v3528
        %v3530 = vpop.xlane.xlu0 %3529
        %v3531 = vsel %vm1987, %v3522, 0.0
        %3532 = vadd.xlane.f32.xlu0 %v3531
        %v3533 = vpop.xlane.xlu0 %3532
        %v3534 = vsel %vm1987, %v3524, 0.0
        %3535 = vadd.xlane.f32.xlu0 %v3534
        %v3536 = vpop.xlane.xlu0 %3535
        %v3537 = vrcp.pop %v3527
        %v3538 = vrcp.pop %v3530
        %v3539 = vrcp.pop %v3533
        %v3540 = vrcp.pop %v3536
        %v3541 = vmul.f32 %v3518, %v3537
        %v3542 = vmul.f32 %v3520, %v3538
        %v3543 = vmul.f32 %v3522, %v3539
        %v3544 = vmul.f32 %v3524, %v3540
        %v3545 = vpack.c.bf16 %v3541, %v3541
        %v3546 = vpack.c.bf16 %v3542, %v3542
        %v3547 = vpack.c.bf16 %v3543, %v3543
        %v3548 = vpack.c.bf16 %v3544, %v3544
        %v3550 = vsel %vm1987, %v3545, 0
        %v3553 = vsel %vm2223, %v3307, 0
        %3555 = vmatprep.subr.bf16.mxu0 0
        %3556 = vmatpush1.bf16.msra.mxu0 %v3553
        %3557 = vmatprep.subr.bf16.mxu0 0
        %3558 = vmatpush1.bf16.msra.mxu0 0
        %3559 = vmatprep.subr.bf16.mxu0 0
        %3560 = vmatpush1.bf16.msra.mxu0 0
        %3561 = vmatprep.subr.bf16.mxu0 0
        %3562 = vmatpush1.bf16.msra.mxu0 0
        %3563 = vmatprep.subr.bf16.mxu0 0
        %3564 = vmatpush1.bf16.msra.mxu0 0
        %3565 = vmatprep.subr.bf16.mxu0 0
        %3566 = vmatpush1.bf16.msra.mxu0 0
        %3567 = vmatprep.subr.bf16.mxu0 0
        %3568 = vmatpush1.bf16.msra.mxu0 0
        %3569 = vmatprep.subr.bf16.mxu0 0
        %3570 = vmatpush1.bf16.msra.mxu0 0
        %3571 = vmatprep.subr.bf16.mxu0 0
        %3572 = vmatpush1.bf16.msra.mxu0 0
        %3573 = vmatprep.subr.bf16.mxu0 0
        %3574 = vmatpush1.bf16.msra.mxu0 0
        %3575 = vmatprep.subr.bf16.mxu0 0
        %3576 = vmatpush1.bf16.msra.mxu0 0
        %3577 = vmatprep.subr.bf16.mxu0 0
        %3578 = vmatpush1.bf16.msra.mxu0 0
        %3579 = vmatprep.subr.bf16.mxu0 0
        %3580 = vmatpush1.bf16.msra.mxu0 0
        %3581 = vmatprep.subr.bf16.mxu0 0
        %3582 = vmatpush1.bf16.msra.mxu0 0
        %3583 = vmatprep.subr.bf16.mxu0 0
        %3584 = vmatpush1.bf16.msra.mxu0 0
        %3585 = vmatprep.subr.bf16.mxu0 0
        %3586 = vmatpush1.bf16.msra.mxu0 0
        %3587 = vmatprep.mubr.bf16.mxu0 0
        %3588 = vmatmul.mubr.bf16.gmra.mrb[0].mxu0 %v3550
        %v3589 = vpop.f32.mrb[0].mxu0
        %v3590 = vadd.f32 0.0, %v3589
        %v3591 = vpop.f32.mrb[0].mxu0
        %v3592 = vpop.f32.mrb[0].mxu0
        %v3593 = vpop.f32.mrb[0].mxu0
        %3594 = vdwg.mxu0
        %v3596 = vsel %vm1987, %v3546, 0
        %v3599 = vsel %vm2223, %v3308, 0
        %3601 = vmatprep.subr.bf16.mxu0 0
        %3602 = vmatpush1.bf16.msra.mxu0 %v3599
        %3603 = vmatprep.subr.bf16.mxu0 0
        %3604 = vmatpush1.bf16.msra.mxu0 0
        %3605 = vmatprep.subr.bf16.mxu0 0
        %3606 = vmatpush1.bf16.msra.mxu0 0
        %3607 = vmatprep.subr.bf16.mxu0 0
        %3608 = vmatpush1.bf16.msra.mxu0 0
        %3609 = vmatprep.subr.bf16.mxu0 0
        %3610 = vmatpush1.bf16.msra.mxu0 0
        %3611 = vmatprep.subr.bf16.mxu0 0
        %3612 = vmatpush1.bf16.msra.mxu0 0
        %3613 = vmatprep.subr.bf16.mxu0 0
        %3614 = vmatpush1.bf16.msra.mxu0 0
        %3615 = vmatprep.subr.bf16.mxu0 0
        %3616 = vmatpush1.bf16.msra.mxu0 0
        %3617 = vmatprep.subr.bf16.mxu0 0
        %3618 = vmatpush1.bf16.msra.mxu0 0
        %3619 = vmatprep.subr.bf16.mxu0 0
        %3620 = vmatpush1.bf16.msra.mxu0 0
        %3621 = vmatprep.subr.bf16.mxu0 0
        %3622 = vmatpush1.bf16.msra.mxu0 0
        %3623 = vmatprep.subr.bf16.mxu0 0
        %3624 = vmatpush1.bf16.msra.mxu0 0
        %3625 = vmatprep.subr.bf16.mxu0 0
        %3626 = vmatpush1.bf16.msra.mxu0 0
        %3627 = vmatprep.subr.bf16.mxu0 0
        %3628 = vmatpush1.bf16.msra.mxu0 0
        %3629 = vmatprep.subr.bf16.mxu0 0
        %3630 = vmatpush1.bf16.msra.mxu0 0
        %3631 = vmatprep.subr.bf16.mxu0 0
        %3632 = vmatpush1.bf16.msra.mxu0 0
        %3633 = vmatprep.mubr.bf16.mxu0 0
        %3634 = vmatmul.mubr.bf16.gmra.mrb[0].mxu0 %v3596
        %v3635 = vpop.f32.mrb[0].mxu0
        %v3636 = vadd.f32 0.0, %v3635
        %v3637 = vpop.f32.mrb[0].mxu0
        %v3638 = vpop.f32.mrb[0].mxu0
        %v3639 = vpop.f32.mrb[0].mxu0
        %3640 = vdwg.mxu0
        %v3642 = vsel %vm1987, %v3547, 0
        %v3645 = vsel %vm2223, %v3309, 0
        %3647 = vmatprep.subr.bf16.mxu0 0
        %3648 = vmatpush1.bf16.msra.mxu0 %v3645
        %3649 = vmatprep.subr.bf16.mxu0 0
        %3650 = vmatpush1.bf16.msra.mxu0 0
        %3651 = vmatprep.subr.bf16.mxu0 0
        %3652 = vmatpush1.bf16.msra.mxu0 0
        %3653 = vmatprep.subr.bf16.mxu0 0
        %3654 = vmatpush1.bf16.msra.mxu0 0
        %3655 = vmatprep.subr.bf16.mxu0 0
        %3656 = vmatpush1.bf16.msra.mxu0 0
        %3657 = vmatprep.subr.bf16.mxu0 0
        %3658 = vmatpush1.bf16.msra.mxu0 0
        %3659 = vmatprep.subr.bf16.mxu0 0
        %3660 = vmatpush1.bf16.msra.mxu0 0
        %3661 = vmatprep.subr.bf16.mxu0 0
        %3662 = vmatpush1.bf16.msra.mxu0 0
        %3663 = vmatprep.subr.bf16.mxu0 0
        %3664 = vmatpush1.bf16.msra.mxu0 0
        %3665 = vmatprep.subr.bf16.mxu0 0
        %3666 = vmatpush1.bf16.msra.mxu0 0
        %3667 = vmatprep.subr.bf16.mxu0 0
        %3668 = vmatpush1.bf16.msra.mxu0 0
        %3669 = vmatprep.subr.bf16.mxu0 0
        %3670 = vmatpush1.bf16.msra.mxu0 0
        %3671 = vmatprep.subr.bf16.mxu0 0
        %3672 = vmatpush1.bf16.msra.mxu0 0
        %3673 = vmatprep.subr.bf16.mxu0 0
        %3674 = vmatpush1.bf16.msra.mxu0 0
        %3675 = vmatprep.subr.bf16.mxu0 0
        %3676 = vmatpush1.bf16.msra.mxu0 0
        %3677 = vmatprep.subr.bf16.mxu0 0
        %3678 = vmatpush1.bf16.msra.mxu0 0
        %3679 = vmatprep.mubr.bf16.mxu0 0
        %3680 = vmatmul.mubr.bf16.gmra.mrb[0].mxu0 %v3642
        %v3681 = vpop.f32.mrb[0].mxu0
        %v3682 = vadd.f32 0.0, %v3681
        %v3683 = vpop.f32.mrb[0].mxu0
        %v3684 = vpop.f32.mrb[0].mxu0
        %v3685 = vpop.f32.mrb[0].mxu0
        %3686 = vdwg.mxu0
        %v3688 = vsel %vm1987, %v3548, 0
        %v3691 = vsel %vm2223, %v3310, 0
        %3693 = vmatprep.subr.bf16.mxu0 0
        %3694 = vmatpush1.bf16.msra.mxu0 %v3691
        %3695 = vmatprep.subr.bf16.mxu0 0
        %3696 = vmatpush1.bf16.msra.mxu0 0
        %3697 = vmatprep.subr.bf16.mxu0 0
        %3698 = vmatpush1.bf16.msra.mxu0 0
        %3699 = vmatprep.subr.bf16.mxu0 0
        %3700 = vmatpush1.bf16.msra.mxu0 0
        %3701 = vmatprep.subr.bf16.mxu0 0
        %3702 = vmatpush1.bf16.msra.mxu0 0
        %3703 = vmatprep.subr.bf16.mxu0 0
        %3704 = vmatpush1.bf16.msra.mxu0 0
        %3705 = vmatprep.subr.bf16.mxu0 0
        %3706 = vmatpush1.bf16.msra.mxu0 0
        %3707 = vmatprep.subr.bf16.mxu0 0
        %3708 = vmatpush1.bf16.msra.mxu0 0
        %3709 = vmatprep.subr.bf16.mxu0 0
        %3710 = vmatpush1.bf16.msra.mxu0 0
        %3711 = vmatprep.subr.bf16.mxu0 0
        %3712 = vmatpush1.bf16.msra.mxu0 0
        %3713 = vmatprep.subr.bf16.mxu0 0
        %3714 = vmatpush1.bf16.msra.mxu0 0
        %3715 = vmatprep.subr.bf16.mxu0 0
        %3716 = vmatpush1.bf16.msra.mxu0 0
        %3717 = vmatprep.subr.bf16.mxu0 0
        %3718 = vmatpush1.bf16.msra.mxu0 0
        %3719 = vmatprep.subr.bf16.mxu0 0
        %3720 = vmatpush1.bf16.msra.mxu0 0
        %3721 = vmatprep.subr.bf16.mxu0 0
        %3722 = vmatpush1.bf16.msra.mxu0 0
        %3723 = vmatprep.subr.bf16.mxu0 0
        %3724 = vmatpush1.bf16.msra.mxu0 0
        %3725 = vmatprep.mubr.bf16.mxu0 0
        %3726 = vmatmul.mubr.bf16.gmra.mrb[0].mxu0 %v3688
        %v3727 = vpop.f32.mrb[0].mxu0
        %v3728 = vadd.f32 0.0, %v3727
        %v3729 = vpop.f32.mrb[0].mxu0
        %v3730 = vpop.f32.mrb[0].mxu0
        %v3731 = vpop.f32.mrb[0].mxu0
        %3732 = vdwg.mxu0
        %v3733 = vcombine.low %v3590, %v3682
        %v3734 = vcombine.high %v3590, %v3682
        %v3736 = vunpack.c.l.s4 1983009808
        %v3737 = vunpack.c.0.s8 %v3736
        %v3738 = vlaneseq
        %v3739 = vshrl.u32 %v3738, 7
        %v3740 = vsub.s32 %v3737, %v3739
        %v3741 = vrot.slane %v3733, %v3740
        %v3743 = vunpack.c.l.s4 1983009808
        %v3744 = vunpack.c.0.s8 %v3743
        %v3745 = vlaneseq
        %v3746 = vshrl.u32 %v3745, 7
        %v3747 = vsub.s32 %v3744, %v3746
        %v3748 = vrot.slane %v3734, %v3747
        %v3749 = vcombine.low %v3636, %v3728
        %v3750 = vcombine.high %v3636, %v3728
        %v3752 = vunpack.c.l.s4 1983009808
        %v3753 = vunpack.c.0.s8 %v3752
        %v3754 = vlaneseq
        %v3755 = vshrl.u32 %v3754, 7
        %v3756 = vsub.s32 %v3753, %v3755
        %v3757 = vrot.slane %v3749, %v3756
        %v3759 = vunpack.c.l.s4 1983009808
        %v3760 = vunpack.c.0.s8 %v3759
        %v3761 = vlaneseq
        %v3762 = vshrl.u32 %v3761, 7
        %v3763 = vsub.s32 %v3760, %v3762
        %v3764 = vrot.slane %v3750, %v3763
        %v3765 = vcombine.low %v3741, %v3757
        %v3766 = vcombine.high %v3741, %v3757
        %v3768 = vunpack.c.l.s4 1934713408
        %v3769 = vunpack.c.0.s8 %v3768
        %v3770 = vlaneseq
        %v3771 = vshrl.u32 %v3770, 7
        %v3772 = vsub.s32 %v3769, %v3771
        %v3773 = vrot.slane %v3765, %v3772
        %v3775 = vunpack.c.l.s4 1934713408
        %v3776 = vunpack.c.0.s8 %v3775
        %v3777 = vlaneseq
        %v3778 = vshrl.u32 %v3777, 7
        %v3779 = vsub.s32 %v3776, %v3778
        %v3780 = vrot.slane %v3766, %v3779
        %v3781 = vcombine.low %v3748, %v3764
        %v3782 = vcombine.high %v3748, %v3764
        %v3784 = vunpack.c.l.s4 1934713408
        %v3785 = vunpack.c.0.s8 %v3784
        %v3786 = vlaneseq
        %v3787 = vshrl.u32 %v3786, 7
        %v3788 = vsub.s32 %v3785, %v3787
        %v3789 = vrot.slane %v3781, %v3788
        %v3791 = vunpack.c.l.s4 1934713408
        %v3792 = vunpack.c.0.s8 %v3791
        %v3793 = vlaneseq
        %v3794 = vshrl.u32 %v3793, 7
        %v3795 = vsub.s32 %v3792, %v3794
        %v3796 = vrot.slane %v3782, %v3795
        %v3797 = vcombine.high %v3773, 0.0
        %v3798 = vcombine.high %v3780, 0.0
        %v3799 = vcombine.high %v3789, 0.0
        %v3800 = vcombine.high %v3796, 0.0
        %v3801 = vcombine.low %v3773, %v3780
        %v3803 = vunpack.c.l.s4 1983009808
        %v3804 = vunpack.c.0.s8 %v3803
        %v3805 = vlaneseq
        %v3806 = vshrl.u32 %v3805, 7
        %v3807 = vsub.s32 %v3804, %v3806
        %v3808 = vrot.slane %v3801, %v3807
        %v3809 = vcombine.low %v3797, %v3798
        %v3811 = vunpack.c.l.s4 1983009808
        %v3812 = vunpack.c.0.s8 %v3811
        %v3813 = vlaneseq
        %v3814 = vshrl.u32 %v3813, 7
        %v3815 = vsub.s32 %v3812, %v3814
        %v3816 = vrot.slane %v3809, %v3815
        %v3817 = vcombine.low %v3789, %v3796
        %v3819 = vunpack.c.l.s4 1983009808
        %v3820 = vunpack.c.0.s8 %v3819
        %v3821 = vlaneseq
        %v3822 = vshrl.u32 %v3821, 7
        %v3823 = vsub.s32 %v3820, %v3822
        %v3824 = vrot.slane %v3817, %v3823
        %v3825 = vcombine.low %v3799, %v3800
        %v3827 = vunpack.c.l.s4 1983009808
        %v3828 = vunpack.c.0.s8 %v3827
        %v3829 = vlaneseq
        %v3830 = vshrl.u32 %v3829, 7
        %v3831 = vsub.s32 %v3828, %v3830
        %v3832 = vrot.slane %v3825, %v3831
        %v3833 = vcombine.low %v3808, %v3816
        %v3834 = vcombine.high %v3808, %v3816
        %v3836 = vunpack.c.l.s4 1934713408
        %v3837 = vunpack.c.0.s8 %v3836
        %v3838 = vlaneseq
        %v3839 = vshrl.u32 %v3838, 7
        %v3840 = vsub.s32 %v3837, %v3839
        %v3841 = vrot.slane %v3833, %v3840
        %v3843 = vunpack.c.l.s4 1934713408
        %v3844 = vunpack.c.0.s8 %v3843
        %v3845 = vlaneseq
        %v3846 = vshrl.u32 %v3845, 7
        %v3847 = vsub.s32 %v3844, %v3846
        %v3848 = vrot.slane %v3834, %v3847
        %v3849 = vcombine.low %v3824, %v3832
        %v3850 = vcombine.high %v3824, %v3832
        %v3852 = vunpack.c.l.s4 1934713408
        %v3853 = vunpack.c.0.s8 %v3852
        %v3854 = vlaneseq
        %v3855 = vshrl.u32 %v3854, 7
        %v3856 = vsub.s32 %v3853, %v3855
        %v3857 = vrot.slane %v3849, %v3856
        %v3859 = vunpack.c.l.s4 1934713408
        %v3860 = vunpack.c.0.s8 %v3859
        %v3861 = vlaneseq
        %v3862 = vshrl.u32 %v3861, 7
        %v3863 = vsub.s32 %v3860, %v3862
        %v3864 = vrot.slane %v3850, %v3863
        %v3865 = vcombine.low %v3841, %v3857
        %v3866 = vcombine.high %v3841, %v3857
        %v3867 = vcombine.low %v3848, %v3864
        %v3868 = vcombine.high %v3848, %v3864
        %3870 = vrot.lane.b32.xlu0 %v3866, 8
        %v3871 = vpop.permute.xlu0 %3870
        %3874 = vrot.lane.b32.xlu0 %v3867, 16
        %v3875 = vpop.permute.xlu0 %3874
        %3878 = vrot.lane.b32.xlu0 %v3868, 24
        %v3879 = vpop.permute.xlu0 %3878
        %v3881 = vsel %vm1987, %v3865, %v3871
        %v3882 = vsel %vm2554, %v3881, %v3875
        %v3883 = vsel %vm2556, %v3882, %v3879
        %v3884 = vpack.c.bf16 %v3883, %v3883
        %v3885 = vld [vmem:[#allocation29] sm:$0xf]
        %v3886 = vld [vmem:[#allocation29 + $0x4] sm:$0xf]
        %v3887 = vld [vmem:[#allocation29 + $0x8] sm:$0xf]
        %v3888 = vld [vmem:[#allocation29 + $0xc] sm:$0xf]
        %v3889 = vld [vmem:[#allocation31] sm:$0x1]
        %v3891 = vlaneseq
        %v3892 = vshrl.u32 %v3891, 7
        %v3893 = vsub.s32 0, %v3892
        %v3894 = vrot.slane %v3889, %v3893
        %v3900 = vunpack.c.l.b16 %v3885
        %v3901 = vunpack.c.l.b16 %v3886
        %v3902 = vunpack.c.l.b16 %v3887
        %v3903 = vunpack.c.l.b16 %v3888
        %v3904 = vpack.c.b16 %v3901, %v3900
        %v3905 = vpack.c.b16 %v3903, %v3902
        %v3909 = vsel %vm1367, %v3884, 0
        %3911 = vmatprep.subr.bf16.mxu0 0
        %3912 = vmatpush1.bf16.msra.mxu0 %v3904
        %3913 = vmatprep.subr.bf16.mxu0 0
        %3914 = vmatpush1.bf16.msra.mxu0 %v3905
        %3915 = vmatprep.subr.bf16.mxu0 0
        %3916 = vmatpush1.bf16.msra.mxu0 0
        %3917 = vmatprep.subr.bf16.mxu0 0
        %3918 = vmatpush1.bf16.msra.mxu0 0
        %3919 = vmatprep.subr.bf16.mxu0 0
        %3920 = vmatpush1.bf16.msra.mxu0 0
        %3921 = vmatprep.subr.bf16.mxu0 0
        %3922 = vmatpush1.bf16.msra.mxu0 0
        %3923 = vmatprep.subr.bf16.mxu0 0
        %3924 = vmatpush1.bf16.msra.mxu0 0
        %3925 = vmatprep.subr.bf16.mxu0 0
        %3926 = vmatpush1.bf16.msra.mxu0 0
        %3927 = vmatprep.subr.bf16.mxu0 0
        %3928 = vmatpush1.bf16.msra.mxu0 0
        %3929 = vmatprep.subr.bf16.mxu0 0
        %3930 = vmatpush1.bf16.msra.mxu0 0
        %3931 = vmatprep.subr.bf16.mxu0 0
        %3932 = vmatpush1.bf16.msra.mxu0 0
        %3933 = vmatprep.subr.bf16.mxu0 0
        %3934 = vmatpush1.bf16.msra.mxu0 0
        %3935 = vmatprep.subr.bf16.mxu0 0
        %3936 = vmatpush1.bf16.msra.mxu0 0
        %3937 = vmatprep.subr.bf16.mxu0 0
        %3938 = vmatpush1.bf16.msra.mxu0 0
        %3939 = vmatprep.subr.bf16.mxu0 0
        %3940 = vmatpush1.bf16.msra.mxu0 0
        %3941 = vmatprep.subr.bf16.mxu0 0
        %3942 = vmatpush1.bf16.msra.mxu0 0
        %3943 = vmatprep.mubr.bf16.mxu0 0
        %3944 = vmatmul.mubr.bf16.gmra.mrb[0].mxu0 %v3909
        %v3945 = vpop.f32.mrb[0].mxu0
        %v3946 = vadd.f32 %v3894, %v3945
        %v3947 = vpop.f32.mrb[0].mxu0
        %v3948 = vpop.f32.mrb[0].mxu0
        %v3949 = vpop.f32.mrb[0].mxu0
        %3950 = vdwg.mxu0
        %v3951 = vadd.f32 %v2663, %v3946
        %v3952 = vld [vmem:[#allocation41] sm:$0x1]
        %v3953 = vld [vmem:[#allocation43] sm:$0x1]
        %v3954 = vsel %vm1367, %v3951, 0.0
        %3955 = vadd.xlane.f32.xlu0 %v3954
        %v3956 = vpop.xlane.xlu0 %3955
        %v3957 = vmul.f32 %v3956, %v2631
        %v3958 = vsub.f32 %v3951, %v3957
        %v3959 = vmul.f32 %v3958, %v3958
        %v3960 = vsel %vm1367, %v3959, 0.0
        %3961 = vadd.xlane.f32.xlu0 %v3960
        %v3962 = vpop.xlane.xlu0 %3961
        %v3963 = vmul.f32 %v3962, %v2638
        %v3965 = vlaneseq
        %v3966 = vshrl.u32 %v3965, 7
        %v3967 = vsub.s32 0, %v3966
        %v3968 = vrot.slane %v3952, %v3967
        %v3970 = vmul.f32 %v3968, %v3958
        %v3971 = vrsqrt.pop %v3963
        %v3972 = vmul.f32 %v3963, %v3971
        %vm3973 = vcmp.eq.f32.partialorder %v3963, inf
        %v3974 = vsel %vm3973, %v3963, %v3972
        %vm3975 = vcmp.eq.f32.partialorder %v3963, 0.0
        %v3976 = vand.u32 %v3963, 2147483648
        %v3977 = vsel %vm3975, %v3976, %v3974
        %v3978 = vadd.f32 %v3977, 1e-06
        %v3979 = vrcp.pop %v3978
        %v3980 = vmul.f32 %v3970, %v3979
        %v3982 = vlaneseq
        %v3983 = vshrl.u32 %v3982, 7
        %v3984 = vsub.s32 0, %v3983
        %v3985 = vrot.slane %v3953, %v3984
        %v3987 = vadd.f32 %v3980, %v3985
        %v3988 = vpack.c.bf16 %v3987, %v3987
        %v3989 = vld [vmem:[#allocation32] sm:$0xf]
        %v3990 = vld [vmem:[#allocation32 + $0x4] sm:$0xf]
        %v3991 = vld [vmem:[#allocation32 + $0x8] sm:$0xf]
        %v3992 = vld [vmem:[#allocation32 + $0xc] sm:$0xf]
        %v3993 = vld [vmem:[#allocation34] sm:$0x1]
        %v3995 = vlaneseq
        %v3996 = vshrl.u32 %v3995, 7
        %v3997 = vsub.s32 0, %v3996
        %v3998 = vrot.slane %v3993, %v3997
        %v4004 = vunpack.c.l.b16 %v3989
        %v4005 = vunpack.c.l.b16 %v3990
        %v4006 = vunpack.c.l.b16 %v3991
        %v4007 = vunpack.c.l.b16 %v3992
        %v4008 = vpack.c.b16 %v4005, %v4004
        %v4009 = vpack.c.b16 %v4007, %v4006
        %v4013 = vsel %vm1367, %v3988, 0
        %4015 = vmatprep.subr.bf16.mxu0 0
        %4016 = vmatpush1.bf16.msra.mxu0 %v4008
        %4017 = vmatprep.subr.bf16.mxu0 0
        %4018 = vmatpush1.bf16.msra.mxu0 %v4009
        %4019 = vmatprep.subr.bf16.mxu0 0
        %4020 = vmatpush1.bf16.msra.mxu0 0
        %4021 = vmatprep.subr.bf16.mxu0 0
        %4022 = vmatpush1.bf16.msra.mxu0 0
        %4023 = vmatprep.subr.bf16.mxu0 0
        %4024 = vmatpush1.bf16.msra.mxu0 0
        %4025 = vmatprep.subr.bf16.mxu0 0
        %4026 = vmatpush1.bf16.msra.mxu0 0
        %4027 = vmatprep.subr.bf16.mxu0 0
        %4028 = vmatpush1.bf16.msra.mxu0 0
        %4029 = vmatprep.subr.bf16.mxu0 0
        %4030 = vmatpush1.bf16.msra.mxu0 0
        %4031 = vmatprep.subr.bf16.mxu0 0
        %4032 = vmatpush1.bf16.msra.mxu0 0
        %4033 = vmatprep.subr.bf16.mxu0 0
        %4034 = vmatpush1.bf16.msra.mxu0 0
        %4035 = vmatprep.subr.bf16.mxu0 0
        %4036 = vmatpush1.bf16.msra.mxu0 0
        %4037 = vmatprep.subr.bf16.mxu0 0
        %4038 = vmatpush1.bf16.msra.mxu0 0
        %4039 = vmatprep.subr.bf16.mxu0 0
        %4040 = vmatpush1.bf16.msra.mxu0 0
        %4041 = vmatprep.subr.bf16.mxu0 0
        %4042 = vmatpush1.bf16.msra.mxu0 0
        %4043 = vmatprep.subr.bf16.mxu0 0
        %4044 = vmatpush1.bf16.msra.mxu0 0
        %4045 = vmatprep.subr.bf16.mxu0 0
        %4046 = vmatpush1.bf16.msra.mxu0 0
        %4047 = vmatprep.mubr.bf16.mxu0 0
        %4048 = vmatmul.mubr.bf16.gmra.mrb[0].mxu0 %v4013
        %v4049 = vpop.f32.mrb[0].mxu0
        %v4050 = vadd.f32 %v3998, %v4049
        %v4051 = vpop.f32.mrb[0].mxu0
        %v4052 = vpop.f32.mrb[0].mxu0
        %v4053 = vpop.f32.mrb[0].mxu0
        %4054 = vdwg.mxu0
        %v4055 = vmax.f32 %v4050, 0.0
        %v4056 = vpack.c.bf16 %v4055, %v4055
        %v4057 = vld [vmem:[#allocation35] sm:$0xf]
        %v4058 = vld [vmem:[#allocation35 + $0x4] sm:$0xf]
        %v4059 = vld [vmem:[#allocation35 + $0x8] sm:$0xf]
        %v4060 = vld [vmem:[#allocation35 + $0xc] sm:$0xf]
        %v4061 = vld [vmem:[#allocation35 + $0x10] sm:$0xf]
        %v4062 = vld [vmem:[#allocation35 + $0x14] sm:$0xf]
        %v4063 = vld [vmem:[#allocation35 + $0x18] sm:$0xf]
        %v4064 = vld [vmem:[#allocation35 + $0x1c] sm:$0xf]
        %v4065 = vld [vmem:[#allocation37] sm:$0x1]
        %v4067 = vlaneseq
        %v4068 = vshrl.u32 %v4067, 7
        %v4069 = vsub.s32 0, %v4068
        %v4070 = vrot.slane %v4065, %v4069
        %v4080 = vunpack.c.l.b16 %v4057
        %v4081 = vunpack.c.l.b16 %v4058
        %v4082 = vunpack.c.l.b16 %v4059
        %v4083 = vunpack.c.l.b16 %v4060
        %v4084 = vunpack.c.l.b16 %v4061
        %v4085 = vunpack.c.l.b16 %v4062
        %v4086 = vunpack.c.l.b16 %v4063
        %v4087 = vunpack.c.l.b16 %v4064
        %v4088 = vpack.c.b16 %v4081, %v4080
        %v4089 = vpack.c.b16 %v4083, %v4082
        %v4090 = vpack.c.b16 %v4085, %v4084
        %v4091 = vpack.c.b16 %v4087, %v4086
        %vm4096 = vcmask 523264
        %v4098 = vsel %vm4096, %v4056, 0
        %4100 = vmatprep.subr.bf16.mxu0 0
        %4101 = vmatpush1.bf16.msra.mxu0 %v4088
        %4102 = vmatprep.subr.bf16.mxu0 0
        %4103 = vmatpush1.bf16.msra.mxu0 %v4089
        %4104 = vmatprep.subr.bf16.mxu0 0
        %4105 = vmatpush1.bf16.msra.mxu0 %v4090
        %4106 = vmatprep.subr.bf16.mxu0 0
        %4107 = vmatpush1.bf16.msra.mxu0 %v4091
        %4108 = vmatprep.subr.bf16.mxu0 0
        %4109 = vmatpush1.bf16.msra.mxu0 0
        %4110 = vmatprep.subr.bf16.mxu0 0
        %4111 = vmatpush1.bf16.msra.mxu0 0
        %4112 = vmatprep.subr.bf16.mxu0 0
        %4113 = vmatpush1.bf16.msra.mxu0 0
        %4114 = vmatprep.subr.bf16.mxu0 0
        %4115 = vmatpush1.bf16.msra.mxu0 0
        %4116 = vmatprep.subr.bf16.mxu0 0
        %4117 = vmatpush1.bf16.msra.mxu0 0
        %4118 = vmatprep.subr.bf16.mxu0 0
        %4119 = vmatpush1.bf16.msra.mxu0 0
        %4120 = vmatprep.subr.bf16.mxu0 0
        %4121 = vmatpush1.bf16.msra.mxu0 0
        %4122 = vmatprep.subr.bf16.mxu0 0
        %4123 = vmatpush1.bf16.msra.mxu0 0
        %4124 = vmatprep.subr.bf16.mxu0 0
        %4125 = vmatpush1.bf16.msra.mxu0 0
        %4126 = vmatprep.subr.bf16.mxu0 0
        %4127 = vmatpush1.bf16.msra.mxu0 0
        %4128 = vmatprep.subr.bf16.mxu0 0
        %4129 = vmatpush1.bf16.msra.mxu0 0
        %4130 = vmatprep.subr.bf16.mxu0 0
        %4131 = vmatpush1.bf16.msra.mxu0 0
        %4132 = vmatprep.mubr.bf16.mxu0 0
        %4133 = vmatmul.mubr.bf16.gmra.mrb[0].mxu0 %v4098
        %v4134 = vpop.f32.mrb[0].mxu0
        %v4135 = vadd.f32 %v4070, %v4134
        %v4136 = vpop.f32.mrb[0].mxu0
        %v4137 = vpop.f32.mrb[0].mxu0
        %v4138 = vpop.f32.mrb[0].mxu0
        %4139 = vdwg.mxu0
        %v4140 = vadd.f32 %v3987, %v4135
        %v4141 = vld [vmem:[#allocation44] sm:$0x1]
        %v4142 = vld [vmem:[#allocation46] sm:$0x1]
        %v4143 = vsel %vm1367, %v4140, 0.0
        %4144 = vadd.xlane.f32.xlu0 %v4143
        %v4145 = vpop.xlane.xlu0 %4144
        %v4146 = vmul.f32 %v4145, %v2631
        %v4147 = vsub.f32 %v4140, %v4146
        %v4148 = vmul.f32 %v4147, %v4147
        %v4149 = vsel %vm1367, %v4148, 0.0
        %4150 = vadd.xlane.f32.xlu0 %v4149
        %v4151 = vpop.xlane.xlu0 %4150
        %v4152 = vmul.f32 %v4151, %v2638
        %v4154 = vlaneseq
        %v4155 = vshrl.u32 %v4154, 7
        %v4156 = vsub.s32 0, %v4155
        %v4157 = vrot.slane %v4141, %v4156
        %v4159 = vmul.f32 %v4157, %v4147
        %v4160 = vrsqrt.pop %v4152
        %v4161 = vmul.f32 %v4152, %v4160
        %vm4162 = vcmp.eq.f32.partialorder %v4152, inf
        %v4163 = vsel %vm4162, %v4152, %v4161
        %vm4164 = vcmp.eq.f32.partialorder %v4152, 0.0
        %v4165 = vand.u32 %v4152, 2147483648
        %v4166 = vsel %vm4164, %v4165, %v4163
        %v4167 = vadd.f32 %v4166, 1e-06
        %v4168 = vrcp.pop %v4167
        %v4169 = vmul.f32 %v4159, %v4168
        %v4171 = vlaneseq
        %v4172 = vshrl.u32 %v4171, 7
        %v4173 = vsub.s32 0, %v4172
        %v4174 = vrot.slane %v4142, %v4173
        %v4176 = vadd.f32 %v4169, %v4174
        %4177 = vst.msk [vmem:[%s1330] sm:$0xff] %vm1367, %v4176
        %s4178 = sand.u32 %s724, 1
        %s4179 = scalar_lea.sflag [#allocation4], %s4178
        %s4180 = sand.u32 %s724, 1
        %s4181 = smul.addr %s4180, 8
        %s4182 = scalar_lea.vmem [#allocation47], %s4181
        // Predicated region
        $region253: #{tpu_custom_call.1} parent=135 // pred_check
          %p4183 = pneg %p734
        $region254: #{tpu_custom_call.1} parent=135 // pred_check_branch
          %4185 = sbr.rel (%p4183) target = $region256
        $region255: #{tpu_custom_call.1} parent=135 // pred_region
          %s4187 = ssub.s32 128, 128
          %4188 = vsyncadd %s4179, %s4187
          %s4189 = smul.addr %s92, 128
          %s4190 = scalar_lea.hbm %s59, %s4189
          %s4192 = sshll.u32 %s4182, 4
          %s4193 = int_to_ptr.vmem [resolvable:$true] %s4192
          %4195 = dma.vmem_to_hbm [thread:$0]  %s4193, 128, %s4190, %s4179
        $region256: #{tpu_custom_call.1} parent=135 // pred_fallthru
          _
      $region136: #{tpu_custom_call.1} parent=5 // pred_fallthru
        _
      %p4196 = scmp.le.s32.totalorder 2, %s87
      // Predicated region
      $region257: #{tpu_custom_call.1} parent=5 // pred_check
        %p4197 = pneg %p4196
      $region258: #{tpu_custom_call.1} parent=5 // pred_check_branch
        %4199 = sbr.rel (%p4197) target = $region260
      $region259: #{tpu_custom_call.1} parent=5 // pred_region
        %s4200 = ssub.s32 %s87, 2
        // Predicated region
        $region261: #{tpu_custom_call.1} parent=259 // pred_check
          %p4201 = pneg %p740
        $region262: #{tpu_custom_call.1} parent=259 // pred_check_branch
          %4203 = sbr.rel (%p4201) target = $region264
        $region263: #{tpu_custom_call.1} parent=259 // pred_region
          %s4204 = sand.u32 %s725, 1
          %s4205 = scalar_lea.sflag [#allocation4], %s4204
          %s4206 = sand.u32 %s725, 1
          %s4207 = smul.addr %s4206, 8
          %s4208 = scalar_lea.vmem [#allocation47], %s4207
          %4209 = dma.done %s4205, 128
        $region264: #{tpu_custom_call.1} parent=259 // pred_fallthru
          _
      $region260: #{tpu_custom_call.1} parent=5 // pred_fallthru
        _
    $region6: #{tpu_custom_call.1} parent=1 // loop_footer
      %s91 = sadd.s32 1, %s87
    $region7: #{tpu_custom_call.1} parent=1 // loop_footer_branch
      %86 = sbr.rel target = $region3
    $region8: #{tpu_custom_call.1} parent=1 // loop_exit
      _
    %4210 = vsyncpa [#allocation3], 1
    %s4211 = scalar_lea.sflag [#allocation3], 1
    %4212 = vsyncpa %s4211, 1
    %4213 = vsyncpa [#allocation6], 1
    %s4214 = scalar_lea.sflag [#allocation6], 1
    %4215 = vsyncpa %s4214, 1
    %4216 = vsyncpa [#allocation9], 1
    %4217 = vsyncpa [#allocation12], 1
    %4218 = vsyncpa [#allocation15], 1
    %4219 = vsyncpa [#allocation18], 1
    %4220 = vsyncpa [#allocation21], 1
    %4221 = vsyncpa [#allocation24], 1
    %4222 = vsyncpa [#allocation27], 1
    %4223 = vsyncpa [#allocation30], 1
    %4224 = vsyncpa [#allocation33], 1
    %4225 = vsyncpa [#allocation36], 1
    %4226 = vsyncpa [#allocation39], 1
    %4227 = vsyncpa [#allocation42], 1
    %4228 = vsyncpa [#allocation45], 1
    %4229 = vsyncpa [#allocation4], 1
    %s4230 = scalar_lea.sflag [#allocation4], 1
    %4231 = vsyncpa %s4230, 1

</llo_original>
